<compile_context>
chip_gen: v7x
topology: tpu7x:2x2x1
jax: 0.10.0
libtpu: 0.0.40
codegen_flags: <defaults>
</compile_context>

<pallas_src>
import functools

import numpy as np

import jax
import jax.numpy as jnp
from jax.experimental import pallas as pl
from jax.experimental.pallas import tpu as pltpu

BN_EPS = 1e-5
LANE = 128
# Hexagonal 7-tap stencil: 3x3 kernel with the (0,2) and (2,0) corners dropped
# (PHDConv2d hexagonal weight mask).
HEX_TAPS = ((0, 0), (0, 1), (1, 0), (1, 1), (1, 2), (2, 1), (2, 2))


def _round_up(x, m):
    return (x + m - 1) // m * m


def _vmem_limit_bytes():
    """Generation-aware VMEM cap (~128 MiB v5e/v6e, 64 MiB v7x) with headroom."""
    cap = 64 * 1024 * 1024                      # conservative fallback (v7x size)
    try:
        cap = int(getattr(pltpu.get_tpu_info(), "vmem_capacity_bytes", cap))
    except Exception:
        pass
    return max(32 * 1024 * 1024, min(cap - 16 * 1024 * 1024, 100 * 1024 * 1024))


def _geometry(h, w):
    """Flat, zero-padded, lane-aligned per-image layout shared by both convs.

    A padded (Hp, Wp) image is flattened and placed at offset MARGIN inside a
    length-LF buffer (LF a multiple of 128).  The 7 hexagonal taps then become
    static lane slices x[:, s : s + L_OUT] with s = MARGIN + (dy-1)*Wp + (dx-1),
    and buffer position MARGIN + p holds the conv result for padded pixel p.
    Valid interior outputs only ever read the padded-image region (whose border
    the previous layer zeroes), so input and output share the exact same layout
    and chain between layers without any HBM repacking.
    """
    hp, wp = h + 2, w + 2
    hpwp = hp * wp
    margin = _round_up(wp + 1, LANE)
    l_out = _round_up(hpwp, LANE)
    lf = _round_up(margin + l_out + wp + 1, LANE)
    starts = tuple(margin + (dy - 1) * wp + (dx - 1) for dy, dx in HEX_TAPS)
    return dict(h=h, w=w, hp=hp, wp=wp, hpwp=hpwp, margin=margin,
                l_out=l_out, lf=lf, starts=starts)


# --------------------------------------------------------------------------- #
# Pallas kernels
# --------------------------------------------------------------------------- #
def _hex_conv_stats_kernel(x_ref, w_ref, mask_ref, stats_ref, *, starts, l_out):
    """7-tap hex conv on one image; emit per-channel (sum, sum-of-squares)."""
    x = x_ref[...]                                           # (Cin, LF) bf16
    acc = None
    for t, s in enumerate(starts):                           # 7 static tap shifts
        part = jnp.dot(w_ref[t], x[:, s:s + l_out],
                       preferred_element_type=jnp.float32)   # (Cout, L_out) f32
        acc = part if acc is None else acc + part
    m = mask_ref[...]                                        # (1, L_out) f32
    ym = acc * m                                             # zero pad / halo lanes
    stats_ref[:, 0:1] = jnp.sum(ym, axis=1, keepdims=True)   # sum(y)
    stats_ref[:, 1:2] = jnp.sum(ym * acc, axis=1, keepdims=True)  # sum(mask*y^2)


def _hex_conv_bn_relu_kernel(x_ref, w_ref, mask_ref, scale_ref, shift_ref, o_ref,
                             *, starts, l_out, margin, lf):
    """Recompute the hex conv, apply BN affine + ReLU, rewrite the flat layout."""
    x = x_ref[...]                                           # (Cin, LF) bf16
    acc = None
    for t, s in enumerate(starts):
        part = jnp.dot(w_ref[t], x[:, s:s + l_out],
                       preferred_element_type=jnp.float32)
        acc = part if acc is None else acc + part
    y = jnp.maximum(acc * scale_ref[...] + shift_ref[...], 0.0)
    y = (y * mask_ref[...]).astype(o_ref.dtype)              # zero pad / halo lanes
    cout = y.shape[0]
    # Fully rewrite the lane-aligned flat buffer (all slices are multiples of
    # 128 => unmasked full-lane stores) so the next layer consumes it directly.
    o_ref[:, :margin] = jnp.zeros((cout, margin), o_ref.dtype)
    o_ref[:, margin:margin + l_out] = y
    o_ref[:, margin + l_out:lf] = jnp.zeros((cout, lf - margin - l_out),
                                            o_ref.dtype)


# --------------------------------------------------------------------------- #
# Layout helpers (single XLA pass in / out of the flat layout)
# --------------------------------------------------------------------------- #
def _to_flat(x_nchw, geom):
    """(N, C, H, W) f32 -> (N, C, LF) bf16 padded flat layout (single pass)."""
    n, c, _, _ = x_nchw.shape
    # TODO(synk): padding().get_padding performs icosahedral/spherical wrap
    # padding keyed on `level`; approximated here with zero padding of width 1.
    xp = jnp.pad(x_nchw, ((0, 0), (0, 0), (1, 1), (1, 1)))
    xf = xp.reshape(n, c, geom["hpwp"]).astype(jnp.bfloat16)
    tail = geom["lf"] - geom["margin"] - geom["hpwp"]
    return jnp.pad(xf, ((0, 0), (0, 0), (geom["margin"], tail)))


def _from_flat(y_flat, geom):
    """(N, C, LF) flat layout -> (N, C, H, W) (final output only)."""
    n, c, _ = y_flat.shape
    img = y_flat[:, :, geom["margin"]:geom["margin"] + geom["hpwp"]]
    img = img.reshape(n, c, geom["hp"], geom["wp"])
    return img[:, :, 1:1 + geom["h"], 1:1 + geom["w"]]


def _valid_mask(geom):
    """1.0 on interior pixels of the flat padded layout, 0.0 elsewhere."""
    p = jnp.arange(geom["l_out"])
    r, c = p // geom["wp"], p % geom["wp"]
    valid = ((p < geom["hpwp"]) & (r >= 1) & (r <= geom["h"])
             & (c >= 1) & (c <= geom["w"]))
    return valid.astype(jnp.float32).reshape(1, geom["l_out"])


def _check_vmem_fit(cin, cout, geom, out_itemsize, vmem_limit):
    lf, l_out = geom["lf"], geom["l_out"]
    per_step = (2 * cin * lf * 2                  # double-buffered bf16 input block
                + 2 * cout * lf * out_itemsize    # double-buffered output block
                + cin * lf * 2                    # in-register copy of the input
                + 4 * cout * l_out * 4)           # f32 accumulator + temporaries
    if per_step > vmem_limit // 2:
        # TODO(synk): add row-band tiling with halo DMA (memory_space=pl.ANY +
        # pltpu.make_async_copy) for images too large for one VMEM-resident step.
        raise NotImplementedError(
            "Image too large for whole-image-per-grid-step tiling.")


# --------------------------------------------------------------------------- #
# One PHDConv2d -> BatchNorm2d (batch stats) -> ReLU layer, in flat layout
# --------------------------------------------------------------------------- #
def phd_conv_bn_relu_flat(x_flat, weight, gamma, beta, mask, geom, out_dtype,
                          vmem_limit):
    n, cin, lf = x_flat.shape
    cout = weight.shape[0]
    _check_vmem_fit(cin, cout, geom, np.dtype(out_dtype).itemsize, vmem_limit)

    w7 = jnp.stack([weight[:, :, dy, dx] for dy, dx in HEX_TAPS],
                   axis=0).astype(jnp.bfloat16)               # (7, Cout, Cin)

    cparams = pltpu.CompilerParams(dimension_semantics=("parallel",),
                                   vmem_limit_bytes=vmem_limit)

    # Pass 1: per-image channel sums / sums-of-squares (one merged tiny output).
    stats = pl.pallas_call(
        functools.partial(_hex_conv_stats_kernel, starts=geom["starts"],
                          l_out=geom["l_out"]),
        out_shape=jax.ShapeDtypeStruct((n, cout, 2), jnp.float32),
        grid=(n,),
        in_specs=[
            pl.BlockSpec((None, cin, lf), lambda i: (i, 0, 0)),
            pl.BlockSpec((7, cout, cin), lambda i: (0, 0, 0)),
            pl.BlockSpec((1, geom["l_out"]), lambda i: (0, 0)),
        ],
        out_specs=pl.BlockSpec((None, cout, 2), lambda i: (i, 0, 0)),
        compiler_params=cparams,
    )(x_flat, w7, mask)

    # BatchNorm training-mode statistics (biased variance), reduced in XLA.
    # The conv bias is omitted: BN subtracts the batch mean, which cancels a
    # constant per-channel bias exactly.
    m_count = float(n * geom["h"] * geom["w"])
    mean = jnp.sum(stats[:, :, 0], axis=0) / m_count
    # TODO(synk): E[y^2] - mean^2 in f32 can lose precision for large offsets;
    # a Welford / shifted two-pass formulation would be more robust.
    var = jnp.maximum(jnp.sum(stats[:, :, 1], axis=0) / m_count - mean * mean,
                      0.0)
    scale = gamma * jax.lax.rsqrt(var + BN_EPS)
    shift = beta - mean * scale
    scale2d = scale.reshape(cout, 1).astype(jnp.float32)
    shift2d = shift.reshape(cout, 1).astype(jnp.float32)

    # Pass 2: recompute the (cheap) conv and apply BN affine + ReLU, writing
    # straight back into the same flat padded layout (no pre-BN HBM round-trip).
    y_flat = pl.pallas_call(
        functools.partial(_hex_conv_bn_relu_kernel, starts=geom["starts"],
                          l_out=geom["l_out"], margin=geom["margin"], lf=lf),
        out_shape=jax.ShapeDtypeStruct((n, cout, lf), out_dtype),
        grid=(n,),
        in_specs=[
            pl.BlockSpec((None, cin, lf), lambda i: (i, 0, 0)),
            pl.BlockSpec((7, cout, cin), lambda i: (0, 0, 0)),
            pl.BlockSpec((1, geom["l_out"]), lambda i: (0, 0)),
            pl.BlockSpec((cout, 1), lambda i: (0, 0)),
            pl.BlockSpec((cout, 1), lambda i: (0, 0)),
        ],
        out_specs=pl.BlockSpec((None, cout, lf), lambda i: (i, 0, 0)),
        compiler_params=cparams,
    )(x_flat, w7, mask, scale2d, shift2d)
    return y_flat


# --------------------------------------------------------------------------- #
# ResBlock_enc: parameters + forward
# --------------------------------------------------------------------------- #
def init_resblock_enc_params(key, in_channels, hidden_channels, out_channels):
    k1, k2 = jax.random.split(key, 2)

    def conv_init(k, cout, cin):
        fan_in = cin * 9
        bound = 1.0 / jnp.sqrt(fan_in)
        kw, kb = jax.random.split(k)
        w = jax.random.uniform(kw, (cout, cin, 3, 3), jnp.float32, -bound, bound)
        b = jax.random.uniform(kb, (cout,), jnp.float32, -bound, bound)
        return w, b

    w1, b1 = conv_init(k1, hidden_channels, in_channels)
    w2, b2 = conv_init(k2, out_channels, hidden_channels)
    return dict(
        # Biases kept for parameter parity with PyTorch; they are not applied
        # in the forward pass because BatchNorm's batch-mean subtraction
        # cancels a constant per-channel bias exactly.
        w1=w1, b1=b1,
        gamma1=jnp.ones((hidden_channels,), jnp.float32),
        beta1=jnp.zeros((hidden_channels,), jnp.float32),
        w2=w2, b2=b2,
        gamma2=jnp.ones((out_channels,), jnp.float32),
        beta2=jnp.zeros((out_channels,), jnp.float32),
    )


def resblock_enc_forward(params, x, level):
    # `level` selects the icosahedral padding pattern in the reference code;
    # the zero-padding approximation here does not depend on it.
    del level
    _, _, h, w = x.shape
    geom = _geometry(h, w)
    vmem_limit = _vmem_limit_bytes()
    mask = _valid_mask(geom)
    # NOTE: grid is (N,); with N >= 2 both v7x TensorCores get work.  For N == 1
    # a leading spatial split would be needed to keep both cores busy.
    x_flat = _to_flat(x, geom)
    h_flat = phd_conv_bn_relu_flat(x_flat, params["w1"], params["gamma1"],
                                   params["beta1"], mask, geom, jnp.bfloat16,
                                   vmem_limit)
    y_flat = phd_conv_bn_relu_flat(h_flat, params["w2"], params["gamma2"],
                                   params["beta2"], mask, geom, jnp.float32,
                                   vmem_limit)
    return _from_flat(y_flat, geom)


def reference_forward(params, x):
    """Pure-JAX f32 reference: hex-masked 3x3 conv -> batch-stat BN -> ReLU."""
    hex_mask = jnp.ones((3, 3), jnp.float32).at[0, 2].set(0.0).at[2, 0].set(0.0)

    def layer(z, w, b, gamma, beta):
        y = jax.lax.conv_general_dilated(
            z, w * hex_mask[None, None], (1, 1), [(1, 1), (1, 1)],
            dimension_numbers=("NCHW", "OIHW", "NCHW"))
        y = y + b[None, :, None, None]
        mean = jnp.mean(y, axis=(0, 2, 3), keepdims=True)
        var = jnp.var(y, axis=(0, 2, 3), keepdims=True)
        y = (y - mean) * jax.lax.rsqrt(var + BN_EPS)
        y = gamma[None, :, None, None] * y + beta[None, :, None, None]
        return jnp.maximum(y, 0.0)

    h = layer(x, params["w1"], params["b1"], params["gamma1"], params["beta1"])
    return layer(h, params["w2"], params["b2"], params["gamma2"], params["beta2"])


# --------------------------------------------------------------------------- #
if __name__ == "__main__":
    key = jax.random.PRNGKey(0)
    k_x, k_p = jax.random.split(key)

    N, C_IN, H, W = 2, 4, 16, 16
    HIDDEN, C_OUT = 8, 8
    LEVEL = 0

    x = jax.random.normal(k_x, (N, C_IN, H, W), dtype=jnp.float32)
    params = init_resblock_enc_params(k_p, C_IN, HIDDEN, C_OUT)

    fwd = jax.jit(functools.partial(resblock_enc_forward, level=LEVEL))
    out = jax.block_until_ready(fwd(params, x))

    assert out.shape == (N, C_OUT, H, W)
    assert bool(jnp.all(out >= 0.0))            # ReLU output is non-negative

    # Pure-JAX f32 reference check (loose tolerance: bf16 MXU inputs and a
    # bf16 inter-layer activation vs an all-f32 reference).
    ref = jax.block_until_ready(reference_forward(params, x))
    max_err = float(jnp.max(jnp.abs(out - ref)))
    assert max_err < 0.2, f"mismatch vs f32 reference: max abs err = {max_err}"

    print("KERNEL_OK")
</pallas_src>

<mosaic_0001>
module attributes {stable_mosaic.version = 11 : i64} {
  func.func @_hex_conv_stats_kernel(%arg0: i32, %arg1: memref<1x4x640xbf16, #tpu.memory_space<vmem>>, %arg2: memref<7x8x4xbf16, #tpu.memory_space<vmem>>, %arg3: memref<1x384xf32, #tpu.memory_space<vmem>>, %arg4: memref<1x8x2xf32, #tpu.memory_space<vmem>>) attributes {dimension_semantics = [#tpu.dimension_semantics<parallel>], iteration_bounds = array<i64: 2>, scalar_prefetch = 0 : i64, scratch_operands = 0 : i64, tpu.core_type = #tpu.core_type<tc>, window_params = [{transform_indices = @transform_0, window_bounds = array<i64: 1, 4, 640>}, {pipeline_mode = #tpu.pipeline_mode<synchronous>, transform_indices = @transform_1, window_bounds = array<i64: 7, 8, 4>}, {pipeline_mode = #tpu.pipeline_mode<synchronous>, transform_indices = @transform_2, window_bounds = array<i64: 1, 384>}, {transform_indices = @transform_3, window_bounds = array<i64: 1, 8, 2>}]} {
    %c0 = arith.constant 0 : index
    %c0_0 = arith.constant 0 : index
    %c0_1 = arith.constant 0 : index
    %0 = vector.load %arg1[%c0, %c0_0, %c0_1] : memref<1x4x640xbf16, #tpu.memory_space<vmem>>, vector<1x4x640xbf16>
    %1 = vector.shape_cast %0 : vector<1x4x640xbf16> to vector<4x640xbf16>
    %c0_2 = arith.constant 0 : index
    %c0_3 = arith.constant 0 : index
    %c0_4 = arith.constant 0 : index
    %2 = vector.load %arg2[%c0_2, %c0_3, %c0_4] : memref<7x8x4xbf16, #tpu.memory_space<vmem>>, vector<1x8x4xbf16>
    %3 = vector.shape_cast %2 : vector<1x8x4xbf16> to vector<8x4xbf16>
    %4 = vector.extract_strided_slice %1 {offsets = [0, 109], sizes = [4, 384], strides = [1, 1]} : vector<4x640xbf16> to vector<4x384xbf16>
    %cst = arith.constant dense<0.000000e+00> : vector<8x384xf32>
    %5 = tpu.matmul %3, %4, %cst {dimension_numbers = #tpu.dot_dimension_numbers<[1], [0], [0], [1], [0, 0, 1, 1], [], []>} : vector<8x4xbf16>, vector<4x384xbf16>, vector<8x384xf32> -> vector<8x384xf32>
    %c1 = arith.constant 1 : index
    %c0_5 = arith.constant 0 : index
    %c0_6 = arith.constant 0 : index
    %6 = vector.load %arg2[%c1, %c0_5, %c0_6] : memref<7x8x4xbf16, #tpu.memory_space<vmem>>, vector<1x8x4xbf16>
    %7 = vector.shape_cast %6 : vector<1x8x4xbf16> to vector<8x4xbf16>
    %8 = vector.extract_strided_slice %1 {offsets = [0, 110], sizes = [4, 384], strides = [1, 1]} : vector<4x640xbf16> to vector<4x384xbf16>
    %cst_7 = arith.constant dense<0.000000e+00> : vector<8x384xf32>
    %9 = tpu.matmul %7, %8, %cst_7 {dimension_numbers = #tpu.dot_dimension_numbers<[1], [0], [0], [1], [0, 0, 1, 1], [], []>} : vector<8x4xbf16>, vector<4x384xbf16>, vector<8x384xf32> -> vector<8x384xf32>
    %10 = arith.addf %5, %9 : vector<8x384xf32>
    %c2 = arith.constant 2 : index
    %c0_8 = arith.constant 0 : index
    %c0_9 = arith.constant 0 : index
    %11 = vector.load %arg2[%c2, %c0_8, %c0_9] : memref<7x8x4xbf16, #tpu.memory_space<vmem>>, vector<1x8x4xbf16>
    %12 = vector.shape_cast %11 : vector<1x8x4xbf16> to vector<8x4xbf16>
    %13 = vector.extract_strided_slice %1 {offsets = [0, 127], sizes = [4, 384], strides = [1, 1]} : vector<4x640xbf16> to vector<4x384xbf16>
    %cst_10 = arith.constant dense<0.000000e+00> : vector<8x384xf32>
    %14 = tpu.matmul %12, %13, %cst_10 {dimension_numbers = #tpu.dot_dimension_numbers<[1], [0], [0], [1], [0, 0, 1, 1], [], []>} : vector<8x4xbf16>, vector<4x384xbf16>, vector<8x384xf32> -> vector<8x384xf32>
    %15 = arith.addf %10, %14 : vector<8x384xf32>
    %c3 = arith.constant 3 : index
    %c0_11 = arith.constant 0 : index
    %c0_12 = arith.constant 0 : index
    %16 = vector.load %arg2[%c3, %c0_11, %c0_12] : memref<7x8x4xbf16, #tpu.memory_space<vmem>>, vector<1x8x4xbf16>
    %17 = vector.shape_cast %16 : vector<1x8x4xbf16> to vector<8x4xbf16>
    %18 = vector.extract_strided_slice %1 {offsets = [0, 128], sizes = [4, 384], strides = [1, 1]} : vector<4x640xbf16> to vector<4x384xbf16>
    %cst_13 = arith.constant dense<0.000000e+00> : vector<8x384xf32>
    %19 = tpu.matmul %17, %18, %cst_13 {dimension_numbers = #tpu.dot_dimension_numbers<[1], [0], [0], [1], [0, 0, 1, 1], [], []>} : vector<8x4xbf16>, vector<4x384xbf16>, vector<8x384xf32> -> vector<8x384xf32>
    %20 = arith.addf %15, %19 : vector<8x384xf32>
    %c4 = arith.constant 4 : index
    %c0_14 = arith.constant 0 : index
    %c0_15 = arith.constant 0 : index
    %21 = vector.load %arg2[%c4, %c0_14, %c0_15] : memref<7x8x4xbf16, #tpu.memory_space<vmem>>, vector<1x8x4xbf16>
    %22 = vector.shape_cast %21 : vector<1x8x4xbf16> to vector<8x4xbf16>
    %23 = vector.extract_strided_slice %1 {offsets = [0, 129], sizes = [4, 384], strides = [1, 1]} : vector<4x640xbf16> to vector<4x384xbf16>
    %cst_16 = arith.constant dense<0.000000e+00> : vector<8x384xf32>
    %24 = tpu.matmul %22, %23, %cst_16 {dimension_numbers = #tpu.dot_dimension_numbers<[1], [0], [0], [1], [0, 0, 1, 1], [], []>} : vector<8x4xbf16>, vector<4x384xbf16>, vector<8x384xf32> -> vector<8x384xf32>
    %25 = arith.addf %20, %24 : vector<8x384xf32>
    %c5 = arith.constant 5 : index
    %c0_17 = arith.constant 0 : index
    %c0_18 = arith.constant 0 : index
    %26 = vector.load %arg2[%c5, %c0_17, %c0_18] : memref<7x8x4xbf16, #tpu.memory_space<vmem>>, vector<1x8x4xbf16>
    %27 = vector.shape_cast %26 : vector<1x8x4xbf16> to vector<8x4xbf16>
    %28 = vector.extract_strided_slice %1 {offsets = [0, 146], sizes = [4, 384], strides = [1, 1]} : vector<4x640xbf16> to vector<4x384xbf16>
    %cst_19 = arith.constant dense<0.000000e+00> : vector<8x384xf32>
    %29 = tpu.matmul %27, %28, %cst_19 {dimension_numbers = #tpu.dot_dimension_numbers<[1], [0], [0], [1], [0, 0, 1, 1], [], []>} : vector<8x4xbf16>, vector<4x384xbf16>, vector<8x384xf32> -> vector<8x384xf32>
    %30 = arith.addf %25, %29 : vector<8x384xf32>
    %c6 = arith.constant 6 : index
    %c0_20 = arith.constant 0 : index
    %c0_21 = arith.constant 0 : index
    %31 = vector.load %arg2[%c6, %c0_20, %c0_21] : memref<7x8x4xbf16, #tpu.memory_space<vmem>>, vector<1x8x4xbf16>
    %32 = vector.shape_cast %31 : vector<1x8x4xbf16> to vector<8x4xbf16>
    %33 = vector.extract_strided_slice %1 {offsets = [0, 147], sizes = [4, 384], strides = [1, 1]} : vector<4x640xbf16> to vector<4x384xbf16>
    %cst_22 = arith.constant dense<0.000000e+00> : vector<8x384xf32>
    %34 = tpu.matmul %32, %33, %cst_22 {dimension_numbers = #tpu.dot_dimension_numbers<[1], [0], [0], [1], [0, 0, 1, 1], [], []>} : vector<8x4xbf16>, vector<4x384xbf16>, vector<8x384xf32> -> vector<8x384xf32>
    %35 = arith.addf %30, %34 : vector<8x384xf32>
    %c0_23 = arith.constant 0 : index
    %c0_24 = arith.constant 0 : index
    %36 = vector.load %arg3[%c0_23, %c0_24] : memref<1x384xf32, #tpu.memory_space<vmem>>, vector<1x384xf32>
    %37 = vector.broadcast %36 : vector<1x384xf32> to vector<8x384xf32>
    %38 = arith.mulf %35, %37 : vector<8x384xf32>
    %cst_25 = arith.constant dense<0.000000e+00> : vector<8xf32>
    %39 = vector.multi_reduction <add>, %38, %cst_25 [1] : vector<8x384xf32> to vector<8xf32>
    %40 = vector.shape_cast %39 : vector<8xf32> to vector<8x1xf32>
    %c0_26 = arith.constant 0 : index
    %c0_27 = arith.constant 0 : index
    %c0_28 = arith.constant 0 : index
    %41 = vector.load %arg4[%c0_26, %c0_27, %c0_28] : memref<1x8x2xf32, #tpu.memory_space<vmem>>, vector<1x8x1xf32>
    %42 = vector.shape_cast %41 : vector<1x8x1xf32> to vector<8x1xf32>
    %43 = vector.shape_cast %40 : vector<8x1xf32> to vector<1x8x1xf32>
    tpu.vector_store %arg4[%c0_26, %c0_27, %c0_28], %43 {strides = array<i32>} : memref<1x8x2xf32, #tpu.memory_space<vmem>>, vector<1x8x1xf32>,
    %44 = arith.mulf %38, %35 : vector<8x384xf32>
    %cst_29 = arith.constant dense<0.000000e+00> : vector<8xf32>
    %45 = vector.multi_reduction <add>, %44, %cst_29 [1] : vector<8x384xf32> to vector<8xf32>
    %46 = vector.shape_cast %45 : vector<8xf32> to vector<8x1xf32>
    %c0_30 = arith.constant 0 : index
    %c0_31 = arith.constant 0 : index
    %c1_32 = arith.constant 1 : index
    %47 = vector.load %arg4[%c0_30, %c0_31, %c1_32] : memref<1x8x2xf32, #tpu.memory_space<vmem>>, vector<1x8x1xf32>
    %48 = vector.shape_cast %47 : vector<1x8x1xf32> to vector<8x1xf32>
    %49 = vector.shape_cast %46 : vector<8x1xf32> to vector<1x8x1xf32>
    tpu.vector_store %arg4[%c0_30, %c0_31, %c1_32], %49 {strides = array<i32>} : memref<1x8x2xf32, #tpu.memory_space<vmem>>, vector<1x8x1xf32>,
    return
  }
  func.func @transform_0(%arg0: i32) -> (i32, i32, i32) {
    %c0_i32 = arith.constant 0 : i32
    %c0_i32_0 = arith.constant 0 : i32
    %c0_i32_1 = arith.constant 0 : i32
    return %arg0, %c0_i32, %c0_i32_0 : i32, i32, i32
  }
  func.func @transform_1(%arg0: i32) -> (i32, i32, i32) {
    %c0_i32 = arith.constant 0 : i32
    %c0_i32_0 = arith.constant 0 : i32
    %c0_i32_1 = arith.constant 0 : i32
    %c0_i32_2 = arith.constant 0 : i32
    return %c0_i32, %c0_i32_0, %c0_i32_1 : i32, i32, i32
  }
  func.func @transform_2(%arg0: i32) -> (i32, i32) {
    %c0_i32 = arith.constant 0 : i32
    %c0_i32_0 = arith.constant 0 : i32
    %c0_i32_1 = arith.constant 0 : i32
    return %c0_i32, %c0_i32_0 : i32, i32
  }
  func.func @transform_3(%arg0: i32) -> (i32, i32, i32) {
    %c0_i32 = arith.constant 0 : i32
    %c0_i32_0 = arith.constant 0 : i32
    %c0_i32_1 = arith.constant 0 : i32
    return %arg0, %c0_i32, %c0_i32_0 : i32, i32, i32
  }
}

module attributes {stable_mosaic.version = 11 : i64} {
  func.func @_hex_conv_bn_relu_kernel(%arg0: i32, %arg1: memref<1x4x640xbf16, #tpu.memory_space<vmem>>, %arg2: memref<7x8x4xbf16, #tpu.memory_space<vmem>>, %arg3: memref<1x384xf32, #tpu.memory_space<vmem>>, %arg4: memref<8x1xf32, #tpu.memory_space<vmem>>, %arg5: memref<8x1xf32, #tpu.memory_space<vmem>>, %arg6: memref<1x8x640xbf16, #tpu.memory_space<vmem>>) attributes {dimension_semantics = [#tpu.dimension_semantics<parallel>], iteration_bounds = array<i64: 2>, scalar_prefetch = 0 : i64, scratch_operands = 0 : i64, tpu.core_type = #tpu.core_type<tc>, window_params = [{transform_indices = @transform_0, window_bounds = array<i64: 1, 4, 640>}, {pipeline_mode = #tpu.pipeline_mode<synchronous>, transform_indices = @transform_1, window_bounds = array<i64: 7, 8, 4>}, {pipeline_mode = #tpu.pipeline_mode<synchronous>, transform_indices = @transform_2, window_bounds = array<i64: 1, 384>}, {pipeline_mode = #tpu.pipeline_mode<synchronous>, transform_indices = @transform_3, window_bounds = array<i64: 8, 1>}, {pipeline_mode = #tpu.pipeline_mode<synchronous>, transform_indices = @transform_4, window_bounds = array<i64: 8, 1>}, {transform_indices = @transform_5, window_bounds = array<i64: 1, 8, 640>}]} {
    %c0 = arith.constant 0 : index
    %c0_0 = arith.constant 0 : index
    %c0_1 = arith.constant 0 : index
    %0 = vector.load %arg1[%c0, %c0_0, %c0_1] : memref<1x4x640xbf16, #tpu.memory_space<vmem>>, vector<1x4x640xbf16>
    %1 = vector.shape_cast %0 : vector<1x4x640xbf16> to vector<4x640xbf16>
    %c0_2 = arith.constant 0 : index
    %c0_3 = arith.constant 0 : index
    %c0_4 = arith.constant 0 : index
    %2 = vector.load %arg2[%c0_2, %c0_3, %c0_4] : memref<7x8x4xbf16, #tpu.memory_space<vmem>>, vector<1x8x4xbf16>
    %3 = vector.shape_cast %2 : vector<1x8x4xbf16> to vector<8x4xbf16>
    %4 = vector.extract_strided_slice %1 {offsets = [0, 109], sizes = [4, 384], strides = [1, 1]} : vector<4x640xbf16> to vector<4x384xbf16>
    %cst = arith.constant dense<0.000000e+00> : vector<8x384xf32>
    %5 = tpu.matmul %3, %4, %cst {dimension_numbers = #tpu.dot_dimension_numbers<[1], [0], [0], [1], [0, 0, 1, 1], [], []>} : vector<8x4xbf16>, vector<4x384xbf16>, vector<8x384xf32> -> vector<8x384xf32>
    %c1 = arith.constant 1 : index
    %c0_5 = arith.constant 0 : index
    %c0_6 = arith.constant 0 : index
    %6 = vector.load %arg2[%c1, %c0_5, %c0_6] : memref<7x8x4xbf16, #tpu.memory_space<vmem>>, vector<1x8x4xbf16>
    %7 = vector.shape_cast %6 : vector<1x8x4xbf16> to vector<8x4xbf16>
    %8 = vector.extract_strided_slice %1 {offsets = [0, 110], sizes = [4, 384], strides = [1, 1]} : vector<4x640xbf16> to vector<4x384xbf16>
    %cst_7 = arith.constant dense<0.000000e+00> : vector<8x384xf32>
    %9 = tpu.matmul %7, %8, %cst_7 {dimension_numbers = #tpu.dot_dimension_numbers<[1], [0], [0], [1], [0, 0, 1, 1], [], []>} : vector<8x4xbf16>, vector<4x384xbf16>, vector<8x384xf32> -> vector<8x384xf32>
    %10 = arith.addf %5, %9 : vector<8x384xf32>
    %c2 = arith.constant 2 : index
    %c0_8 = arith.constant 0 : index
    %c0_9 = arith.constant 0 : index
    %11 = vector.load %arg2[%c2, %c0_8, %c0_9] : memref<7x8x4xbf16, #tpu.memory_space<vmem>>, vector<1x8x4xbf16>
    %12 = vector.shape_cast %11 : vector<1x8x4xbf16> to vector<8x4xbf16>
    %13 = vector.extract_strided_slice %1 {offsets = [0, 127], sizes = [4, 384], strides = [1, 1]} : vector<4x640xbf16> to vector<4x384xbf16>
    %cst_10 = arith.constant dense<0.000000e+00> : vector<8x384xf32>
    %14 = tpu.matmul %12, %13, %cst_10 {dimension_numbers = #tpu.dot_dimension_numbers<[1], [0], [0], [1], [0, 0, 1, 1], [], []>} : vector<8x4xbf16>, vector<4x384xbf16>, vector<8x384xf32> -> vector<8x384xf32>
    %15 = arith.addf %10, %14 : vector<8x384xf32>
    %c3 = arith.constant 3 : index
    %c0_11 = arith.constant 0 : index
    %c0_12 = arith.constant 0 : index
    %16 = vector.load %arg2[%c3, %c0_11, %c0_12] : memref<7x8x4xbf16, #tpu.memory_space<vmem>>, vector<1x8x4xbf16>
    %17 = vector.shape_cast %16 : vector<1x8x4xbf16> to vector<8x4xbf16>
    %18 = vector.extract_strided_slice %1 {offsets = [0, 128], sizes = [4, 384], strides = [1, 1]} : vector<4x640xbf16> to vector<4x384xbf16>
    %cst_13 = arith.constant dense<0.000000e+00> : vector<8x384xf32>
    %19 = tpu.matmul %17, %18, %cst_13 {dimension_numbers = #tpu.dot_dimension_numbers<[1], [0], [0], [1], [0, 0, 1, 1], [], []>} : vector<8x4xbf16>, vector<4x384xbf16>, vector<8x384xf32> -> vector<8x384xf32>
    %20 = arith.addf %15, %19 : vector<8x384xf32>
    %c4 = arith.constant 4 : index
    %c0_14 = arith.constant 0 : index
    %c0_15 = arith.constant 0 : index
    %21 = vector.load %arg2[%c4, %c0_14, %c0_15] : memref<7x8x4xbf16, #tpu.memory_space<vmem>>, vector<1x8x4xbf16>
    %22 = vector.shape_cast %21 : vector<1x8x4xbf16> to vector<8x4xbf16>
    %23 = vector.extract_strided_slice %1 {offsets = [0, 129], sizes = [4, 384], strides = [1, 1]} : vector<4x640xbf16> to vector<4x384xbf16>
    %cst_16 = arith.constant dense<0.000000e+00> : vector<8x384xf32>
    %24 = tpu.matmul %22, %23, %cst_16 {dimension_numbers = #tpu.dot_dimension_numbers<[1], [0], [0], [1], [0, 0, 1, 1], [], []>} : vector<8x4xbf16>, vector<4x384xbf16>, vector<8x384xf32> -> vector<8x384xf32>
    %25 = arith.addf %20, %24 : vector<8x384xf32>
    %c5 = arith.constant 5 : index
    %c0_17 = arith.constant 0 : index
    %c0_18 = arith.constant 0 : index
    %26 = vector.load %arg2[%c5, %c0_17, %c0_18] : memref<7x8x4xbf16, #tpu.memory_space<vmem>>, vector<1x8x4xbf16>
    %27 = vector.shape_cast %26 : vector<1x8x4xbf16> to vector<8x4xbf16>
    %28 = vector.extract_strided_slice %1 {offsets = [0, 146], sizes = [4, 384], strides = [1, 1]} : vector<4x640xbf16> to vector<4x384xbf16>
    %cst_19 = arith.constant dense<0.000000e+00> : vector<8x384xf32>
    %29 = tpu.matmul %27, %28, %cst_19 {dimension_numbers = #tpu.dot_dimension_numbers<[1], [0], [0], [1], [0, 0, 1, 1], [], []>} : vector<8x4xbf16>, vector<4x384xbf16>, vector<8x384xf32> -> vector<8x384xf32>
    %30 = arith.addf %25, %29 : vector<8x384xf32>
    %c6 = arith.constant 6 : index
    %c0_20 = arith.constant 0 : index
    %c0_21 = arith.constant 0 : index
    %31 = vector.load %arg2[%c6, %c0_20, %c0_21] : memref<7x8x4xbf16, #tpu.memory_space<vmem>>, vector<1x8x4xbf16>
    %32 = vector.shape_cast %31 : vector<1x8x4xbf16> to vector<8x4xbf16>
    %33 = vector.extract_strided_slice %1 {offsets = [0, 147], sizes = [4, 384], strides = [1, 1]} : vector<4x640xbf16> to vector<4x384xbf16>
    %cst_22 = arith.constant dense<0.000000e+00> : vector<8x384xf32>
    %34 = tpu.matmul %32, %33, %cst_22 {dimension_numbers = #tpu.dot_dimension_numbers<[1], [0], [0], [1], [0, 0, 1, 1], [], []>} : vector<8x4xbf16>, vector<4x384xbf16>, vector<8x384xf32> -> vector<8x384xf32>
    %35 = arith.addf %30, %34 : vector<8x384xf32>
    %c0_23 = arith.constant 0 : index
    %c0_24 = arith.constant 0 : index
    %36 = vector.load %arg4[%c0_23, %c0_24] : memref<8x1xf32, #tpu.memory_space<vmem>>, vector<8x1xf32>
    %37 = vector.broadcast %36 : vector<8x1xf32> to vector<8x384xf32>
    %38 = arith.mulf %35, %37 : vector<8x384xf32>
    %c0_25 = arith.constant 0 : index
    %c0_26 = arith.constant 0 : index
    %39 = vector.load %arg5[%c0_25, %c0_26] : memref<8x1xf32, #tpu.memory_space<vmem>>, vector<8x1xf32>
    %40 = vector.broadcast %39 : vector<8x1xf32> to vector<8x384xf32>
    %41 = arith.addf %38, %40 : vector<8x384xf32>
    %cst_27 = arith.constant 0.000000e+00 : f32
    %42 = vector.broadcast %cst_27 : f32 to vector<8x384xf32>
    %43 = arith.maximumf %41, %42 : vector<8x384xf32>
    %c0_28 = arith.constant 0 : index
    %c0_29 = arith.constant 0 : index
    %44 = vector.load %arg3[%c0_28, %c0_29] : memref<1x384xf32, #tpu.memory_space<vmem>>, vector<1x384xf32>
    %45 = vector.broadcast %44 : vector<1x384xf32> to vector<8x384xf32>
    %46 = arith.mulf %43, %45 : vector<8x384xf32>
    %47 = arith.truncf %46 : vector<8x384xf32> to vector<8x384xbf16>
    %cst_30 = arith.constant 0.000000e+00 : bf16
    %48 = vector.broadcast %cst_30 : bf16 to vector<8x128xbf16>
    %c0_31 = arith.constant 0 : index
    %c0_32 = arith.constant 0 : index
    %c0_33 = arith.constant 0 : index
    %49 = vector.load %arg6[%c0_31, %c0_32, %c0_33] : memref<1x8x640xbf16, #tpu.memory_space<vmem>>, vector<1x8x128xbf16>
    %50 = vector.shape_cast %49 : vector<1x8x128xbf16> to vector<8x128xbf16>
    %51 = vector.shape_cast %48 : vector<8x128xbf16> to vector<1x8x128xbf16>
    tpu.vector_store %arg6[%c0_31, %c0_32, %c0_33], %51 {strides = array<i32>} : memref<1x8x640xbf16, #tpu.memory_space<vmem>>, vector<1x8x128xbf16>,
    %c0_34 = arith.constant 0 : index
    %c0_35 = arith.constant 0 : index
    %c128 = arith.constant 128 : index
    %52 = vector.load %arg6[%c0_34, %c0_35, %c128] : memref<1x8x640xbf16, #tpu.memory_space<vmem>>, vector<1x8x384xbf16>
    %53 = vector.shape_cast %52 : vector<1x8x384xbf16> to vector<8x384xbf16>
    %54 = vector.shape_cast %47 : vector<8x384xbf16> to vector<1x8x384xbf16>
    tpu.vector_store %arg6[%c0_34, %c0_35, %c128], %54 {strides = array<i32>} : memref<1x8x640xbf16, #tpu.memory_space<vmem>>, vector<1x8x384xbf16>,
    %cst_36 = arith.constant 0.000000e+00 : bf16
    %55 = vector.broadcast %cst_36 : bf16 to vector<8x128xbf16>
    %c0_37 = arith.constant 0 : index
    %c0_38 = arith.constant 0 : index
    %c512 = arith.constant 512 : index
    %56 = vector.load %arg6[%c0_37, %c0_38, %c512] : memref<1x8x640xbf16, #tpu.memory_space<vmem>>, vector<1x8x128xbf16>
    %57 = vector.shape_cast %56 : vector<1x8x128xbf16> to vector<8x128xbf16>
    %58 = vector.shape_cast %55 : vector<8x128xbf16> to vector<1x8x128xbf16>
    tpu.vector_store %arg6[%c0_37, %c0_38, %c512], %58 {strides = array<i32>} : memref<1x8x640xbf16, #tpu.memory_space<vmem>>, vector<1x8x128xbf16>,
    return
  }
  func.func @transform_0(%arg0: i32) -> (i32, i32, i32) {
    %c0_i32 = arith.constant 0 : i32
    %c0_i32_0 = arith.constant 0 : i32
    %c0_i32_1 = arith.constant 0 : i32
    return %arg0, %c0_i32, %c0_i32_0 : i32, i32, i32
  }
  func.func @transform_1(%arg0: i32) -> (i32, i32, i32) {
    %c0_i32 = arith.constant 0 : i32
    %c0_i32_0 = arith.constant 0 : i32
    %c0_i32_1 = arith.constant 0 : i32
    %c0_i32_2 = arith.constant 0 : i32
    return %c0_i32, %c0_i32_0, %c0_i32_1 : i32, i32, i32
  }
  func.func @transform_2(%arg0: i32) -> (i32, i32) {
    %c0_i32 = arith.constant 0 : i32
    %c0_i32_0 = arith.constant 0 : i32
    %c0_i32_1 = arith.constant 0 : i32
    return %c0_i32, %c0_i32_0 : i32, i32
  }
  func.func @transform_3(%arg0: i32) -> (i32, i32) {
    %c0_i32 = arith.constant 0 : i32
    %c0_i32_0 = arith.constant 0 : i32
    %c0_i32_1 = arith.constant 0 : i32
    return %c0_i32, %c0_i32_0 : i32, i32
  }
  func.func @transform_4(%arg0: i32) -> (i32, i32) {
    %c0_i32 = arith.constant 0 : i32
    %c0_i32_0 = arith.constant 0 : i32
    %c0_i32_1 = arith.constant 0 : i32
    return %c0_i32, %c0_i32_0 : i32, i32
  }
  func.func @transform_5(%arg0: i32) -> (i32, i32, i32) {
    %c0_i32 = arith.constant 0 : i32
    %c0_i32_0 = arith.constant 0 : i32
    %c0_i32_1 = arith.constant 0 : i32
    return %arg0, %c0_i32, %c0_i32_0 : i32, i32, i32
  }
}

module attributes {stable_mosaic.version = 11 : i64} {
  func.func @_hex_conv_stats_kernel(%arg0: i32, %arg1: memref<1x8x640xbf16, #tpu.memory_space<vmem>>, %arg2: memref<7x8x8xbf16, #tpu.memory_space<vmem>>, %arg3: memref<1x384xf32, #tpu.memory_space<vmem>>, %arg4: memref<1x8x2xf32, #tpu.memory_space<vmem>>) attributes {dimension_semantics = [#tpu.dimension_semantics<parallel>], iteration_bounds = array<i64: 2>, scalar_prefetch = 0 : i64, scratch_operands = 0 : i64, tpu.core_type = #tpu.core_type<tc>, window_params = [{transform_indices = @transform_0, window_bounds = array<i64: 1, 8, 640>}, {pipeline_mode = #tpu.pipeline_mode<synchronous>, transform_indices = @transform_1, window_bounds = array<i64: 7, 8, 8>}, {pipeline_mode = #tpu.pipeline_mode<synchronous>, transform_indices = @transform_2, window_bounds = array<i64: 1, 384>}, {transform_indices = @transform_3, window_bounds = array<i64: 1, 8, 2>}]} {
    %c0 = arith.constant 0 : index
    %c0_0 = arith.constant 0 : index
    %c0_1 = arith.constant 0 : index
    %0 = vector.load %arg1[%c0, %c0_0, %c0_1] : memref<1x8x640xbf16, #tpu.memory_space<vmem>>, vector<1x8x640xbf16>
    %1 = vector.shape_cast %0 : vector<1x8x640xbf16> to vector<8x640xbf16>
    %c0_2 = arith.constant 0 : index
    %c0_3 = arith.constant 0 : index
    %c0_4 = arith.constant 0 : index
    %2 = vector.load %arg2[%c0_2, %c0_3, %c0_4] : memref<7x8x8xbf16, #tpu.memory_space<vmem>>, vector<1x8x8xbf16>
    %3 = vector.shape_cast %2 : vector<1x8x8xbf16> to vector<8x8xbf16>
    %4 = vector.extract_strided_slice %1 {offsets = [0, 109], sizes = [8, 384], strides = [1, 1]} : vector<8x640xbf16> to vector<8x384xbf16>
    %cst = arith.constant dense<0.000000e+00> : vector<8x384xf32>
    %5 = tpu.matmul %3, %4, %cst {dimension_numbers = #tpu.dot_dimension_numbers<[1], [0], [0], [1], [0, 0, 1, 1], [], []>} : vector<8x8xbf16>, vector<8x384xbf16>, vector<8x384xf32> -> vector<8x384xf32>
    %c1 = arith.constant 1 : index
    %c0_5 = arith.constant 0 : index
    %c0_6 = arith.constant 0 : index
    %6 = vector.load %arg2[%c1, %c0_5, %c0_6] : memref<7x8x8xbf16, #tpu.memory_space<vmem>>, vector<1x8x8xbf16>
    %7 = vector.shape_cast %6 : vector<1x8x8xbf16> to vector<8x8xbf16>
    %8 = vector.extract_strided_slice %1 {offsets = [0, 110], sizes = [8, 384], strides = [1, 1]} : vector<8x640xbf16> to vector<8x384xbf16>
    %cst_7 = arith.constant dense<0.000000e+00> : vector<8x384xf32>
    %9 = tpu.matmul %7, %8, %cst_7 {dimension_numbers = #tpu.dot_dimension_numbers<[1], [0], [0], [1], [0, 0, 1, 1], [], []>} : vector<8x8xbf16>, vector<8x384xbf16>, vector<8x384xf32> -> vector<8x384xf32>
    %10 = arith.addf %5, %9 : vector<8x384xf32>
    %c2 = arith.constant 2 : index
    %c0_8 = arith.constant 0 : index
    %c0_9 = arith.constant 0 : index
    %11 = vector.load %arg2[%c2, %c0_8, %c0_9] : memref<7x8x8xbf16, #tpu.memory_space<vmem>>, vector<1x8x8xbf16>
    %12 = vector.shape_cast %11 : vector<1x8x8xbf16> to vector<8x8xbf16>
    %13 = vector.extract_strided_slice %1 {offsets = [0, 127], sizes = [8, 384], strides = [1, 1]} : vector<8x640xbf16> to vector<8x384xbf16>
    %cst_10 = arith.constant dense<0.000000e+00> : vector<8x384xf32>
    %14 = tpu.matmul %12, %13, %cst_10 {dimension_numbers = #tpu.dot_dimension_numbers<[1], [0], [0], [1], [0, 0, 1, 1], [], []>} : vector<8x8xbf16>, vector<8x384xbf16>, vector<8x384xf32> -> vector<8x384xf32>
    %15 = arith.addf %10, %14 : vector<8x384xf32>
    %c3 = arith.constant 3 : index
    %c0_11 = arith.constant 0 : index
    %c0_12 = arith.constant 0 : index
    %16 = vector.load %arg2[%c3, %c0_11, %c0_12] : memref<7x8x8xbf16, #tpu.memory_space<vmem>>, vector<1x8x8xbf16>
    %17 = vector.shape_cast %16 : vector<1x8x8xbf16> to vector<8x8xbf16>
    %18 = vector.extract_strided_slice %1 {offsets = [0, 128], sizes = [8, 384], strides = [1, 1]} : vector<8x640xbf16> to vector<8x384xbf16>
    %cst_13 = arith.constant dense<0.000000e+00> : vector<8x384xf32>
    %19 = tpu.matmul %17, %18, %cst_13 {dimension_numbers = #tpu.dot_dimension_numbers<[1], [0], [0], [1], [0, 0, 1, 1], [], []>} : vector<8x8xbf16>, vector<8x384xbf16>, vector<8x384xf32> -> vector<8x384xf32>
    %20 = arith.addf %15, %19 : vector<8x384xf32>
    %c4 = arith.constant 4 : index
    %c0_14 = arith.constant 0 : index
    %c0_15 = arith.constant 0 : index
    %21 = vector.load %arg2[%c4, %c0_14, %c0_15] : memref<7x8x8xbf16, #tpu.memory_space<vmem>>, vector<1x8x8xbf16>
    %22 = vector.shape_cast %21 : vector<1x8x8xbf16> to vector<8x8xbf16>
    %23 = vector.extract_strided_slice %1 {offsets = [0, 129], sizes = [8, 384], strides = [1, 1]} : vector<8x640xbf16> to vector<8x384xbf16>
    %cst_16 = arith.constant dense<0.000000e+00> : vector<8x384xf32>
    %24 = tpu.matmul %22, %23, %cst_16 {dimension_numbers = #tpu.dot_dimension_numbers<[1], [0], [0], [1], [0, 0, 1, 1], [], []>} : vector<8x8xbf16>, vector<8x384xbf16>, vector<8x384xf32> -> vector<8x384xf32>
    %25 = arith.addf %20, %24 : vector<8x384xf32>
    %c5 = arith.constant 5 : index
    %c0_17 = arith.constant 0 : index
    %c0_18 = arith.constant 0 : index
    %26 = vector.load %arg2[%c5, %c0_17, %c0_18] : memref<7x8x8xbf16, #tpu.memory_space<vmem>>, vector<1x8x8xbf16>
    %27 = vector.shape_cast %26 : vector<1x8x8xbf16> to vector<8x8xbf16>
    %28 = vector.extract_strided_slice %1 {offsets = [0, 146], sizes = [8, 384], strides = [1, 1]} : vector<8x640xbf16> to vector<8x384xbf16>
    %cst_19 = arith.constant dense<0.000000e+00> : vector<8x384xf32>
    %29 = tpu.matmul %27, %28, %cst_19 {dimension_numbers = #tpu.dot_dimension_numbers<[1], [0], [0], [1], [0, 0, 1, 1], [], []>} : vector<8x8xbf16>, vector<8x384xbf16>, vector<8x384xf32> -> vector<8x384xf32>
    %30 = arith.addf %25, %29 : vector<8x384xf32>
    %c6 = arith.constant 6 : index
    %c0_20 = arith.constant 0 : index
    %c0_21 = arith.constant 0 : index
    %31 = vector.load %arg2[%c6, %c0_20, %c0_21] : memref<7x8x8xbf16, #tpu.memory_space<vmem>>, vector<1x8x8xbf16>
    %32 = vector.shape_cast %31 : vector<1x8x8xbf16> to vector<8x8xbf16>
    %33 = vector.extract_strided_slice %1 {offsets = [0, 147], sizes = [8, 384], strides = [1, 1]} : vector<8x640xbf16> to vector<8x384xbf16>
    %cst_22 = arith.constant dense<0.000000e+00> : vector<8x384xf32>
    %34 = tpu.matmul %32, %33, %cst_22 {dimension_numbers = #tpu.dot_dimension_numbers<[1], [0], [0], [1], [0, 0, 1, 1], [], []>} : vector<8x8xbf16>, vector<8x384xbf16>, vector<8x384xf32> -> vector<8x384xf32>
    %35 = arith.addf %30, %34 : vector<8x384xf32>
    %c0_23 = arith.constant 0 : index
    %c0_24 = arith.constant 0 : index
    %36 = vector.load %arg3[%c0_23, %c0_24] : memref<1x384xf32, #tpu.memory_space<vmem>>, vector<1x384xf32>
    %37 = vector.broadcast %36 : vector<1x384xf32> to vector<8x384xf32>
    %38 = arith.mulf %35, %37 : vector<8x384xf32>
    %cst_25 = arith.constant dense<0.000000e+00> : vector<8xf32>
    %39 = vector.multi_reduction <add>, %38, %cst_25 [1] : vector<8x384xf32> to vector<8xf32>
    %40 = vector.shape_cast %39 : vector<8xf32> to vector<8x1xf32>
    %c0_26 = arith.constant 0 : index
    %c0_27 = arith.constant 0 : index
    %c0_28 = arith.constant 0 : index
    %41 = vector.load %arg4[%c0_26, %c0_27, %c0_28] : memref<1x8x2xf32, #tpu.memory_space<vmem>>, vector<1x8x1xf32>
    %42 = vector.shape_cast %41 : vector<1x8x1xf32> to vector<8x1xf32>
    %43 = vector.shape_cast %40 : vector<8x1xf32> to vector<1x8x1xf32>
    tpu.vector_store %arg4[%c0_26, %c0_27, %c0_28], %43 {strides = array<i32>} : memref<1x8x2xf32, #tpu.memory_space<vmem>>, vector<1x8x1xf32>,
    %44 = arith.mulf %38, %35 : vector<8x384xf32>
    %cst_29 = arith.constant dense<0.000000e+00> : vector<8xf32>
    %45 = vector.multi_reduction <add>, %44, %cst_29 [1] : vector<8x384xf32> to vector<8xf32>
    %46 = vector.shape_cast %45 : vector<8xf32> to vector<8x1xf32>
    %c0_30 = arith.constant 0 : index
    %c0_31 = arith.constant 0 : index
    %c1_32 = arith.constant 1 : index
    %47 = vector.load %arg4[%c0_30, %c0_31, %c1_32] : memref<1x8x2xf32, #tpu.memory_space<vmem>>, vector<1x8x1xf32>
    %48 = vector.shape_cast %47 : vector<1x8x1xf32> to vector<8x1xf32>
    %49 = vector.shape_cast %46 : vector<8x1xf32> to vector<1x8x1xf32>
    tpu.vector_store %arg4[%c0_30, %c0_31, %c1_32], %49 {strides = array<i32>} : memref<1x8x2xf32, #tpu.memory_space<vmem>>, vector<1x8x1xf32>,
    return
  }
  func.func @transform_0(%arg0: i32) -> (i32, i32, i32) {
    %c0_i32 = arith.constant 0 : i32
    %c0_i32_0 = arith.constant 0 : i32
    %c0_i32_1 = arith.constant 0 : i32
    return %arg0, %c0_i32, %c0_i32_0 : i32, i32, i32
  }
  func.func @transform_1(%arg0: i32) -> (i32, i32, i32) {
    %c0_i32 = arith.constant 0 : i32
    %c0_i32_0 = arith.constant 0 : i32
    %c0_i32_1 = arith.constant 0 : i32
    %c0_i32_2 = arith.constant 0 : i32
    return %c0_i32, %c0_i32_0, %c0_i32_1 : i32, i32, i32
  }
  func.func @transform_2(%arg0: i32) -> (i32, i32) {
    %c0_i32 = arith.constant 0 : i32
    %c0_i32_0 = arith.constant 0 : i32
    %c0_i32_1 = arith.constant 0 : i32
    return %c0_i32, %c0_i32_0 : i32, i32
  }
  func.func @transform_3(%arg0: i32) -> (i32, i32, i32) {
    %c0_i32 = arith.constant 0 : i32
    %c0_i32_0 = arith.constant 0 : i32
    %c0_i32_1 = arith.constant 0 : i32
    return %arg0, %c0_i32, %c0_i32_0 : i32, i32, i32
  }
}

module attributes {stable_mosaic.version = 11 : i64} {
  func.func @_hex_conv_bn_relu_kernel(%arg0: i32, %arg1: memref<1x8x640xbf16, #tpu.memory_space<vmem>>, %arg2: memref<7x8x8xbf16, #tpu.memory_space<vmem>>, %arg3: memref<1x384xf32, #tpu.memory_space<vmem>>, %arg4: memref<8x1xf32, #tpu.memory_space<vmem>>, %arg5: memref<8x1xf32, #tpu.memory_space<vmem>>, %arg6: memref<1x8x640xf32, #tpu.memory_space<vmem>>) attributes {dimension_semantics = [#tpu.dimension_semantics<parallel>], iteration_bounds = array<i64: 2>, scalar_prefetch = 0 : i64, scratch_operands = 0 : i64, tpu.core_type = #tpu.core_type<tc>, window_params = [{transform_indices = @transform_0, window_bounds = array<i64: 1, 8, 640>}, {pipeline_mode = #tpu.pipeline_mode<synchronous>, transform_indices = @transform_1, window_bounds = array<i64: 7, 8, 8>}, {pipeline_mode = #tpu.pipeline_mode<synchronous>, transform_indices = @transform_2, window_bounds = array<i64: 1, 384>}, {pipeline_mode = #tpu.pipeline_mode<synchronous>, transform_indices = @transform_3, window_bounds = array<i64: 8, 1>}, {pipeline_mode = #tpu.pipeline_mode<synchronous>, transform_indices = @transform_4, window_bounds = array<i64: 8, 1>}, {transform_indices = @transform_5, window_bounds = array<i64: 1, 8, 640>}]} {
    %c0 = arith.constant 0 : index
    %c0_0 = arith.constant 0 : index
    %c0_1 = arith.constant 0 : index
    %0 = vector.load %arg1[%c0, %c0_0, %c0_1] : memref<1x8x640xbf16, #tpu.memory_space<vmem>>, vector<1x8x640xbf16>
    %1 = vector.shape_cast %0 : vector<1x8x640xbf16> to vector<8x640xbf16>
    %c0_2 = arith.constant 0 : index
    %c0_3 = arith.constant 0 : index
    %c0_4 = arith.constant 0 : index
    %2 = vector.load %arg2[%c0_2, %c0_3, %c0_4] : memref<7x8x8xbf16, #tpu.memory_space<vmem>>, vector<1x8x8xbf16>
    %3 = vector.shape_cast %2 : vector<1x8x8xbf16> to vector<8x8xbf16>
    %4 = vector.extract_strided_slice %1 {offsets = [0, 109], sizes = [8, 384], strides = [1, 1]} : vector<8x640xbf16> to vector<8x384xbf16>
    %cst = arith.constant dense<0.000000e+00> : vector<8x384xf32>
    %5 = tpu.matmul %3, %4, %cst {dimension_numbers = #tpu.dot_dimension_numbers<[1], [0], [0], [1], [0, 0, 1, 1], [], []>} : vector<8x8xbf16>, vector<8x384xbf16>, vector<8x384xf32> -> vector<8x384xf32>
    %c1 = arith.constant 1 : index
    %c0_5 = arith.constant 0 : index
    %c0_6 = arith.constant 0 : index
    %6 = vector.load %arg2[%c1, %c0_5, %c0_6] : memref<7x8x8xbf16, #tpu.memory_space<vmem>>, vector<1x8x8xbf16>
    %7 = vector.shape_cast %6 : vector<1x8x8xbf16> to vector<8x8xbf16>
    %8 = vector.extract_strided_slice %1 {offsets = [0, 110], sizes = [8, 384], strides = [1, 1]} : vector<8x640xbf16> to vector<8x384xbf16>
    %cst_7 = arith.constant dense<0.000000e+00> : vector<8x384xf32>
    %9 = tpu.matmul %7, %8, %cst_7 {dimension_numbers = #tpu.dot_dimension_numbers<[1], [0], [0], [1], [0, 0, 1, 1], [], []>} : vector<8x8xbf16>, vector<8x384xbf16>, vector<8x384xf32> -> vector<8x384xf32>
    %10 = arith.addf %5, %9 : vector<8x384xf32>
    %c2 = arith.constant 2 : index
    %c0_8 = arith.constant 0 : index
    %c0_9 = arith.constant 0 : index
    %11 = vector.load %arg2[%c2, %c0_8, %c0_9] : memref<7x8x8xbf16, #tpu.memory_space<vmem>>, vector<1x8x8xbf16>
    %12 = vector.shape_cast %11 : vector<1x8x8xbf16> to vector<8x8xbf16>
    %13 = vector.extract_strided_slice %1 {offsets = [0, 127], sizes = [8, 384], strides = [1, 1]} : vector<8x640xbf16> to vector<8x384xbf16>
    %cst_10 = arith.constant dense<0.000000e+00> : vector<8x384xf32>
    %14 = tpu.matmul %12, %13, %cst_10 {dimension_numbers = #tpu.dot_dimension_numbers<[1], [0], [0], [1], [0, 0, 1, 1], [], []>} : vector<8x8xbf16>, vector<8x384xbf16>, vector<8x384xf32> -> vector<8x384xf32>
    %15 = arith.addf %10, %14 : vector<8x384xf32>
    %c3 = arith.constant 3 : index
    %c0_11 = arith.constant 0 : index
    %c0_12 = arith.constant 0 : index
    %16 = vector.load %arg2[%c3, %c0_11, %c0_12] : memref<7x8x8xbf16, #tpu.memory_space<vmem>>, vector<1x8x8xbf16>
    %17 = vector.shape_cast %16 : vector<1x8x8xbf16> to vector<8x8xbf16>
    %18 = vector.extract_strided_slice %1 {offsets = [0, 128], sizes = [8, 384], strides = [1, 1]} : vector<8x640xbf16> to vector<8x384xbf16>
    %cst_13 = arith.constant dense<0.000000e+00> : vector<8x384xf32>
    %19 = tpu.matmul %17, %18, %cst_13 {dimension_numbers = #tpu.dot_dimension_numbers<[1], [0], [0], [1], [0, 0, 1, 1], [], []>} : vector<8x8xbf16>, vector<8x384xbf16>, vector<8x384xf32> -> vector<8x384xf32>
    %20 = arith.addf %15, %19 : vector<8x384xf32>
    %c4 = arith.constant 4 : index
    %c0_14 = arith.constant 0 : index
    %c0_15 = arith.constant 0 : index
    %21 = vector.load %arg2[%c4, %c0_14, %c0_15] : memref<7x8x8xbf16, #tpu.memory_space<vmem>>, vector<1x8x8xbf16>
    %22 = vector.shape_cast %21 : vector<1x8x8xbf16> to vector<8x8xbf16>
    %23 = vector.extract_strided_slice %1 {offsets = [0, 129], sizes = [8, 384], strides = [1, 1]} : vector<8x640xbf16> to vector<8x384xbf16>
    %cst_16 = arith.constant dense<0.000000e+00> : vector<8x384xf32>
    %24 = tpu.matmul %22, %23, %cst_16 {dimension_numbers = #tpu.dot_dimension_numbers<[1], [0], [0], [1], [0, 0, 1, 1], [], []>} : vector<8x8xbf16>, vector<8x384xbf16>, vector<8x384xf32> -> vector<8x384xf32>
    %25 = arith.addf %20, %24 : vector<8x384xf32>
    %c5 = arith.constant 5 : index
    %c0_17 = arith.constant 0 : index
    %c0_18 = arith.constant 0 : index
    %26 = vector.load %arg2[%c5, %c0_17, %c0_18] : memref<7x8x8xbf16, #tpu.memory_space<vmem>>, vector<1x8x8xbf16>
    %27 = vector.shape_cast %26 : vector<1x8x8xbf16> to vector<8x8xbf16>
    %28 = vector.extract_strided_slice %1 {offsets = [0, 146], sizes = [8, 384], strides = [1, 1]} : vector<8x640xbf16> to vector<8x384xbf16>
    %cst_19 = arith.constant dense<0.000000e+00> : vector<8x384xf32>
    %29 = tpu.matmul %27, %28, %cst_19 {dimension_numbers = #tpu.dot_dimension_numbers<[1], [0], [0], [1], [0, 0, 1, 1], [], []>} : vector<8x8xbf16>, vector<8x384xbf16>, vector<8x384xf32> -> vector<8x384xf32>
    %30 = arith.addf %25, %29 : vector<8x384xf32>
    %c6 = arith.constant 6 : index
    %c0_20 = arith.constant 0 : index
    %c0_21 = arith.constant 0 : index
    %31 = vector.load %arg2[%c6, %c0_20, %c0_21] : memref<7x8x8xbf16, #tpu.memory_space<vmem>>, vector<1x8x8xbf16>
    %32 = vector.shape_cast %31 : vector<1x8x8xbf16> to vector<8x8xbf16>
    %33 = vector.extract_strided_slice %1 {offsets = [0, 147], sizes = [8, 384], strides = [1, 1]} : vector<8x640xbf16> to vector<8x384xbf16>
    %cst_22 = arith.constant dense<0.000000e+00> : vector<8x384xf32>
    %34 = tpu.matmul %32, %33, %cst_22 {dimension_numbers = #tpu.dot_dimension_numbers<[1], [0], [0], [1], [0, 0, 1, 1], [], []>} : vector<8x8xbf16>, vector<8x384xbf16>, vector<8x384xf32> -> vector<8x384xf32>
    %35 = arith.addf %30, %34 : vector<8x384xf32>
    %c0_23 = arith.constant 0 : index
    %c0_24 = arith.constant 0 : index
    %36 = vector.load %arg4[%c0_23, %c0_24] : memref<8x1xf32, #tpu.memory_space<vmem>>, vector<8x1xf32>
    %37 = vector.broadcast %36 : vector<8x1xf32> to vector<8x384xf32>
    %38 = arith.mulf %35, %37 : vector<8x384xf32>
    %c0_25 = arith.constant 0 : index
    %c0_26 = arith.constant 0 : index
    %39 = vector.load %arg5[%c0_25, %c0_26] : memref<8x1xf32, #tpu.memory_space<vmem>>, vector<8x1xf32>
    %40 = vector.broadcast %39 : vector<8x1xf32> to vector<8x384xf32>
    %41 = arith.addf %38, %40 : vector<8x384xf32>
    %cst_27 = arith.constant 0.000000e+00 : f32
    %42 = vector.broadcast %cst_27 : f32 to vector<8x384xf32>
    %43 = arith.maximumf %41, %42 : vector<8x384xf32>
    %c0_28 = arith.constant 0 : index
    %c0_29 = arith.constant 0 : index
    %44 = vector.load %arg3[%c0_28, %c0_29] : memref<1x384xf32, #tpu.memory_space<vmem>>, vector<1x384xf32>
    %45 = vector.broadcast %44 : vector<1x384xf32> to vector<8x384xf32>
    %46 = arith.mulf %43, %45 : vector<8x384xf32>
    %cst_30 = arith.constant 0.000000e+00 : f32
    %47 = vector.broadcast %cst_30 : f32 to vector<8x128xf32>
    %c0_31 = arith.constant 0 : index
    %c0_32 = arith.constant 0 : index
    %c0_33 = arith.constant 0 : index
    %48 = vector.load %arg6[%c0_31, %c0_32, %c0_33] : memref<1x8x640xf32, #tpu.memory_space<vmem>>, vector<1x8x128xf32>
    %49 = vector.shape_cast %48 : vector<1x8x128xf32> to vector<8x128xf32>
    %50 = vector.shape_cast %47 : vector<8x128xf32> to vector<1x8x128xf32>
    tpu.vector_store %arg6[%c0_31, %c0_32, %c0_33], %50 {strides = array<i32>} : memref<1x8x640xf32, #tpu.memory_space<vmem>>, vector<1x8x128xf32>,
    %c0_34 = arith.constant 0 : index
    %c0_35 = arith.constant 0 : index
    %c128 = arith.constant 128 : index
    %51 = vector.load %arg6[%c0_34, %c0_35, %c128] : memref<1x8x640xf32, #tpu.memory_space<vmem>>, vector<1x8x384xf32>
    %52 = vector.shape_cast %51 : vector<1x8x384xf32> to vector<8x384xf32>
    %53 = vector.shape_cast %46 : vector<8x384xf32> to vector<1x8x384xf32>
    tpu.vector_store %arg6[%c0_34, %c0_35, %c128], %53 {strides = array<i32>} : memref<1x8x640xf32, #tpu.memory_space<vmem>>, vector<1x8x384xf32>,
    %cst_36 = arith.constant 0.000000e+00 : f32
    %54 = vector.broadcast %cst_36 : f32 to vector<8x128xf32>
    %c0_37 = arith.constant 0 : index
    %c0_38 = arith.constant 0 : index
    %c512 = arith.constant 512 : index
    %55 = vector.load %arg6[%c0_37, %c0_38, %c512] : memref<1x8x640xf32, #tpu.memory_space<vmem>>, vector<1x8x128xf32>
    %56 = vector.shape_cast %55 : vector<1x8x128xf32> to vector<8x128xf32>
    %57 = vector.shape_cast %54 : vector<8x128xf32> to vector<1x8x128xf32>
    tpu.vector_store %arg6[%c0_37, %c0_38, %c512], %57 {strides = array<i32>} : memref<1x8x640xf32, #tpu.memory_space<vmem>>, vector<1x8x128xf32>,
    return
  }
  func.func @transform_0(%arg0: i32) -> (i32, i32, i32) {
    %c0_i32 = arith.constant 0 : i32
    %c0_i32_0 = arith.constant 0 : i32
    %c0_i32_1 = arith.constant 0 : i32
    return %arg0, %c0_i32, %c0_i32_0 : i32, i32, i32
  }
  func.func @transform_1(%arg0: i32) -> (i32, i32, i32) {
    %c0_i32 = arith.constant 0 : i32
    %c0_i32_0 = arith.constant 0 : i32
    %c0_i32_1 = arith.constant 0 : i32
    %c0_i32_2 = arith.constant 0 : i32
    return %c0_i32, %c0_i32_0, %c0_i32_1 : i32, i32, i32
  }
  func.func @transform_2(%arg0: i32) -> (i32, i32) {
    %c0_i32 = arith.constant 0 : i32
    %c0_i32_0 = arith.constant 0 : i32
    %c0_i32_1 = arith.constant 0 : i32
    return %c0_i32, %c0_i32_0 : i32, i32
  }
  func.func @transform_3(%arg0: i32) -> (i32, i32) {
    %c0_i32 = arith.constant 0 : i32
    %c0_i32_0 = arith.constant 0 : i32
    %c0_i32_1 = arith.constant 0 : i32
    return %c0_i32, %c0_i32_0 : i32, i32
  }
  func.func @transform_4(%arg0: i32) -> (i32, i32) {
    %c0_i32 = arith.constant 0 : i32
    %c0_i32_0 = arith.constant 0 : i32
    %c0_i32_1 = arith.constant 0 : i32
    return %c0_i32, %c0_i32_0 : i32, i32
  }
  func.func @transform_5(%arg0: i32) -> (i32, i32, i32) {
    %c0_i32 = arith.constant 0 : i32
    %c0_i32_0 = arith.constant 0 : i32
    %c0_i32_1 = arith.constant 0 : i32
    return %arg0, %c0_i32, %c0_i32_0 : i32, i32, i32
  }
}

</mosaic_0001>

<llo_original>
// kernel: resblock_enc_forward.4
$region0: #{resblock_enc_forward.4}
  #allocation0 [shape = 'u32[]', space=smem, size = 0x4, offset = 0x4, fixed_abs, tag = 'smem constant byte address 0x4 - core index']
  #allocation1 [shape = 'u32[144,128]{1,0:T(1,128)}', space=vmem, size = 0x12000, scoped, tag = 'internal scratch']
  %s0 = inlined_call_operand.vmem [shape: bf16[2,4,640], index: 0, kind: input, shape index: {}]
  %s1 = inlined_call_operand.vmem [shape: bf16[7,8,4], index: 1, kind: input, shape index: {}]
  %s2 = inlined_call_operand.vmem [shape: f32[1,384], index: 2, kind: input, shape index: {}]
  %s3 = inlined_call_operand.vmem [shape: f32[2,8,2], index: 3, kind: output, shape index: {}]
  %s4 = sld [smem:[#allocation0]]
  $region45: #{resblock_enc_forward.4} parent=0
    _
  %s6 = ssub.s32 1, %s4
  %s7 = scalar_select 0, %s6, %s4
  loop: start=0, step=1, limit=4
  $region2: #{resblock_enc_forward.4} parent=0 // loop_pre_header
    _
  $region3: #{resblock_enc_forward.4} parent=0 // loop_header
    %s9 = sphi 0, %s13
    %p10 = scmp.ge.s32.totalorder %s9, 4
    %s19 = sphi 0, %s21
    %s22 = sphi 0, %s19
    %s23 = sphi 0, %s22
    %s39 = sphi 0, %s23
    %s43 = sphi 0, %s43
    %s45 = sphi 0, %s43
    %s46 = sphi 0, %s45
    %s60 = sphi 0, %s46
    %s64 = sphi 0, %s64
    %s66 = sphi 0, %s64
    %s67 = sphi 0, %s66
    %s81 = sphi 0, %s67
    %s87 = sphi 0, %s89
    %s90 = sphi 0, %s87
    %s91 = sphi 0, %s90
    %s107 = sphi 0, %s91
  $region4: #{resblock_enc_forward.4} parent=0 // loop_header_branch
    %12 = sbr.rel (%p10) target = $region8
  $region5: #{resblock_enc_forward.4} parent=0 // loop_body
    %s14 = ssub.s32 %s9, 1
    %s15 = ssub.s32 %s9, 2
    %s16 = sadd.s32 %s9, 1
    %s17 = ssub.s32 %s9, %s16
    %p18 = scmp.eq.s32.totalorder %s17, 0
    %s20 = sadd.s32 %s19, 1
    %s21 = scalar_select %p18, %s19, %s20
    %p24 = pneg %p18
    %p25 = scmp.eq.s32.totalorder %s9, 1
    %p26 = por %p24, %p25
    %p27 = scmp.ne.s32.totalorder %s19, %s22
    %p28 = scmp.eq.s32.totalorder %s9, 0
    %p29 = por %p27, %p28
    %p30 = scmp.ne.s32.totalorder %s19, %s22
    %p31 = scmp.eq.s32.totalorder %s14, 1
    %p32 = por %p30, %p31
    %p33 = scmp.ne.s32.totalorder %s22, %s23
    %p34 = scmp.eq.s32.totalorder %s14, 0
    %p35 = por %p33, %p34
    %p36 = scmp.ne.s32.totalorder %s22, %s23
    %p37 = scmp.eq.s32.totalorder %s15, 1
    %p38 = por %p36, %p37
    %p40 = scmp.ne.s32.totalorder %s23, %s39
    %p41 = scmp.eq.s32.totalorder %s15, 0
    %p42 = por %p40, %p41
    %s44 = sadd.s32 %s43, 1
    %p47 = scmp.eq.s32.totalorder %s9, 1
    %p48 = scmp.ne.s32.totalorder %s43, %s45
    %p49 = scmp.eq.s32.totalorder %s9, 0
    %p50 = por %p48, %p49
    %p51 = scmp.ne.s32.totalorder %s43, %s45
    %p52 = scmp.eq.s32.totalorder %s14, 1
    %p53 = por %p51, %p52
    %p54 = scmp.ne.s32.totalorder %s45, %s46
    %p55 = scmp.eq.s32.totalorder %s14, 0
    %p56 = por %p54, %p55
    %p57 = scmp.ne.s32.totalorder %s45, %s46
    %p58 = scmp.eq.s32.totalorder %s15, 1
    %p59 = por %p57, %p58
    %p61 = scmp.ne.s32.totalorder %s46, %s60
    %p62 = scmp.eq.s32.totalorder %s15, 0
    %p63 = por %p61, %p62
    %s65 = sadd.s32 %s64, 1
    %p68 = scmp.eq.s32.totalorder %s9, 1
    %p69 = scmp.ne.s32.totalorder %s64, %s66
    %p70 = scmp.eq.s32.totalorder %s9, 0
    %p71 = por %p69, %p70
    %p72 = scmp.ne.s32.totalorder %s64, %s66
    %p73 = scmp.eq.s32.totalorder %s14, 1
    %p74 = por %p72, %p73
    %p75 = scmp.ne.s32.totalorder %s66, %s67
    %p76 = scmp.eq.s32.totalorder %s14, 0
    %p77 = por %p75, %p76
    %p78 = scmp.ne.s32.totalorder %s66, %s67
    %p79 = scmp.eq.s32.totalorder %s15, 1
    %p80 = por %p78, %p79
    %p82 = scmp.ne.s32.totalorder %s67, %s81
    %p83 = scmp.eq.s32.totalorder %s15, 0
    %p84 = por %p82, %p83
    %s85 = ssub.s32 %s9, %s16
    %p86 = scmp.eq.s32.totalorder %s85, 0
    %s88 = sadd.s32 %s87, 1
    %s89 = scalar_select %p86, %s87, %s88
    %p92 = pneg %p86
    %p93 = scmp.eq.s32.totalorder %s9, 1
    %p94 = por %p92, %p93
    %p95 = scmp.ne.s32.totalorder %s87, %s90
    %p96 = scmp.eq.s32.totalorder %s9, 0
    %p97 = por %p95, %p96
    %p98 = scmp.ne.s32.totalorder %s87, %s90
    %p99 = scmp.eq.s32.totalorder %s14, 1
    %p100 = por %p98, %p99
    %p101 = scmp.ne.s32.totalorder %s90, %s91
    %p102 = scmp.eq.s32.totalorder %s14, 0
    %p103 = por %p101, %p102
    %p104 = scmp.ne.s32.totalorder %s90, %s91
    %p105 = scmp.eq.s32.totalorder %s15, 1
    %p106 = por %p104, %p105
    %p108 = scmp.ne.s32.totalorder %s91, %s107
    %p109 = scmp.eq.s32.totalorder %s15, 0
    %p110 = por %p108, %p109
    %p111 = scmp.le.s32.totalorder 1, %s9
    %p112 = scmp.lt.s32.totalorder %s9, 3
    %p113 = pnand %p111, %p112
    %p114 = pneg %p113
    // Predicated region
    $region9: #{resblock_enc_forward.4} parent=5 // pred_check
      _
    $region10: #{resblock_enc_forward.4} parent=5 // pred_check_branch
      %116 = sbr.rel (%p113) target = $region12
    $region11: #{resblock_enc_forward.4} parent=5 // pred_region
      %s117 = ssub.s32 %s9, 1
      // Predicated region
      $region13: #{resblock_enc_forward.4} parent=11 // pred_check
        %p118 = pneg %p56
      $region14: #{resblock_enc_forward.4} parent=11 // pred_check_branch
        %120 = sbr.rel (%p118) target = $region16
      $region15: #{resblock_enc_forward.4} parent=11 // pred_region
        _
      $region16: #{resblock_enc_forward.4} parent=11 // pred_fallthru
        _
      // Predicated region
      $region17: #{resblock_enc_forward.4} parent=11 // pred_check
        %p121 = pneg %p77
      $region18: #{resblock_enc_forward.4} parent=11 // pred_check_branch
        %123 = sbr.rel (%p121) target = $region20
      $region19: #{resblock_enc_forward.4} parent=11 // pred_region
        _
      $region20: #{resblock_enc_forward.4} parent=11 // pred_fallthru
        _
    $region12: #{resblock_enc_forward.4} parent=5 // pred_fallthru
      _
    %p124 = scmp.lt.s32.totalorder %s9, 2
    // Predicated region
    $region21: #{resblock_enc_forward.4} parent=5 // pred_check
      %p125 = pneg %p124
    $region22: #{resblock_enc_forward.4} parent=5 // pred_check_branch
      %127 = sbr.rel (%p125) target = $region24
    $region23: #{resblock_enc_forward.4} parent=5 // pred_region
      // Predicated region
      $region25: #{resblock_enc_forward.4} parent=23 // pred_check
        %p128 = pneg %p29
      $region26: #{resblock_enc_forward.4} parent=23 // pred_check_branch
        %130 = sbr.rel (%p128) target = $region28
      $region27: #{resblock_enc_forward.4} parent=23 // pred_region
        %p131 = scmp.lt.s32.totalorder %s9, 1
        %s132 = scalar_select %p131, %s9, 1
        %s133 = smul.addr %s132, 5
        %s134 = smul.addr %s133, 2
        %s135 = scalar_lea.vmem %s0, %s134
      $region28: #{resblock_enc_forward.4} parent=23 // pred_fallthru
        _
    $region24: #{resblock_enc_forward.4} parent=5 // pred_fallthru
      _
    %p136 = scmp.le.s32.totalorder 1, %s9
    %p137 = scmp.lt.s32.totalorder %s9, 3
    %p138 = pnand %p136, %p137
    %p139 = pneg %p138
    // Predicated region
    $region29: #{resblock_enc_forward.4} parent=5 // pred_check
      _
    $region30: #{resblock_enc_forward.4} parent=5 // pred_check_branch
      %141 = sbr.rel (%p138) target = $region32
    $region31: #{resblock_enc_forward.4} parent=5 // pred_region
      %s142 = ssub.s32 %s9, 1
      %p143 = scmp.lt.s32.totalorder %s14, 1
      %s144 = scalar_select %p143, %s14, 1
      %s145 = smul.addr %s144, 5
      %s146 = smul.addr %s145, 2
      %s147 = scalar_lea.vmem %s0, %s146
      %p148 = pneg %p35
      %p149 = pneg %p32
      %p150 = pneg %p56
      %p151 = pneg %p53
      %p152 = pneg %p77
      %p153 = pneg %p74
      %p154 = pneg %p103
      %p155 = pneg %p100
      %p156 = scmp.lt.s32.totalorder %s14, 1
      %s157 = scalar_select %p156, %s14, 1
      %s158 = smul.addr %s157, 8
      %s159 = scalar_lea.vmem %s3, %s158
      %p160 = scmp.lt.s32.totalorder %s14, 1
      %s161 = scalar_select %p160, %s14, 1
      %s162 = smul.addr %s161, 5
      %s163 = smul.addr %s162, 2
      %s164 = scalar_lea.vmem %s0, %s163
      %p165 = scmp.lt.s32.totalorder %s14, 1
      %s166 = scalar_select %p165, %s14, 1
      %s167 = smul.addr %s166, 8
      %s168 = scalar_lea.vmem %s3, %s167
      %v170 = vld [vmem:[%s164] sm:$0xff]
      %v171 = vld [vmem:[%s164 + $0x8] sm:$0x3]
      %v172 = vld [vmem:[%s1] sm:$0xf]
      %s173 = scalar_lea.vmem %s1, 4
      %v174 = vld [vmem:[%s173] sm:$0xf]
      %v176 = vcombine.high %v170, %v170
      %v178 = vunpack.c.l.s4 1983009808
      %v179 = vunpack.c.0.s8 %v178
      %v180 = vlaneseq
      %v181 = vshrl.u32 %v180, 7
      %v182 = vsub.s32 %v179, %v181
      %v183 = vrot.slane %v170, %v182
      %v185 = vunpack.c.l.s4 1983009808
      %v186 = vunpack.c.0.s8 %v185
      %v187 = vlaneseq
      %v188 = vshrl.u32 %v187, 7
      %v189 = vsub.s32 %v186, %v188
      %v190 = vrot.slane %v176, %v189
      %v191 = vcombine.high %v183, %v183
      %v192 = vcombine.high %v190, %v190
      %193 = vrot.lane.b32.xlu0 %v183, 18
      %v194 = vpop.permute.xlu0 %193
      %195 = vrot.lane.b32.xlu0 %v191, 18
      %v196 = vpop.permute.xlu0 %195
      %197 = vrot.lane.b32.xlu0 %v190, 18
      %v198 = vpop.permute.xlu0 %197
      %199 = vrot.lane.b32.xlu0 %v192, 18
      %v200 = vpop.permute.xlu0 %199
      %vm201 = vcmask 146432
      %v202 = vsel %vm201, %v194, %v196
      %v203 = vsel %vm201, %v196, %v198
      %v204 = vsel %vm201, %v198, %v200
      %vm205 = vcmask 31744
      %v207 = vsel %vm205, %v174, 0
      %vm209 = vcmask 1041408
      %v211 = vsel %vm209, %v202, 0
      %v214 = vsel %vm209, %v203, 0
      %v217 = vsel %vm209, %v204, 0
      %219 = vmatprep.subr.bf16.mxu0 %v214
      %220 = vmatpush1.bf16.msra.mxu0 %v211
      %221 = vmatprep.subr.bf16.mxu0 0
      %222 = vmatpush1.bf16.msra.mxu0 0
      %223 = vmatprep.subr.bf16.mxu0 0
      %224 = vmatpush1.bf16.msra.mxu0 0
      %225 = vmatprep.subr.bf16.mxu0 0
      %226 = vmatpush1.bf16.msra.mxu0 0
      %227 = vmatprep.subr.bf16.mxu0 0
      %228 = vmatpush1.bf16.msra.mxu0 0
      %229 = vmatprep.subr.bf16.mxu0 0
      %230 = vmatpush1.bf16.msra.mxu0 0
      %231 = vmatprep.subr.bf16.mxu0 0
      %232 = vmatpush1.bf16.msra.mxu0 0
      %233 = vmatprep.subr.bf16.mxu0 0
      %234 = vmatpush1.bf16.msra.mxu0 0
      %235 = vmatprep.subr.bf16.mxu0 0
      %236 = vmatpush1.bf16.msra.mxu0 0
      %237 = vmatprep.subr.bf16.mxu0 0
      %238 = vmatpush1.bf16.msra.mxu0 0
      %239 = vmatprep.subr.bf16.mxu0 0
      %240 = vmatpush1.bf16.msra.mxu0 0
      %241 = vmatprep.subr.bf16.mxu0 0
      %242 = vmatpush1.bf16.msra.mxu0 0
      %243 = vmatprep.subr.bf16.mxu0 0
      %244 = vmatpush1.bf16.msra.mxu0 0
      %245 = vmatprep.subr.bf16.mxu0 0
      %246 = vmatpush1.bf16.msra.mxu0 0
      %247 = vmatprep.subr.bf16.mxu0 0
      %248 = vmatpush1.bf16.msra.mxu0 0
      %249 = vmatprep.subr.bf16.mxu0 0
      %250 = vmatpush1.bf16.msra.mxu0 0
      %251 = vmatprep.mubr.bf16.mxu0 0
      %252 = vmatmul.mubr.bf16.gmra.mrb[0].mxu0 %v207
      %v253 = vpop.f32.mrb[0].mxu0
      %v254 = vadd.f32 0.0, %v253
      %v255 = vpop.f32.mrb[0].mxu0
      %v256 = vadd.f32 0.0, %v255
      %v257 = vpop.f32.mrb[0].mxu0
      %v258 = vpop.f32.mrb[0].mxu0
      %259 = vdwg.mxu0
      %260 = vmatprep.subr.bf16.mxu0 0
      %261 = vmatpush1.bf16.msra.mxu0 %v217
      %262 = vmatprep.subr.bf16.mxu0 0
      %263 = vmatpush1.bf16.msra.mxu0 0
      %264 = vmatprep.subr.bf16.mxu0 0
      %265 = vmatpush1.bf16.msra.mxu0 0
      %266 = vmatprep.subr.bf16.mxu0 0
      %267 = vmatpush1.bf16.msra.mxu0 0
      %268 = vmatprep.subr.bf16.mxu0 0
      %269 = vmatpush1.bf16.msra.mxu0 0
      %270 = vmatprep.subr.bf16.mxu0 0
      %271 = vmatpush1.bf16.msra.mxu0 0
      %272 = vmatprep.subr.bf16.mxu0 0
      %273 = vmatpush1.bf16.msra.mxu0 0
      %274 = vmatprep.subr.bf16.mxu0 0
      %275 = vmatpush1.bf16.msra.mxu0 0
      %276 = vmatprep.subr.bf16.mxu0 0
      %277 = vmatpush1.bf16.msra.mxu0 0
      %278 = vmatprep.subr.bf16.mxu0 0
      %279 = vmatpush1.bf16.msra.mxu0 0
      %280 = vmatprep.subr.bf16.mxu0 0
      %281 = vmatpush1.bf16.msra.mxu0 0
      %282 = vmatprep.subr.bf16.mxu0 0
      %283 = vmatpush1.bf16.msra.mxu0 0
      %284 = vmatprep.subr.bf16.mxu0 0
      %285 = vmatpush1.bf16.msra.mxu0 0
      %286 = vmatprep.subr.bf16.mxu0 0
      %287 = vmatpush1.bf16.msra.mxu0 0
      %288 = vmatprep.subr.bf16.mxu0 0
      %289 = vmatpush1.bf16.msra.mxu0 0
      %290 = vmatprep.subr.bf16.mxu0 0
      %291 = vmatpush1.bf16.msra.mxu0 0
      %292 = vmatprep.mubr.bf16.mxu0 0
      %293 = vmatmul.mubr.bf16.gmra.mrb[0].mxu0 %v207
      %v294 = vpop.f32.mrb[0].mxu0
      %v295 = vadd.f32 0.0, %v294
      %v296 = vpop.f32.mrb[0].mxu0
      %v297 = vpop.f32.mrb[0].mxu0
      %v298 = vpop.f32.mrb[0].mxu0
      %299 = vdwg.mxu0
      %300 = vrot.lane.b32.xlu0 %v183, 19
      %v301 = vpop.permute.xlu0 %300
      %302 = vrot.lane.b32.xlu0 %v191, 19
      %v303 = vpop.permute.xlu0 %302
      %304 = vrot.lane.b32.xlu0 %v190, 19
      %v305 = vpop.permute.xlu0 %304
      %306 = vrot.lane.b32.xlu0 %v192, 19
      %v307 = vpop.permute.xlu0 %306
      %vm308 = vcmask 154624
      %v309 = vsel %vm308, %v301, %v303
      %v310 = vsel %vm308, %v303, %v305
      %v311 = vsel %vm308, %v305, %v307
      %v313 = vsel %vm205, %v172, 0
      %v316 = vsel %vm209, %v309, 0
      %v319 = vsel %vm209, %v310, 0
      %v322 = vsel %vm209, %v311, 0
      %324 = vmatprep.subr.bf16.mxu0 %v319
      %325 = vmatpush1.bf16.msra.mxu0 %v316
      %326 = vmatprep.subr.bf16.mxu0 0
      %327 = vmatpush1.bf16.msra.mxu0 0
      %328 = vmatprep.subr.bf16.mxu0 0
      %329 = vmatpush1.bf16.msra.mxu0 0
      %330 = vmatprep.subr.bf16.mxu0 0
      %331 = vmatpush1.bf16.msra.mxu0 0
      %332 = vmatprep.subr.bf16.mxu0 0
      %333 = vmatpush1.bf16.msra.mxu0 0
      %334 = vmatprep.subr.bf16.mxu0 0
      %335 = vmatpush1.bf16.msra.mxu0 0
      %336 = vmatprep.subr.bf16.mxu0 0
      %337 = vmatpush1.bf16.msra.mxu0 0
      %338 = vmatprep.subr.bf16.mxu0 0
      %339 = vmatpush1.bf16.msra.mxu0 0
      %340 = vmatprep.subr.bf16.mxu0 0
      %341 = vmatpush1.bf16.msra.mxu0 0
      %342 = vmatprep.subr.bf16.mxu0 0
      %343 = vmatpush1.bf16.msra.mxu0 0
      %344 = vmatprep.subr.bf16.mxu0 0
      %345 = vmatpush1.bf16.msra.mxu0 0
      %346 = vmatprep.subr.bf16.mxu0 0
      %347 = vmatpush1.bf16.msra.mxu0 0
      %348 = vmatprep.subr.bf16.mxu0 0
      %349 = vmatpush1.bf16.msra.mxu0 0
      %350 = vmatprep.subr.bf16.mxu0 0
      %351 = vmatpush1.bf16.msra.mxu0 0
      %352 = vmatprep.subr.bf16.mxu0 0
      %353 = vmatpush1.bf16.msra.mxu0 0
      %354 = vmatprep.subr.bf16.mxu0 0
      %355 = vmatpush1.bf16.msra.mxu0 0
      %356 = vmatprep.mubr.bf16.mxu0 0
      %357 = vmatmul.mubr.bf16.gmra.mrb[0].mxu0 %v313
      %v358 = vpop.f32.mrb[0].mxu0
      %v359 = vadd.f32 %v254, %v358
      %v360 = vpop.f32.mrb[0].mxu0
      %v361 = vadd.f32 %v256, %v360
      %v362 = vpop.f32.mrb[0].mxu0
      %v363 = vpop.f32.mrb[0].mxu0
      %364 = vdwg.mxu0
      %365 = vmatprep.subr.bf16.mxu0 0
      %366 = vmatpush1.bf16.msra.mxu0 %v322
      %367 = vmatprep.subr.bf16.mxu0 0
      %368 = vmatpush1.bf16.msra.mxu0 0
      %369 = vmatprep.subr.bf16.mxu0 0
      %370 = vmatpush1.bf16.msra.mxu0 0
      %371 = vmatprep.subr.bf16.mxu0 0
      %372 = vmatpush1.bf16.msra.mxu0 0
      %373 = vmatprep.subr.bf16.mxu0 0
      %374 = vmatpush1.bf16.msra.mxu0 0
      %375 = vmatprep.subr.bf16.mxu0 0
      %376 = vmatpush1.bf16.msra.mxu0 0
      %377 = vmatprep.subr.bf16.mxu0 0
      %378 = vmatpush1.bf16.msra.mxu0 0
      %379 = vmatprep.subr.bf16.mxu0 0
      %380 = vmatpush1.bf16.msra.mxu0 0
      %381 = vmatprep.subr.bf16.mxu0 0
      %382 = vmatpush1.bf16.msra.mxu0 0
      %383 = vmatprep.subr.bf16.mxu0 0
      %384 = vmatpush1.bf16.msra.mxu0 0
      %385 = vmatprep.subr.bf16.mxu0 0
      %386 = vmatpush1.bf16.msra.mxu0 0
      %387 = vmatprep.subr.bf16.mxu0 0
      %388 = vmatpush1.bf16.msra.mxu0 0
      %389 = vmatprep.subr.bf16.mxu0 0
      %390 = vmatpush1.bf16.msra.mxu0 0
      %391 = vmatprep.subr.bf16.mxu0 0
      %392 = vmatpush1.bf16.msra.mxu0 0
      %393 = vmatprep.subr.bf16.mxu0 0
      %394 = vmatpush1.bf16.msra.mxu0 0
      %395 = vmatprep.subr.bf16.mxu0 0
      %396 = vmatpush1.bf16.msra.mxu0 0
      %397 = vmatprep.mubr.bf16.mxu0 0
      %398 = vmatmul.mubr.bf16.gmra.mrb[0].mxu0 %v313
      %v399 = vpop.f32.mrb[0].mxu0
      %v400 = vadd.f32 %v295, %v399
      %v401 = vpop.f32.mrb[0].mxu0
      %v402 = vpop.f32.mrb[0].mxu0
      %v403 = vpop.f32.mrb[0].mxu0
      %404 = vdwg.mxu0
      %s405 = scalar_lea.vmem %s1, 8
      %v406 = vld [vmem:[%s405] sm:$0xf]
      %407 = vrot.lane.b32.xlu0 %v183, 1
      %v408 = vpop.permute.xlu0 %407
      %409 = vrot.lane.b32.xlu0 %v191, 1
      %v410 = vpop.permute.xlu0 %409
      %411 = vrot.lane.b32.xlu0 %v190, 1
      %v412 = vpop.permute.xlu0 %411
      %413 = vrot.lane.b32.xlu0 %v192, 1
      %v414 = vpop.permute.xlu0 %413
      %vm415 = vcmask 7168
      %v416 = vsel %vm415, %v408, %v410
      %v417 = vsel %vm415, %v410, %v412
      %v418 = vsel %vm415, %v412, %v414
      %v420 = vsel %vm205, %v406, 0
      %v423 = vsel %vm209, %v416, 0
      %v426 = vsel %vm209, %v417, 0
      %v429 = vsel %vm209, %v418, 0
      %431 = vmatprep.subr.bf16.mxu0 %v426
      %432 = vmatpush1.bf16.msra.mxu0 %v423
      %433 = vmatprep.subr.bf16.mxu0 0
      %434 = vmatpush1.bf16.msra.mxu0 0
      %435 = vmatprep.subr.bf16.mxu0 0
      %436 = vmatpush1.bf16.msra.mxu0 0
      %437 = vmatprep.subr.bf16.mxu0 0
      %438 = vmatpush1.bf16.msra.mxu0 0
      %439 = vmatprep.subr.bf16.mxu0 0
      %440 = vmatpush1.bf16.msra.mxu0 0
      %441 = vmatprep.subr.bf16.mxu0 0
      %442 = vmatpush1.bf16.msra.mxu0 0
      %443 = vmatprep.subr.bf16.mxu0 0
      %444 = vmatpush1.bf16.msra.mxu0 0
      %445 = vmatprep.subr.bf16.mxu0 0
      %446 = vmatpush1.bf16.msra.mxu0 0
      %447 = vmatprep.subr.bf16.mxu0 0
      %448 = vmatpush1.bf16.msra.mxu0 0
      %449 = vmatprep.subr.bf16.mxu0 0
      %450 = vmatpush1.bf16.msra.mxu0 0
      %451 = vmatprep.subr.bf16.mxu0 0
      %452 = vmatpush1.bf16.msra.mxu0 0
      %453 = vmatprep.subr.bf16.mxu0 0
      %454 = vmatpush1.bf16.msra.mxu0 0
      %455 = vmatprep.subr.bf16.mxu0 0
      %456 = vmatpush1.bf16.msra.mxu0 0
      %457 = vmatprep.subr.bf16.mxu0 0
      %458 = vmatpush1.bf16.msra.mxu0 0
      %459 = vmatprep.subr.bf16.mxu0 0
      %460 = vmatpush1.bf16.msra.mxu0 0
      %461 = vmatprep.subr.bf16.mxu0 0
      %462 = vmatpush1.bf16.msra.mxu0 0
      %463 = vmatprep.mubr.bf16.mxu0 0
      %464 = vmatmul.mubr.bf16.gmra.mrb[0].mxu0 %v420
      %v465 = vpop.f32.mrb[0].mxu0
      %v466 = vadd.f32 0.0, %v465
      %v467 = vpop.f32.mrb[0].mxu0
      %v468 = vadd.f32 0.0, %v467
      %v469 = vpop.f32.mrb[0].mxu0
      %v470 = vpop.f32.mrb[0].mxu0
      %471 = vdwg.mxu0
      %472 = vmatprep.subr.bf16.mxu0 0
      %473 = vmatpush1.bf16.msra.mxu0 %v429
      %474 = vmatprep.subr.bf16.mxu0 0
      %475 = vmatpush1.bf16.msra.mxu0 0
      %476 = vmatprep.subr.bf16.mxu0 0
      %477 = vmatpush1.bf16.msra.mxu0 0
      %478 = vmatprep.subr.bf16.mxu0 0
      %479 = vmatpush1.bf16.msra.mxu0 0
      %480 = vmatprep.subr.bf16.mxu0 0
      %481 = vmatpush1.bf16.msra.mxu0 0
      %482 = vmatprep.subr.bf16.mxu0 0
      %483 = vmatpush1.bf16.msra.mxu0 0
      %484 = vmatprep.subr.bf16.mxu0 0
      %485 = vmatpush1.bf16.msra.mxu0 0
      %486 = vmatprep.subr.bf16.mxu0 0
      %487 = vmatpush1.bf16.msra.mxu0 0
      %488 = vmatprep.subr.bf16.mxu0 0
      %489 = vmatpush1.bf16.msra.mxu0 0
      %490 = vmatprep.subr.bf16.mxu0 0
      %491 = vmatpush1.bf16.msra.mxu0 0
      %492 = vmatprep.subr.bf16.mxu0 0
      %493 = vmatpush1.bf16.msra.mxu0 0
      %494 = vmatprep.subr.bf16.mxu0 0
      %495 = vmatpush1.bf16.msra.mxu0 0
      %496 = vmatprep.subr.bf16.mxu0 0
      %497 = vmatpush1.bf16.msra.mxu0 0
      %498 = vmatprep.subr.bf16.mxu0 0
      %499 = vmatpush1.bf16.msra.mxu0 0
      %500 = vmatprep.subr.bf16.mxu0 0
      %501 = vmatpush1.bf16.msra.mxu0 0
      %502 = vmatprep.subr.bf16.mxu0 0
      %503 = vmatpush1.bf16.msra.mxu0 0
      %504 = vmatprep.mubr.bf16.mxu0 0
      %505 = vmatmul.mubr.bf16.gmra.mrb[0].mxu0 %v420
      %v506 = vpop.f32.mrb[0].mxu0
      %v507 = vadd.f32 0.0, %v506
      %v508 = vpop.f32.mrb[0].mxu0
      %v509 = vpop.f32.mrb[0].mxu0
      %v510 = vpop.f32.mrb[0].mxu0
      %511 = vdwg.mxu0
      %v512 = vadd.f32 %v359, %v466
      %v513 = vadd.f32 %v361, %v468
      %v514 = vadd.f32 %v400, %v507
      %s515 = scalar_lea.vmem %s1, 12
      %v516 = vld [vmem:[%s515] sm:$0xf]
      %v518 = vsel %vm205, %v516, 0
      %v521 = vsel %vm209, %v191, 0
      %v524 = vsel %vm209, %v190, 0
      %v527 = vsel %vm209, %v192, 0
      %529 = vmatprep.subr.bf16.mxu0 %v524
      %530 = vmatpush1.bf16.msra.mxu0 %v521
      %531 = vmatprep.subr.bf16.mxu0 0
      %532 = vmatpush1.bf16.msra.mxu0 0
      %533 = vmatprep.subr.bf16.mxu0 0
      %534 = vmatpush1.bf16.msra.mxu0 0
      %535 = vmatprep.subr.bf16.mxu0 0
      %536 = vmatpush1.bf16.msra.mxu0 0
      %537 = vmatprep.subr.bf16.mxu0 0
      %538 = vmatpush1.bf16.msra.mxu0 0
      %539 = vmatprep.subr.bf16.mxu0 0
      %540 = vmatpush1.bf16.msra.mxu0 0
      %541 = vmatprep.subr.bf16.mxu0 0
      %542 = vmatpush1.bf16.msra.mxu0 0
      %543 = vmatprep.subr.bf16.mxu0 0
      %544 = vmatpush1.bf16.msra.mxu0 0
      %545 = vmatprep.subr.bf16.mxu0 0
      %546 = vmatpush1.bf16.msra.mxu0 0
      %547 = vmatprep.subr.bf16.mxu0 0
      %548 = vmatpush1.bf16.msra.mxu0 0
      %549 = vmatprep.subr.bf16.mxu0 0
      %550 = vmatpush1.bf16.msra.mxu0 0
      %551 = vmatprep.subr.bf16.mxu0 0
      %552 = vmatpush1.bf16.msra.mxu0 0
      %553 = vmatprep.subr.bf16.mxu0 0
      %554 = vmatpush1.bf16.msra.mxu0 0
      %555 = vmatprep.subr.bf16.mxu0 0
      %556 = vmatpush1.bf16.msra.mxu0 0
      %557 = vmatprep.subr.bf16.mxu0 0
      %558 = vmatpush1.bf16.msra.mxu0 0
      %559 = vmatprep.subr.bf16.mxu0 0
      %560 = vmatpush1.bf16.msra.mxu0 0
      %561 = vmatprep.mubr.bf16.mxu0 0
      %562 = vmatmul.mubr.bf16.gmra.mrb[0].mxu0 %v518
      %v563 = vpop.f32.mrb[0].mxu0
      %v564 = vadd.f32 0.0, %v563
      %v565 = vpop.f32.mrb[0].mxu0
      %v566 = vadd.f32 0.0, %v565
      %v567 = vpop.f32.mrb[0].mxu0
      %v568 = vpop.f32.mrb[0].mxu0
      %569 = vdwg.mxu0
      %570 = vmatprep.subr.bf16.mxu0 0
      %571 = vmatpush1.bf16.msra.mxu0 %v527
      %572 = vmatprep.subr.bf16.mxu0 0
      %573 = vmatpush1.bf16.msra.mxu0 0
      %574 = vmatprep.subr.bf16.mxu0 0
      %575 = vmatpush1.bf16.msra.mxu0 0
      %576 = vmatprep.subr.bf16.mxu0 0
      %577 = vmatpush1.bf16.msra.mxu0 0
      %578 = vmatprep.subr.bf16.mxu0 0
      %579 = vmatpush1.bf16.msra.mxu0 0
      %580 = vmatprep.subr.bf16.mxu0 0
      %581 = vmatpush1.bf16.msra.mxu0 0
      %582 = vmatprep.subr.bf16.mxu0 0
      %583 = vmatpush1.bf16.msra.mxu0 0
      %584 = vmatprep.subr.bf16.mxu0 0
      %585 = vmatpush1.bf16.msra.mxu0 0
      %586 = vmatprep.subr.bf16.mxu0 0
      %587 = vmatpush1.bf16.msra.mxu0 0
      %588 = vmatprep.subr.bf16.mxu0 0
      %589 = vmatpush1.bf16.msra.mxu0 0
      %590 = vmatprep.subr.bf16.mxu0 0
      %591 = vmatpush1.bf16.msra.mxu0 0
      %592 = vmatprep.subr.bf16.mxu0 0
      %593 = vmatpush1.bf16.msra.mxu0 0
      %594 = vmatprep.subr.bf16.mxu0 0
      %595 = vmatpush1.bf16.msra.mxu0 0
      %596 = vmatprep.subr.bf16.mxu0 0
      %597 = vmatpush1.bf16.msra.mxu0 0
      %598 = vmatprep.subr.bf16.mxu0 0
      %599 = vmatpush1.bf16.msra.mxu0 0
      %600 = vmatprep.subr.bf16.mxu0 0
      %601 = vmatpush1.bf16.msra.mxu0 0
      %602 = vmatprep.mubr.bf16.mxu0 0
      %603 = vmatmul.mubr.bf16.gmra.mrb[0].mxu0 %v518
      %v604 = vpop.f32.mrb[0].mxu0
      %v605 = vadd.f32 0.0, %v604
      %v606 = vpop.f32.mrb[0].mxu0
      %v607 = vpop.f32.mrb[0].mxu0
      %v608 = vpop.f32.mrb[0].mxu0
      %609 = vdwg.mxu0
      %v610 = vadd.f32 %v512, %v564
      %v611 = vadd.f32 %v513, %v566
      %v612 = vadd.f32 %v514, %v605
      %s613 = scalar_lea.vmem %s1, 16
      %v614 = vld [vmem:[%s613] sm:$0xf]
      %v617 = vunpack.c.l.s4 1983009808
      %v618 = vunpack.c.0.s8 %v617
      %v619 = vlaneseq
      %v620 = vshrl.u32 %v619, 7
      %v621 = vsub.s32 %v618, %v620
      %v622 = vrot.slane %v171, %v621
      %623 = vrot.lane.b32.xlu0 %v191, 127
      %v624 = vpop.permute.xlu0 %623
      %625 = vrot.lane.b32.xlu0 %v190, 127
      %v626 = vpop.permute.xlu0 %625
      %627 = vrot.lane.b32.xlu0 %v192, 127
      %v628 = vpop.permute.xlu0 %627
      %629 = vrot.lane.b32.xlu0 %v622, 127
      %v630 = vpop.permute.xlu0 %629
      %vm631 = vcmask 1039360
      %v632 = vsel %vm631, %v624, %v626
      %v633 = vsel %vm631, %v626, %v628
      %v634 = vsel %vm631, %v628, %v630
      %v636 = vsel %vm205, %v614, 0
      %v639 = vsel %vm209, %v632, 0
      %v642 = vsel %vm209, %v633, 0
      %v645 = vsel %vm209, %v634, 0
      %647 = vmatprep.subr.bf16.mxu0 %v642
      %648 = vmatpush1.bf16.msra.mxu0 %v639
      %649 = vmatprep.subr.bf16.mxu0 0
      %650 = vmatpush1.bf16.msra.mxu0 0
      %651 = vmatprep.subr.bf16.mxu0 0
      %652 = vmatpush1.bf16.msra.mxu0 0
      %653 = vmatprep.subr.bf16.mxu0 0
      %654 = vmatpush1.bf16.msra.mxu0 0
      %655 = vmatprep.subr.bf16.mxu0 0
      %656 = vmatpush1.bf16.msra.mxu0 0
      %657 = vmatprep.subr.bf16.mxu0 0
      %658 = vmatpush1.bf16.msra.mxu0 0
      %659 = vmatprep.subr.bf16.mxu0 0
      %660 = vmatpush1.bf16.msra.mxu0 0
      %661 = vmatprep.subr.bf16.mxu0 0
      %662 = vmatpush1.bf16.msra.mxu0 0
      %663 = vmatprep.subr.bf16.mxu0 0
      %664 = vmatpush1.bf16.msra.mxu0 0
      %665 = vmatprep.subr.bf16.mxu0 0
      %666 = vmatpush1.bf16.msra.mxu0 0
      %667 = vmatprep.subr.bf16.mxu0 0
      %668 = vmatpush1.bf16.msra.mxu0 0
      %669 = vmatprep.subr.bf16.mxu0 0
      %670 = vmatpush1.bf16.msra.mxu0 0
      %671 = vmatprep.subr.bf16.mxu0 0
      %672 = vmatpush1.bf16.msra.mxu0 0
      %673 = vmatprep.subr.bf16.mxu0 0
      %674 = vmatpush1.bf16.msra.mxu0 0
      %675 = vmatprep.subr.bf16.mxu0 0
      %676 = vmatpush1.bf16.msra.mxu0 0
      %677 = vmatprep.subr.bf16.mxu0 0
      %678 = vmatpush1.bf16.msra.mxu0 0
      %679 = vmatprep.mubr.bf16.mxu0 0
      %680 = vmatmul.mubr.bf16.gmra.mrb[0].mxu0 %v636
      %v681 = vpop.f32.mrb[0].mxu0
      %v682 = vadd.f32 0.0, %v681
      %v683 = vpop.f32.mrb[0].mxu0
      %v684 = vadd.f32 0.0, %v683
      %v685 = vpop.f32.mrb[0].mxu0
      %v686 = vpop.f32.mrb[0].mxu0
      %687 = vdwg.mxu0
      %688 = vmatprep.subr.bf16.mxu0 0
      %689 = vmatpush1.bf16.msra.mxu0 %v645
      %690 = vmatprep.subr.bf16.mxu0 0
      %691 = vmatpush1.bf16.msra.mxu0 0
      %692 = vmatprep.subr.bf16.mxu0 0
      %693 = vmatpush1.bf16.msra.mxu0 0
      %694 = vmatprep.subr.bf16.mxu0 0
      %695 = vmatpush1.bf16.msra.mxu0 0
      %696 = vmatprep.subr.bf16.mxu0 0
      %697 = vmatpush1.bf16.msra.mxu0 0
      %698 = vmatprep.subr.bf16.mxu0 0
      %699 = vmatpush1.bf16.msra.mxu0 0
      %700 = vmatprep.subr.bf16.mxu0 0
      %701 = vmatpush1.bf16.msra.mxu0 0
      %702 = vmatprep.subr.bf16.mxu0 0
      %703 = vmatpush1.bf16.msra.mxu0 0
      %704 = vmatprep.subr.bf16.mxu0 0
      %705 = vmatpush1.bf16.msra.mxu0 0
      %706 = vmatprep.subr.bf16.mxu0 0
      %707 = vmatpush1.bf16.msra.mxu0 0
      %708 = vmatprep.subr.bf16.mxu0 0
      %709 = vmatpush1.bf16.msra.mxu0 0
      %710 = vmatprep.subr.bf16.mxu0 0
      %711 = vmatpush1.bf16.msra.mxu0 0
      %712 = vmatprep.subr.bf16.mxu0 0
      %713 = vmatpush1.bf16.msra.mxu0 0
      %714 = vmatprep.subr.bf16.mxu0 0
      %715 = vmatpush1.bf16.msra.mxu0 0
      %716 = vmatprep.subr.bf16.mxu0 0
      %717 = vmatpush1.bf16.msra.mxu0 0
      %718 = vmatprep.subr.bf16.mxu0 0
      %719 = vmatpush1.bf16.msra.mxu0 0
      %720 = vmatprep.mubr.bf16.mxu0 0
      %721 = vmatmul.mubr.bf16.gmra.mrb[0].mxu0 %v636
      %v722 = vpop.f32.mrb[0].mxu0
      %v723 = vadd.f32 0.0, %v722
      %v724 = vpop.f32.mrb[0].mxu0
      %v725 = vpop.f32.mrb[0].mxu0
      %v726 = vpop.f32.mrb[0].mxu0
      %727 = vdwg.mxu0
      %v728 = vadd.f32 %v610, %v682
      %v729 = vadd.f32 %v611, %v684
      %v730 = vadd.f32 %v612, %v723
      %s731 = scalar_lea.vmem %s1, 20
      %v732 = vld [vmem:[%s731] sm:$0xf]
      %733 = vrot.lane.b32.xlu0 %v191, 110
      %v734 = vpop.permute.xlu0 %733
      %735 = vrot.lane.b32.xlu0 %v190, 110
      %v736 = vpop.permute.xlu0 %735
      %737 = vrot.lane.b32.xlu0 %v192, 110
      %v738 = vpop.permute.xlu0 %737
      %739 = vrot.lane.b32.xlu0 %v622, 110
      %v740 = vpop.permute.xlu0 %739
      %vm741 = vcmask 900096
      %v742 = vsel %vm741, %v734, %v736
      %v743 = vsel %vm741, %v736, %v738
      %v744 = vsel %vm741, %v738, %v740
      %v746 = vsel %vm205, %v732, 0
      %v749 = vsel %vm209, %v742, 0
      %v752 = vsel %vm209, %v743, 0
      %v755 = vsel %vm209, %v744, 0
      %757 = vmatprep.subr.bf16.mxu0 %v752
      %758 = vmatpush1.bf16.msra.mxu0 %v749
      %759 = vmatprep.subr.bf16.mxu0 0
      %760 = vmatpush1.bf16.msra.mxu0 0
      %761 = vmatprep.subr.bf16.mxu0 0
      %762 = vmatpush1.bf16.msra.mxu0 0
      %763 = vmatprep.subr.bf16.mxu0 0
      %764 = vmatpush1.bf16.msra.mxu0 0
      %765 = vmatprep.subr.bf16.mxu0 0
      %766 = vmatpush1.bf16.msra.mxu0 0
      %767 = vmatprep.subr.bf16.mxu0 0
      %768 = vmatpush1.bf16.msra.mxu0 0
      %769 = vmatprep.subr.bf16.mxu0 0
      %770 = vmatpush1.bf16.msra.mxu0 0
      %771 = vmatprep.subr.bf16.mxu0 0
      %772 = vmatpush1.bf16.msra.mxu0 0
      %773 = vmatprep.subr.bf16.mxu0 0
      %774 = vmatpush1.bf16.msra.mxu0 0
      %775 = vmatprep.subr.bf16.mxu0 0
      %776 = vmatpush1.bf16.msra.mxu0 0
      %777 = vmatprep.subr.bf16.mxu0 0
      %778 = vmatpush1.bf16.msra.mxu0 0
      %779 = vmatprep.subr.bf16.mxu0 0
      %780 = vmatpush1.bf16.msra.mxu0 0
      %781 = vmatprep.subr.bf16.mxu0 0
      %782 = vmatpush1.bf16.msra.mxu0 0
      %783 = vmatprep.subr.bf16.mxu0 0
      %784 = vmatpush1.bf16.msra.mxu0 0
      %785 = vmatprep.subr.bf16.mxu0 0
      %786 = vmatpush1.bf16.msra.mxu0 0
      %787 = vmatprep.subr.bf16.mxu0 0
      %788 = vmatpush1.bf16.msra.mxu0 0
      %789 = vmatprep.mubr.bf16.mxu0 0
      %790 = vmatmul.mubr.bf16.gmra.mrb[0].mxu0 %v746
      %v791 = vpop.f32.mrb[0].mxu0
      %v792 = vadd.f32 0.0, %v791
      %v793 = vpop.f32.mrb[0].mxu0
      %v794 = vadd.f32 0.0, %v793
      %v795 = vpop.f32.mrb[0].mxu0
      %v796 = vpop.f32.mrb[0].mxu0
      %797 = vdwg.mxu0
      %798 = vmatprep.subr.bf16.mxu0 0
      %799 = vmatpush1.bf16.msra.mxu0 %v755
      %800 = vmatprep.subr.bf16.mxu0 0
      %801 = vmatpush1.bf16.msra.mxu0 0
      %802 = vmatprep.subr.bf16.mxu0 0
      %803 = vmatpush1.bf16.msra.mxu0 0
      %804 = vmatprep.subr.bf16.mxu0 0
      %805 = vmatpush1.bf16.msra.mxu0 0
      %806 = vmatprep.subr.bf16.mxu0 0
      %807 = vmatpush1.bf16.msra.mxu0 0
      %808 = vmatprep.subr.bf16.mxu0 0
      %809 = vmatpush1.bf16.msra.mxu0 0
      %810 = vmatprep.subr.bf16.mxu0 0
      %811 = vmatpush1.bf16.msra.mxu0 0
      %812 = vmatprep.subr.bf16.mxu0 0
      %813 = vmatpush1.bf16.msra.mxu0 0
      %814 = vmatprep.subr.bf16.mxu0 0
      %815 = vmatpush1.bf16.msra.mxu0 0
      %816 = vmatprep.subr.bf16.mxu0 0
      %817 = vmatpush1.bf16.msra.mxu0 0
      %818 = vmatprep.subr.bf16.mxu0 0
      %819 = vmatpush1.bf16.msra.mxu0 0
      %820 = vmatprep.subr.bf16.mxu0 0
      %821 = vmatpush1.bf16.msra.mxu0 0
      %822 = vmatprep.subr.bf16.mxu0 0
      %823 = vmatpush1.bf16.msra.mxu0 0
      %824 = vmatprep.subr.bf16.mxu0 0
      %825 = vmatpush1.bf16.msra.mxu0 0
      %826 = vmatprep.subr.bf16.mxu0 0
      %827 = vmatpush1.bf16.msra.mxu0 0
      %828 = vmatprep.subr.bf16.mxu0 0
      %829 = vmatpush1.bf16.msra.mxu0 0
      %830 = vmatprep.mubr.bf16.mxu0 0
      %831 = vmatmul.mubr.bf16.gmra.mrb[0].mxu0 %v746
      %v832 = vpop.f32.mrb[0].mxu0
      %v833 = vadd.f32 0.0, %v832
      %v834 = vpop.f32.mrb[0].mxu0
      %v835 = vpop.f32.mrb[0].mxu0
      %v836 = vpop.f32.mrb[0].mxu0
      %837 = vdwg.mxu0
      %v838 = vadd.f32 %v728, %v792
      %v839 = vadd.f32 %v729, %v794
      %v840 = vadd.f32 %v730, %v833
      %s841 = scalar_lea.vmem %s1, 24
      %v842 = vld [vmem:[%s841] sm:$0xf]
      %843 = vrot.lane.b32.xlu0 %v191, 109
      %v844 = vpop.permute.xlu0 %843
      %845 = vrot.lane.b32.xlu0 %v190, 109
      %v846 = vpop.permute.xlu0 %845
      %847 = vrot.lane.b32.xlu0 %v192, 109
      %v848 = vpop.permute.xlu0 %847
      %849 = vrot.lane.b32.xlu0 %v622, 109
      %v850 = vpop.permute.xlu0 %849
      %vm851 = vcmask 891904
      %v852 = vsel %vm851, %v844, %v846
      %v853 = vsel %vm851, %v846, %v848
      %v854 = vsel %vm851, %v848, %v850
      %v856 = vsel %vm205, %v842, 0
      %v859 = vsel %vm209, %v852, 0
      %v862 = vsel %vm209, %v853, 0
      %v865 = vsel %vm209, %v854, 0
      %867 = vmatprep.subr.bf16.mxu0 %v862
      %868 = vmatpush1.bf16.msra.mxu0 %v859
      %869 = vmatprep.subr.bf16.mxu0 0
      %870 = vmatpush1.bf16.msra.mxu0 0
      %871 = vmatprep.subr.bf16.mxu0 0
      %872 = vmatpush1.bf16.msra.mxu0 0
      %873 = vmatprep.subr.bf16.mxu0 0
      %874 = vmatpush1.bf16.msra.mxu0 0
      %875 = vmatprep.subr.bf16.mxu0 0
      %876 = vmatpush1.bf16.msra.mxu0 0
      %877 = vmatprep.subr.bf16.mxu0 0
      %878 = vmatpush1.bf16.msra.mxu0 0
      %879 = vmatprep.subr.bf16.mxu0 0
      %880 = vmatpush1.bf16.msra.mxu0 0
      %881 = vmatprep.subr.bf16.mxu0 0
      %882 = vmatpush1.bf16.msra.mxu0 0
      %883 = vmatprep.subr.bf16.mxu0 0
      %884 = vmatpush1.bf16.msra.mxu0 0
      %885 = vmatprep.subr.bf16.mxu0 0
      %886 = vmatpush1.bf16.msra.mxu0 0
      %887 = vmatprep.subr.bf16.mxu0 0
      %888 = vmatpush1.bf16.msra.mxu0 0
      %889 = vmatprep.subr.bf16.mxu0 0
      %890 = vmatpush1.bf16.msra.mxu0 0
      %891 = vmatprep.subr.bf16.mxu0 0
      %892 = vmatpush1.bf16.msra.mxu0 0
      %893 = vmatprep.subr.bf16.mxu0 0
      %894 = vmatpush1.bf16.msra.mxu0 0
      %895 = vmatprep.subr.bf16.mxu0 0
      %896 = vmatpush1.bf16.msra.mxu0 0
      %897 = vmatprep.subr.bf16.mxu0 0
      %898 = vmatpush1.bf16.msra.mxu0 0
      %899 = vmatprep.mubr.bf16.mxu0 0
      %900 = vmatmul.mubr.bf16.gmra.mrb[0].mxu0 %v856
      %v901 = vpop.f32.mrb[0].mxu0
      %v902 = vadd.f32 0.0, %v901
      %v903 = vpop.f32.mrb[0].mxu0
      %v904 = vadd.f32 0.0, %v903
      %v905 = vpop.f32.mrb[0].mxu0
      %v906 = vpop.f32.mrb[0].mxu0
      %907 = vdwg.mxu0
      %908 = vmatprep.subr.bf16.mxu0 0
      %909 = vmatpush1.bf16.msra.mxu0 %v865
      %910 = vmatprep.subr.bf16.mxu0 0
      %911 = vmatpush1.bf16.msra.mxu0 0
      %912 = vmatprep.subr.bf16.mxu0 0
      %913 = vmatpush1.bf16.msra.mxu0 0
      %914 = vmatprep.subr.bf16.mxu0 0
      %915 = vmatpush1.bf16.msra.mxu0 0
      %916 = vmatprep.subr.bf16.mxu0 0
      %917 = vmatpush1.bf16.msra.mxu0 0
      %918 = vmatprep.subr.bf16.mxu0 0
      %919 = vmatpush1.bf16.msra.mxu0 0
      %920 = vmatprep.subr.bf16.mxu0 0
      %921 = vmatpush1.bf16.msra.mxu0 0
      %922 = vmatprep.subr.bf16.mxu0 0
      %923 = vmatpush1.bf16.msra.mxu0 0
      %924 = vmatprep.subr.bf16.mxu0 0
      %925 = vmatpush1.bf16.msra.mxu0 0
      %926 = vmatprep.subr.bf16.mxu0 0
      %927 = vmatpush1.bf16.msra.mxu0 0
      %928 = vmatprep.subr.bf16.mxu0 0
      %929 = vmatpush1.bf16.msra.mxu0 0
      %930 = vmatprep.subr.bf16.mxu0 0
      %931 = vmatpush1.bf16.msra.mxu0 0
      %932 = vmatprep.subr.bf16.mxu0 0
      %933 = vmatpush1.bf16.msra.mxu0 0
      %934 = vmatprep.subr.bf16.mxu0 0
      %935 = vmatpush1.bf16.msra.mxu0 0
      %936 = vmatprep.subr.bf16.mxu0 0
      %937 = vmatpush1.bf16.msra.mxu0 0
      %938 = vmatprep.subr.bf16.mxu0 0
      %939 = vmatpush1.bf16.msra.mxu0 0
      %940 = vmatprep.mubr.bf16.mxu0 0
      %941 = vmatmul.mubr.bf16.gmra.mrb[0].mxu0 %v856
      %v942 = vpop.f32.mrb[0].mxu0
      %v943 = vadd.f32 0.0, %v942
      %v944 = vpop.f32.mrb[0].mxu0
      %v945 = vpop.f32.mrb[0].mxu0
      %v946 = vpop.f32.mrb[0].mxu0
      %947 = vdwg.mxu0
      %v948 = vadd.f32 %v838, %v902
      %v949 = vadd.f32 %v839, %v904
      %v950 = vadd.f32 %v840, %v943
      %v951 = vld [vmem:[%s2] sm:$0x7]
      %v953 = vlaneseq
      %v954 = vshrl.u32 %v953, 7
      %v955 = vsub.s32 0, %v954
      %v956 = vrot.slane %v951, %v955
      %v957 = vlaneseq
      %v958 = vshrl.u32 %v957, 7
      %v959 = vsub.s32 1, %v958
      %v960 = vrot.slane %v951, %v959
      %v961 = vlaneseq
      %v962 = vshrl.u32 %v961, 7
      %v963 = vsub.s32 2, %v962
      %v964 = vrot.slane %v951, %v963
      %v968 = vmul.f32 %v948, %v956
      %v969 = vmul.f32 %v949, %v960
      %v970 = vmul.f32 %v950, %v964
      %v971 = vadd.f32 %v968, %v969
      %v972 = vadd.f32 %v971, %v970
      %973 = vadd.xlane.f32.xlu0 %v972
      %v974 = vpop.xlane.xlu0 %973
      %vm975 = vcmask 7168
      %976 = vst.msk [vmem:[%s168] sm:$0xff] %vm975, %v974
      %v977 = vmul.f32 %v968, %v948
      %v978 = vmul.f32 %v969, %v949
      %v979 = vmul.f32 %v970, %v950
      %v980 = vadd.f32 %v977, %v978
      %v981 = vadd.f32 %v980, %v979
      %982 = vadd.xlane.f32.xlu0 %v981
      %v983 = vpop.xlane.xlu0 %982
      %vm984 = vcmask 15368
      %985 = vst.msk [vmem:[%s168] sm:$0xff] %vm984, %v983
      %p986 = scmp.lt.s32.totalorder %s14, 1
      %s987 = scalar_select %p986, %s14, 1
      %s988 = smul.addr %s987, 8
      %s989 = scalar_lea.vmem %s3, %s988
      // Predicated region
      $region33: #{resblock_enc_forward.4} parent=31 // pred_check
        %p990 = pneg %p100
      $region34: #{resblock_enc_forward.4} parent=31 // pred_check_branch
        %992 = sbr.rel (%p990) target = $region36
      $region35: #{resblock_enc_forward.4} parent=31 // pred_region
        _
      $region36: #{resblock_enc_forward.4} parent=31 // pred_fallthru
        _
    $region32: #{resblock_enc_forward.4} parent=5 // pred_fallthru
      _
    %p993 = scmp.le.s32.totalorder 2, %s9
    // Predicated region
    $region37: #{resblock_enc_forward.4} parent=5 // pred_check
      %p994 = pneg %p993
    $region38: #{resblock_enc_forward.4} parent=5 // pred_check_branch
      %996 = sbr.rel (%p994) target = $region40
    $region39: #{resblock_enc_forward.4} parent=5 // pred_region
      %s997 = ssub.s32 %s9, 2
      // Predicated region
      $region41: #{resblock_enc_forward.4} parent=39 // pred_check
        %p998 = pneg %p106
      $region42: #{resblock_enc_forward.4} parent=39 // pred_check_branch
        %1000 = sbr.rel (%p998) target = $region44
      $region43: #{resblock_enc_forward.4} parent=39 // pred_region
        %p1001 = scmp.lt.s32.totalorder %s15, 1
        %s1002 = scalar_select %p1001, %s15, 1
        %s1003 = smul.addr %s1002, 8
        %s1004 = scalar_lea.vmem %s3, %s1003
      $region44: #{resblock_enc_forward.4} parent=39 // pred_fallthru
        _
    $region40: #{resblock_enc_forward.4} parent=5 // pred_fallthru
      _
  $region6: #{resblock_enc_forward.4} parent=0 // loop_footer
    %s13 = sadd.s32 1, %s9
  $region7: #{resblock_enc_forward.4} parent=0 // loop_footer_branch
    %8 = sbr.rel target = $region3
  $region8: #{resblock_enc_forward.4} parent=0 // loop_exit
    _

// kernel: resblock_enc_forward.6
$region0: #{resblock_enc_forward.6}
  #allocation0 [shape = 'u32[]', space=smem, size = 0x4, offset = 0x4, fixed_abs, tag = 'smem constant byte address 0x4 - core index']
  #allocation1 [shape = 'u32[144,128]{1,0:T(1,128)}', space=vmem, size = 0x12000, scoped, tag = 'internal scratch']
  %s0 = inlined_call_operand.vmem [shape: bf16[2,8,640], index: 0, kind: input, shape index: {}]
  %s1 = inlined_call_operand.vmem [shape: bf16[7,8,8], index: 1, kind: input, shape index: {}]
  %s2 = inlined_call_operand.vmem [shape: f32[1,384], index: 2, kind: input, shape index: {}]
  %s3 = inlined_call_operand.vmem [shape: f32[2,8,2], index: 3, kind: output, shape index: {}]
  %s4 = sld [smem:[#allocation0]]
  $region45: #{resblock_enc_forward.6} parent=0
    _
  %s6 = ssub.s32 1, %s4
  %s7 = scalar_select 0, %s6, %s4
  loop: start=0, step=1, limit=4
  $region2: #{resblock_enc_forward.6} parent=0 // loop_pre_header
    _
  $region3: #{resblock_enc_forward.6} parent=0 // loop_header
    %s9 = sphi 0, %s13
    %p10 = scmp.ge.s32.totalorder %s9, 4
    %s19 = sphi 0, %s21
    %s22 = sphi 0, %s19
    %s23 = sphi 0, %s22
    %s39 = sphi 0, %s23
    %s43 = sphi 0, %s43
    %s45 = sphi 0, %s43
    %s46 = sphi 0, %s45
    %s60 = sphi 0, %s46
    %s64 = sphi 0, %s64
    %s66 = sphi 0, %s64
    %s67 = sphi 0, %s66
    %s81 = sphi 0, %s67
    %s87 = sphi 0, %s89
    %s90 = sphi 0, %s87
    %s91 = sphi 0, %s90
    %s107 = sphi 0, %s91
  $region4: #{resblock_enc_forward.6} parent=0 // loop_header_branch
    %12 = sbr.rel (%p10) target = $region8
  $region5: #{resblock_enc_forward.6} parent=0 // loop_body
    %s14 = ssub.s32 %s9, 1
    %s15 = ssub.s32 %s9, 2
    %s16 = sadd.s32 %s9, 1
    %s17 = ssub.s32 %s9, %s16
    %p18 = scmp.eq.s32.totalorder %s17, 0
    %s20 = sadd.s32 %s19, 1
    %s21 = scalar_select %p18, %s19, %s20
    %p24 = pneg %p18
    %p25 = scmp.eq.s32.totalorder %s9, 1
    %p26 = por %p24, %p25
    %p27 = scmp.ne.s32.totalorder %s19, %s22
    %p28 = scmp.eq.s32.totalorder %s9, 0
    %p29 = por %p27, %p28
    %p30 = scmp.ne.s32.totalorder %s19, %s22
    %p31 = scmp.eq.s32.totalorder %s14, 1
    %p32 = por %p30, %p31
    %p33 = scmp.ne.s32.totalorder %s22, %s23
    %p34 = scmp.eq.s32.totalorder %s14, 0
    %p35 = por %p33, %p34
    %p36 = scmp.ne.s32.totalorder %s22, %s23
    %p37 = scmp.eq.s32.totalorder %s15, 1
    %p38 = por %p36, %p37
    %p40 = scmp.ne.s32.totalorder %s23, %s39
    %p41 = scmp.eq.s32.totalorder %s15, 0
    %p42 = por %p40, %p41
    %s44 = sadd.s32 %s43, 1
    %p47 = scmp.eq.s32.totalorder %s9, 1
    %p48 = scmp.ne.s32.totalorder %s43, %s45
    %p49 = scmp.eq.s32.totalorder %s9, 0
    %p50 = por %p48, %p49
    %p51 = scmp.ne.s32.totalorder %s43, %s45
    %p52 = scmp.eq.s32.totalorder %s14, 1
    %p53 = por %p51, %p52
    %p54 = scmp.ne.s32.totalorder %s45, %s46
    %p55 = scmp.eq.s32.totalorder %s14, 0
    %p56 = por %p54, %p55
    %p57 = scmp.ne.s32.totalorder %s45, %s46
    %p58 = scmp.eq.s32.totalorder %s15, 1
    %p59 = por %p57, %p58
    %p61 = scmp.ne.s32.totalorder %s46, %s60
    %p62 = scmp.eq.s32.totalorder %s15, 0
    %p63 = por %p61, %p62
    %s65 = sadd.s32 %s64, 1
    %p68 = scmp.eq.s32.totalorder %s9, 1
    %p69 = scmp.ne.s32.totalorder %s64, %s66
    %p70 = scmp.eq.s32.totalorder %s9, 0
    %p71 = por %p69, %p70
    %p72 = scmp.ne.s32.totalorder %s64, %s66
    %p73 = scmp.eq.s32.totalorder %s14, 1
    %p74 = por %p72, %p73
    %p75 = scmp.ne.s32.totalorder %s66, %s67
    %p76 = scmp.eq.s32.totalorder %s14, 0
    %p77 = por %p75, %p76
    %p78 = scmp.ne.s32.totalorder %s66, %s67
    %p79 = scmp.eq.s32.totalorder %s15, 1
    %p80 = por %p78, %p79
    %p82 = scmp.ne.s32.totalorder %s67, %s81
    %p83 = scmp.eq.s32.totalorder %s15, 0
    %p84 = por %p82, %p83
    %s85 = ssub.s32 %s9, %s16
    %p86 = scmp.eq.s32.totalorder %s85, 0
    %s88 = sadd.s32 %s87, 1
    %s89 = scalar_select %p86, %s87, %s88
    %p92 = pneg %p86
    %p93 = scmp.eq.s32.totalorder %s9, 1
    %p94 = por %p92, %p93
    %p95 = scmp.ne.s32.totalorder %s87, %s90
    %p96 = scmp.eq.s32.totalorder %s9, 0
    %p97 = por %p95, %p96
    %p98 = scmp.ne.s32.totalorder %s87, %s90
    %p99 = scmp.eq.s32.totalorder %s14, 1
    %p100 = por %p98, %p99
    %p101 = scmp.ne.s32.totalorder %s90, %s91
    %p102 = scmp.eq.s32.totalorder %s14, 0
    %p103 = por %p101, %p102
    %p104 = scmp.ne.s32.totalorder %s90, %s91
    %p105 = scmp.eq.s32.totalorder %s15, 1
    %p106 = por %p104, %p105
    %p108 = scmp.ne.s32.totalorder %s91, %s107
    %p109 = scmp.eq.s32.totalorder %s15, 0
    %p110 = por %p108, %p109
    %p111 = scmp.le.s32.totalorder 1, %s9
    %p112 = scmp.lt.s32.totalorder %s9, 3
    %p113 = pnand %p111, %p112
    %p114 = pneg %p113
    // Predicated region
    $region9: #{resblock_enc_forward.6} parent=5 // pred_check
      _
    $region10: #{resblock_enc_forward.6} parent=5 // pred_check_branch
      %116 = sbr.rel (%p113) target = $region12
    $region11: #{resblock_enc_forward.6} parent=5 // pred_region
      %s117 = ssub.s32 %s9, 1
      // Predicated region
      $region13: #{resblock_enc_forward.6} parent=11 // pred_check
        %p118 = pneg %p56
      $region14: #{resblock_enc_forward.6} parent=11 // pred_check_branch
        %120 = sbr.rel (%p118) target = $region16
      $region15: #{resblock_enc_forward.6} parent=11 // pred_region
        _
      $region16: #{resblock_enc_forward.6} parent=11 // pred_fallthru
        _
      // Predicated region
      $region17: #{resblock_enc_forward.6} parent=11 // pred_check
        %p121 = pneg %p77
      $region18: #{resblock_enc_forward.6} parent=11 // pred_check_branch
        %123 = sbr.rel (%p121) target = $region20
      $region19: #{resblock_enc_forward.6} parent=11 // pred_region
        _
      $region20: #{resblock_enc_forward.6} parent=11 // pred_fallthru
        _
    $region12: #{resblock_enc_forward.6} parent=5 // pred_fallthru
      _
    %p124 = scmp.lt.s32.totalorder %s9, 2
    // Predicated region
    $region21: #{resblock_enc_forward.6} parent=5 // pred_check
      %p125 = pneg %p124
    $region22: #{resblock_enc_forward.6} parent=5 // pred_check_branch
      %127 = sbr.rel (%p125) target = $region24
    $region23: #{resblock_enc_forward.6} parent=5 // pred_region
      // Predicated region
      $region25: #{resblock_enc_forward.6} parent=23 // pred_check
        %p128 = pneg %p29
      $region26: #{resblock_enc_forward.6} parent=23 // pred_check_branch
        %130 = sbr.rel (%p128) target = $region28
      $region27: #{resblock_enc_forward.6} parent=23 // pred_region
        %p131 = scmp.lt.s32.totalorder %s9, 1
        %s132 = scalar_select %p131, %s9, 1
        %s133 = smul.addr %s132, 5
        %s134 = smul.addr %s133, 4
        %s135 = scalar_lea.vmem %s0, %s134
      $region28: #{resblock_enc_forward.6} parent=23 // pred_fallthru
        _
    $region24: #{resblock_enc_forward.6} parent=5 // pred_fallthru
      _
    %p136 = scmp.le.s32.totalorder 1, %s9
    %p137 = scmp.lt.s32.totalorder %s9, 3
    %p138 = pnand %p136, %p137
    %p139 = pneg %p138
    // Predicated region
    $region29: #{resblock_enc_forward.6} parent=5 // pred_check
      _
    $region30: #{resblock_enc_forward.6} parent=5 // pred_check_branch
      %141 = sbr.rel (%p138) target = $region32
    $region31: #{resblock_enc_forward.6} parent=5 // pred_region
      %s142 = ssub.s32 %s9, 1
      %p143 = scmp.lt.s32.totalorder %s14, 1
      %s144 = scalar_select %p143, %s14, 1
      %s145 = smul.addr %s144, 5
      %s146 = smul.addr %s145, 4
      %s147 = scalar_lea.vmem %s0, %s146
      %p148 = pneg %p35
      %p149 = pneg %p32
      %p150 = pneg %p56
      %p151 = pneg %p53
      %p152 = pneg %p77
      %p153 = pneg %p74
      %p154 = pneg %p103
      %p155 = pneg %p100
      %p156 = scmp.lt.s32.totalorder %s14, 1
      %s157 = scalar_select %p156, %s14, 1
      %s158 = smul.addr %s157, 8
      %s159 = scalar_lea.vmem %s3, %s158
      %p160 = scmp.lt.s32.totalorder %s14, 1
      %s161 = scalar_select %p160, %s14, 1
      %s162 = smul.addr %s161, 5
      %s163 = smul.addr %s162, 4
      %s164 = scalar_lea.vmem %s0, %s163
      %p165 = scmp.lt.s32.totalorder %s14, 1
      %s166 = scalar_select %p165, %s14, 1
      %s167 = smul.addr %s166, 8
      %s168 = scalar_lea.vmem %s3, %s167
      %v170 = vld [vmem:[%s164] sm:$0xff]
      %v171 = vld [vmem:[%s164 + $0x8] sm:$0xff]
      %v172 = vld [vmem:[%s164 + $0x10] sm:$0xf]
      %v173 = vld [vmem:[%s1] sm:$0xf]
      %s174 = scalar_lea.vmem %s1, 4
      %v175 = vld [vmem:[%s174] sm:$0xf]
      %v178 = vunpack.c.l.b16 %v170
      %v179 = vunpack.c.h.b16 %v170
      %v180 = vunpack.c.l.b16 %v171
      %v181 = vunpack.c.h.b16 %v171
      %v182 = vpack.c.b16 %v178, %v178
      %v183 = vpack.c.b16 %v179, %v179
      %v184 = vpack.c.b16 %v180, %v180
      %v185 = vpack.c.b16 %v181, %v181
      %186 = vrot.lane.b32.xlu0 %v182, 18
      %v187 = vpop.permute.xlu0 %186
      %188 = vrot.lane.b32.xlu0 %v183, 18
      %v189 = vpop.permute.xlu0 %188
      %190 = vrot.lane.b32.xlu0 %v184, 18
      %v191 = vpop.permute.xlu0 %190
      %192 = vrot.lane.b32.xlu0 %v185, 18
      %v193 = vpop.permute.xlu0 %192
      %vm194 = vcmask 146432
      %v195 = vsel %vm194, %v187, %v189
      %v196 = vsel %vm194, %v189, %v191
      %v197 = vsel %vm194, %v191, %v193
      %vm198 = vcmask 64512
      %v200 = vsel %vm198, %v175, 0
      %vm202 = vcmask 1043456
      %v204 = vsel %vm202, %v195, 0
      %v207 = vsel %vm202, %v196, 0
      %v210 = vsel %vm202, %v197, 0
      %212 = vmatprep.subr.bf16.mxu0 %v207
      %213 = vmatpush1.bf16.msra.mxu0 %v204
      %214 = vmatprep.subr.bf16.mxu0 0
      %215 = vmatpush1.bf16.msra.mxu0 0
      %216 = vmatprep.subr.bf16.mxu0 0
      %217 = vmatpush1.bf16.msra.mxu0 0
      %218 = vmatprep.subr.bf16.mxu0 0
      %219 = vmatpush1.bf16.msra.mxu0 0
      %220 = vmatprep.subr.bf16.mxu0 0
      %221 = vmatpush1.bf16.msra.mxu0 0
      %222 = vmatprep.subr.bf16.mxu0 0
      %223 = vmatpush1.bf16.msra.mxu0 0
      %224 = vmatprep.subr.bf16.mxu0 0
      %225 = vmatpush1.bf16.msra.mxu0 0
      %226 = vmatprep.subr.bf16.mxu0 0
      %227 = vmatpush1.bf16.msra.mxu0 0
      %228 = vmatprep.subr.bf16.mxu0 0
      %229 = vmatpush1.bf16.msra.mxu0 0
      %230 = vmatprep.subr.bf16.mxu0 0
      %231 = vmatpush1.bf16.msra.mxu0 0
      %232 = vmatprep.subr.bf16.mxu0 0
      %233 = vmatpush1.bf16.msra.mxu0 0
      %234 = vmatprep.subr.bf16.mxu0 0
      %235 = vmatpush1.bf16.msra.mxu0 0
      %236 = vmatprep.subr.bf16.mxu0 0
      %237 = vmatpush1.bf16.msra.mxu0 0
      %238 = vmatprep.subr.bf16.mxu0 0
      %239 = vmatpush1.bf16.msra.mxu0 0
      %240 = vmatprep.subr.bf16.mxu0 0
      %241 = vmatpush1.bf16.msra.mxu0 0
      %242 = vmatprep.subr.bf16.mxu0 0
      %243 = vmatpush1.bf16.msra.mxu0 0
      %244 = vmatprep.mubr.bf16.mxu0 0
      %245 = vmatmul.mubr.bf16.gmra.mrb[0].mxu0 %v200
      %v246 = vpop.f32.mrb[0].mxu0
      %v247 = vadd.f32 0.0, %v246
      %v248 = vpop.f32.mrb[0].mxu0
      %v249 = vadd.f32 0.0, %v248
      %v250 = vpop.f32.mrb[0].mxu0
      %v251 = vpop.f32.mrb[0].mxu0
      %252 = vdwg.mxu0
      %253 = vmatprep.subr.bf16.mxu0 0
      %254 = vmatpush1.bf16.msra.mxu0 %v210
      %255 = vmatprep.subr.bf16.mxu0 0
      %256 = vmatpush1.bf16.msra.mxu0 0
      %257 = vmatprep.subr.bf16.mxu0 0
      %258 = vmatpush1.bf16.msra.mxu0 0
      %259 = vmatprep.subr.bf16.mxu0 0
      %260 = vmatpush1.bf16.msra.mxu0 0
      %261 = vmatprep.subr.bf16.mxu0 0
      %262 = vmatpush1.bf16.msra.mxu0 0
      %263 = vmatprep.subr.bf16.mxu0 0
      %264 = vmatpush1.bf16.msra.mxu0 0
      %265 = vmatprep.subr.bf16.mxu0 0
      %266 = vmatpush1.bf16.msra.mxu0 0
      %267 = vmatprep.subr.bf16.mxu0 0
      %268 = vmatpush1.bf16.msra.mxu0 0
      %269 = vmatprep.subr.bf16.mxu0 0
      %270 = vmatpush1.bf16.msra.mxu0 0
      %271 = vmatprep.subr.bf16.mxu0 0
      %272 = vmatpush1.bf16.msra.mxu0 0
      %273 = vmatprep.subr.bf16.mxu0 0
      %274 = vmatpush1.bf16.msra.mxu0 0
      %275 = vmatprep.subr.bf16.mxu0 0
      %276 = vmatpush1.bf16.msra.mxu0 0
      %277 = vmatprep.subr.bf16.mxu0 0
      %278 = vmatpush1.bf16.msra.mxu0 0
      %279 = vmatprep.subr.bf16.mxu0 0
      %280 = vmatpush1.bf16.msra.mxu0 0
      %281 = vmatprep.subr.bf16.mxu0 0
      %282 = vmatpush1.bf16.msra.mxu0 0
      %283 = vmatprep.subr.bf16.mxu0 0
      %284 = vmatpush1.bf16.msra.mxu0 0
      %285 = vmatprep.mubr.bf16.mxu0 0
      %286 = vmatmul.mubr.bf16.gmra.mrb[0].mxu0 %v200
      %v287 = vpop.f32.mrb[0].mxu0
      %v288 = vadd.f32 0.0, %v287
      %v289 = vpop.f32.mrb[0].mxu0
      %v290 = vpop.f32.mrb[0].mxu0
      %v291 = vpop.f32.mrb[0].mxu0
      %292 = vdwg.mxu0
      %293 = vrot.lane.b32.xlu0 %v182, 19
      %v294 = vpop.permute.xlu0 %293
      %295 = vrot.lane.b32.xlu0 %v183, 19
      %v296 = vpop.permute.xlu0 %295
      %297 = vrot.lane.b32.xlu0 %v184, 19
      %v298 = vpop.permute.xlu0 %297
      %299 = vrot.lane.b32.xlu0 %v185, 19
      %v300 = vpop.permute.xlu0 %299
      %vm301 = vcmask 154624
      %v302 = vsel %vm301, %v294, %v296
      %v303 = vsel %vm301, %v296, %v298
      %v304 = vsel %vm301, %v298, %v300
      %v306 = vsel %vm198, %v173, 0
      %v309 = vsel %vm202, %v302, 0
      %v312 = vsel %vm202, %v303, 0
      %v315 = vsel %vm202, %v304, 0
      %317 = vmatprep.subr.bf16.mxu0 %v312
      %318 = vmatpush1.bf16.msra.mxu0 %v309
      %319 = vmatprep.subr.bf16.mxu0 0
      %320 = vmatpush1.bf16.msra.mxu0 0
      %321 = vmatprep.subr.bf16.mxu0 0
      %322 = vmatpush1.bf16.msra.mxu0 0
      %323 = vmatprep.subr.bf16.mxu0 0
      %324 = vmatpush1.bf16.msra.mxu0 0
      %325 = vmatprep.subr.bf16.mxu0 0
      %326 = vmatpush1.bf16.msra.mxu0 0
      %327 = vmatprep.subr.bf16.mxu0 0
      %328 = vmatpush1.bf16.msra.mxu0 0
      %329 = vmatprep.subr.bf16.mxu0 0
      %330 = vmatpush1.bf16.msra.mxu0 0
      %331 = vmatprep.subr.bf16.mxu0 0
      %332 = vmatpush1.bf16.msra.mxu0 0
      %333 = vmatprep.subr.bf16.mxu0 0
      %334 = vmatpush1.bf16.msra.mxu0 0
      %335 = vmatprep.subr.bf16.mxu0 0
      %336 = vmatpush1.bf16.msra.mxu0 0
      %337 = vmatprep.subr.bf16.mxu0 0
      %338 = vmatpush1.bf16.msra.mxu0 0
      %339 = vmatprep.subr.bf16.mxu0 0
      %340 = vmatpush1.bf16.msra.mxu0 0
      %341 = vmatprep.subr.bf16.mxu0 0
      %342 = vmatpush1.bf16.msra.mxu0 0
      %343 = vmatprep.subr.bf16.mxu0 0
      %344 = vmatpush1.bf16.msra.mxu0 0
      %345 = vmatprep.subr.bf16.mxu0 0
      %346 = vmatpush1.bf16.msra.mxu0 0
      %347 = vmatprep.subr.bf16.mxu0 0
      %348 = vmatpush1.bf16.msra.mxu0 0
      %349 = vmatprep.mubr.bf16.mxu0 0
      %350 = vmatmul.mubr.bf16.gmra.mrb[0].mxu0 %v306
      %v351 = vpop.f32.mrb[0].mxu0
      %v352 = vadd.f32 %v247, %v351
      %v353 = vpop.f32.mrb[0].mxu0
      %v354 = vadd.f32 %v249, %v353
      %v355 = vpop.f32.mrb[0].mxu0
      %v356 = vpop.f32.mrb[0].mxu0
      %357 = vdwg.mxu0
      %358 = vmatprep.subr.bf16.mxu0 0
      %359 = vmatpush1.bf16.msra.mxu0 %v315
      %360 = vmatprep.subr.bf16.mxu0 0
      %361 = vmatpush1.bf16.msra.mxu0 0
      %362 = vmatprep.subr.bf16.mxu0 0
      %363 = vmatpush1.bf16.msra.mxu0 0
      %364 = vmatprep.subr.bf16.mxu0 0
      %365 = vmatpush1.bf16.msra.mxu0 0
      %366 = vmatprep.subr.bf16.mxu0 0
      %367 = vmatpush1.bf16.msra.mxu0 0
      %368 = vmatprep.subr.bf16.mxu0 0
      %369 = vmatpush1.bf16.msra.mxu0 0
      %370 = vmatprep.subr.bf16.mxu0 0
      %371 = vmatpush1.bf16.msra.mxu0 0
      %372 = vmatprep.subr.bf16.mxu0 0
      %373 = vmatpush1.bf16.msra.mxu0 0
      %374 = vmatprep.subr.bf16.mxu0 0
      %375 = vmatpush1.bf16.msra.mxu0 0
      %376 = vmatprep.subr.bf16.mxu0 0
      %377 = vmatpush1.bf16.msra.mxu0 0
      %378 = vmatprep.subr.bf16.mxu0 0
      %379 = vmatpush1.bf16.msra.mxu0 0
      %380 = vmatprep.subr.bf16.mxu0 0
      %381 = vmatpush1.bf16.msra.mxu0 0
      %382 = vmatprep.subr.bf16.mxu0 0
      %383 = vmatpush1.bf16.msra.mxu0 0
      %384 = vmatprep.subr.bf16.mxu0 0
      %385 = vmatpush1.bf16.msra.mxu0 0
      %386 = vmatprep.subr.bf16.mxu0 0
      %387 = vmatpush1.bf16.msra.mxu0 0
      %388 = vmatprep.subr.bf16.mxu0 0
      %389 = vmatpush1.bf16.msra.mxu0 0
      %390 = vmatprep.mubr.bf16.mxu0 0
      %391 = vmatmul.mubr.bf16.gmra.mrb[0].mxu0 %v306
      %v392 = vpop.f32.mrb[0].mxu0
      %v393 = vadd.f32 %v288, %v392
      %v394 = vpop.f32.mrb[0].mxu0
      %v395 = vpop.f32.mrb[0].mxu0
      %v396 = vpop.f32.mrb[0].mxu0
      %397 = vdwg.mxu0
      %s398 = scalar_lea.vmem %s1, 8
      %v399 = vld [vmem:[%s398] sm:$0xf]
      %400 = vrot.lane.b32.xlu0 %v182, 1
      %v401 = vpop.permute.xlu0 %400
      %402 = vrot.lane.b32.xlu0 %v183, 1
      %v403 = vpop.permute.xlu0 %402
      %404 = vrot.lane.b32.xlu0 %v184, 1
      %v405 = vpop.permute.xlu0 %404
      %406 = vrot.lane.b32.xlu0 %v185, 1
      %v407 = vpop.permute.xlu0 %406
      %vm408 = vcmask 7168
      %v409 = vsel %vm408, %v401, %v403
      %v410 = vsel %vm408, %v403, %v405
      %v411 = vsel %vm408, %v405, %v407
      %v413 = vsel %vm198, %v399, 0
      %v416 = vsel %vm202, %v409, 0
      %v419 = vsel %vm202, %v410, 0
      %v422 = vsel %vm202, %v411, 0
      %424 = vmatprep.subr.bf16.mxu0 %v419
      %425 = vmatpush1.bf16.msra.mxu0 %v416
      %426 = vmatprep.subr.bf16.mxu0 0
      %427 = vmatpush1.bf16.msra.mxu0 0
      %428 = vmatprep.subr.bf16.mxu0 0
      %429 = vmatpush1.bf16.msra.mxu0 0
      %430 = vmatprep.subr.bf16.mxu0 0
      %431 = vmatpush1.bf16.msra.mxu0 0
      %432 = vmatprep.subr.bf16.mxu0 0
      %433 = vmatpush1.bf16.msra.mxu0 0
      %434 = vmatprep.subr.bf16.mxu0 0
      %435 = vmatpush1.bf16.msra.mxu0 0
      %436 = vmatprep.subr.bf16.mxu0 0
      %437 = vmatpush1.bf16.msra.mxu0 0
      %438 = vmatprep.subr.bf16.mxu0 0
      %439 = vmatpush1.bf16.msra.mxu0 0
      %440 = vmatprep.subr.bf16.mxu0 0
      %441 = vmatpush1.bf16.msra.mxu0 0
      %442 = vmatprep.subr.bf16.mxu0 0
      %443 = vmatpush1.bf16.msra.mxu0 0
      %444 = vmatprep.subr.bf16.mxu0 0
      %445 = vmatpush1.bf16.msra.mxu0 0
      %446 = vmatprep.subr.bf16.mxu0 0
      %447 = vmatpush1.bf16.msra.mxu0 0
      %448 = vmatprep.subr.bf16.mxu0 0
      %449 = vmatpush1.bf16.msra.mxu0 0
      %450 = vmatprep.subr.bf16.mxu0 0
      %451 = vmatpush1.bf16.msra.mxu0 0
      %452 = vmatprep.subr.bf16.mxu0 0
      %453 = vmatpush1.bf16.msra.mxu0 0
      %454 = vmatprep.subr.bf16.mxu0 0
      %455 = vmatpush1.bf16.msra.mxu0 0
      %456 = vmatprep.mubr.bf16.mxu0 0
      %457 = vmatmul.mubr.bf16.gmra.mrb[0].mxu0 %v413
      %v458 = vpop.f32.mrb[0].mxu0
      %v459 = vadd.f32 0.0, %v458
      %v460 = vpop.f32.mrb[0].mxu0
      %v461 = vadd.f32 0.0, %v460
      %v462 = vpop.f32.mrb[0].mxu0
      %v463 = vpop.f32.mrb[0].mxu0
      %464 = vdwg.mxu0
      %465 = vmatprep.subr.bf16.mxu0 0
      %466 = vmatpush1.bf16.msra.mxu0 %v422
      %467 = vmatprep.subr.bf16.mxu0 0
      %468 = vmatpush1.bf16.msra.mxu0 0
      %469 = vmatprep.subr.bf16.mxu0 0
      %470 = vmatpush1.bf16.msra.mxu0 0
      %471 = vmatprep.subr.bf16.mxu0 0
      %472 = vmatpush1.bf16.msra.mxu0 0
      %473 = vmatprep.subr.bf16.mxu0 0
      %474 = vmatpush1.bf16.msra.mxu0 0
      %475 = vmatprep.subr.bf16.mxu0 0
      %476 = vmatpush1.bf16.msra.mxu0 0
      %477 = vmatprep.subr.bf16.mxu0 0
      %478 = vmatpush1.bf16.msra.mxu0 0
      %479 = vmatprep.subr.bf16.mxu0 0
      %480 = vmatpush1.bf16.msra.mxu0 0
      %481 = vmatprep.subr.bf16.mxu0 0
      %482 = vmatpush1.bf16.msra.mxu0 0
      %483 = vmatprep.subr.bf16.mxu0 0
      %484 = vmatpush1.bf16.msra.mxu0 0
      %485 = vmatprep.subr.bf16.mxu0 0
      %486 = vmatpush1.bf16.msra.mxu0 0
      %487 = vmatprep.subr.bf16.mxu0 0
      %488 = vmatpush1.bf16.msra.mxu0 0
      %489 = vmatprep.subr.bf16.mxu0 0
      %490 = vmatpush1.bf16.msra.mxu0 0
      %491 = vmatprep.subr.bf16.mxu0 0
      %492 = vmatpush1.bf16.msra.mxu0 0
      %493 = vmatprep.subr.bf16.mxu0 0
      %494 = vmatpush1.bf16.msra.mxu0 0
      %495 = vmatprep.subr.bf16.mxu0 0
      %496 = vmatpush1.bf16.msra.mxu0 0
      %497 = vmatprep.mubr.bf16.mxu0 0
      %498 = vmatmul.mubr.bf16.gmra.mrb[0].mxu0 %v413
      %v499 = vpop.f32.mrb[0].mxu0
      %v500 = vadd.f32 0.0, %v499
      %v501 = vpop.f32.mrb[0].mxu0
      %v502 = vpop.f32.mrb[0].mxu0
      %v503 = vpop.f32.mrb[0].mxu0
      %504 = vdwg.mxu0
      %v505 = vadd.f32 %v352, %v459
      %v506 = vadd.f32 %v354, %v461
      %v507 = vadd.f32 %v393, %v500
      %s508 = scalar_lea.vmem %s1, 12
      %v509 = vld [vmem:[%s508] sm:$0xf]
      %v511 = vsel %vm198, %v509, 0
      %v514 = vsel %vm202, %v183, 0
      %v517 = vsel %vm202, %v184, 0
      %v520 = vsel %vm202, %v185, 0
      %522 = vmatprep.subr.bf16.mxu0 %v517
      %523 = vmatpush1.bf16.msra.mxu0 %v514
      %524 = vmatprep.subr.bf16.mxu0 0
      %525 = vmatpush1.bf16.msra.mxu0 0
      %526 = vmatprep.subr.bf16.mxu0 0
      %527 = vmatpush1.bf16.msra.mxu0 0
      %528 = vmatprep.subr.bf16.mxu0 0
      %529 = vmatpush1.bf16.msra.mxu0 0
      %530 = vmatprep.subr.bf16.mxu0 0
      %531 = vmatpush1.bf16.msra.mxu0 0
      %532 = vmatprep.subr.bf16.mxu0 0
      %533 = vmatpush1.bf16.msra.mxu0 0
      %534 = vmatprep.subr.bf16.mxu0 0
      %535 = vmatpush1.bf16.msra.mxu0 0
      %536 = vmatprep.subr.bf16.mxu0 0
      %537 = vmatpush1.bf16.msra.mxu0 0
      %538 = vmatprep.subr.bf16.mxu0 0
      %539 = vmatpush1.bf16.msra.mxu0 0
      %540 = vmatprep.subr.bf16.mxu0 0
      %541 = vmatpush1.bf16.msra.mxu0 0
      %542 = vmatprep.subr.bf16.mxu0 0
      %543 = vmatpush1.bf16.msra.mxu0 0
      %544 = vmatprep.subr.bf16.mxu0 0
      %545 = vmatpush1.bf16.msra.mxu0 0
      %546 = vmatprep.subr.bf16.mxu0 0
      %547 = vmatpush1.bf16.msra.mxu0 0
      %548 = vmatprep.subr.bf16.mxu0 0
      %549 = vmatpush1.bf16.msra.mxu0 0
      %550 = vmatprep.subr.bf16.mxu0 0
      %551 = vmatpush1.bf16.msra.mxu0 0
      %552 = vmatprep.subr.bf16.mxu0 0
      %553 = vmatpush1.bf16.msra.mxu0 0
      %554 = vmatprep.mubr.bf16.mxu0 0
      %555 = vmatmul.mubr.bf16.gmra.mrb[0].mxu0 %v511
      %v556 = vpop.f32.mrb[0].mxu0
      %v557 = vadd.f32 0.0, %v556
      %v558 = vpop.f32.mrb[0].mxu0
      %v559 = vadd.f32 0.0, %v558
      %v560 = vpop.f32.mrb[0].mxu0
      %v561 = vpop.f32.mrb[0].mxu0
      %562 = vdwg.mxu0
      %563 = vmatprep.subr.bf16.mxu0 0
      %564 = vmatpush1.bf16.msra.mxu0 %v520
      %565 = vmatprep.subr.bf16.mxu0 0
      %566 = vmatpush1.bf16.msra.mxu0 0
      %567 = vmatprep.subr.bf16.mxu0 0
      %568 = vmatpush1.bf16.msra.mxu0 0
      %569 = vmatprep.subr.bf16.mxu0 0
      %570 = vmatpush1.bf16.msra.mxu0 0
      %571 = vmatprep.subr.bf16.mxu0 0
      %572 = vmatpush1.bf16.msra.mxu0 0
      %573 = vmatprep.subr.bf16.mxu0 0
      %574 = vmatpush1.bf16.msra.mxu0 0
      %575 = vmatprep.subr.bf16.mxu0 0
      %576 = vmatpush1.bf16.msra.mxu0 0
      %577 = vmatprep.subr.bf16.mxu0 0
      %578 = vmatpush1.bf16.msra.mxu0 0
      %579 = vmatprep.subr.bf16.mxu0 0
      %580 = vmatpush1.bf16.msra.mxu0 0
      %581 = vmatprep.subr.bf16.mxu0 0
      %582 = vmatpush1.bf16.msra.mxu0 0
      %583 = vmatprep.subr.bf16.mxu0 0
      %584 = vmatpush1.bf16.msra.mxu0 0
      %585 = vmatprep.subr.bf16.mxu0 0
      %586 = vmatpush1.bf16.msra.mxu0 0
      %587 = vmatprep.subr.bf16.mxu0 0
      %588 = vmatpush1.bf16.msra.mxu0 0
      %589 = vmatprep.subr.bf16.mxu0 0
      %590 = vmatpush1.bf16.msra.mxu0 0
      %591 = vmatprep.subr.bf16.mxu0 0
      %592 = vmatpush1.bf16.msra.mxu0 0
      %593 = vmatprep.subr.bf16.mxu0 0
      %594 = vmatpush1.bf16.msra.mxu0 0
      %595 = vmatprep.mubr.bf16.mxu0 0
      %596 = vmatmul.mubr.bf16.gmra.mrb[0].mxu0 %v511
      %v597 = vpop.f32.mrb[0].mxu0
      %v598 = vadd.f32 0.0, %v597
      %v599 = vpop.f32.mrb[0].mxu0
      %v600 = vpop.f32.mrb[0].mxu0
      %v601 = vpop.f32.mrb[0].mxu0
      %602 = vdwg.mxu0
      %v603 = vadd.f32 %v505, %v557
      %v604 = vadd.f32 %v506, %v559
      %v605 = vadd.f32 %v507, %v598
      %s606 = scalar_lea.vmem %s1, 16
      %v607 = vld [vmem:[%s606] sm:$0xf]
      %v609 = vunpack.c.l.b16 %v172
      %v610 = vpack.c.b16 %v609, %v609
      %611 = vrot.lane.b32.xlu0 %v183, 127
      %v612 = vpop.permute.xlu0 %611
      %613 = vrot.lane.b32.xlu0 %v184, 127
      %v614 = vpop.permute.xlu0 %613
      %615 = vrot.lane.b32.xlu0 %v185, 127
      %v616 = vpop.permute.xlu0 %615
      %617 = vrot.lane.b32.xlu0 %v610, 127
      %v618 = vpop.permute.xlu0 %617
      %vm619 = vcmask 1039360
      %v620 = vsel %vm619, %v612, %v614
      %v621 = vsel %vm619, %v614, %v616
      %v622 = vsel %vm619, %v616, %v618
      %v624 = vsel %vm198, %v607, 0
      %v627 = vsel %vm202, %v620, 0
      %v630 = vsel %vm202, %v621, 0
      %v633 = vsel %vm202, %v622, 0
      %635 = vmatprep.subr.bf16.mxu0 %v630
      %636 = vmatpush1.bf16.msra.mxu0 %v627
      %637 = vmatprep.subr.bf16.mxu0 0
      %638 = vmatpush1.bf16.msra.mxu0 0
      %639 = vmatprep.subr.bf16.mxu0 0
      %640 = vmatpush1.bf16.msra.mxu0 0
      %641 = vmatprep.subr.bf16.mxu0 0
      %642 = vmatpush1.bf16.msra.mxu0 0
      %643 = vmatprep.subr.bf16.mxu0 0
      %644 = vmatpush1.bf16.msra.mxu0 0
      %645 = vmatprep.subr.bf16.mxu0 0
      %646 = vmatpush1.bf16.msra.mxu0 0
      %647 = vmatprep.subr.bf16.mxu0 0
      %648 = vmatpush1.bf16.msra.mxu0 0
      %649 = vmatprep.subr.bf16.mxu0 0
      %650 = vmatpush1.bf16.msra.mxu0 0
      %651 = vmatprep.subr.bf16.mxu0 0
      %652 = vmatpush1.bf16.msra.mxu0 0
      %653 = vmatprep.subr.bf16.mxu0 0
      %654 = vmatpush1.bf16.msra.mxu0 0
      %655 = vmatprep.subr.bf16.mxu0 0
      %656 = vmatpush1.bf16.msra.mxu0 0
      %657 = vmatprep.subr.bf16.mxu0 0
      %658 = vmatpush1.bf16.msra.mxu0 0
      %659 = vmatprep.subr.bf16.mxu0 0
      %660 = vmatpush1.bf16.msra.mxu0 0
      %661 = vmatprep.subr.bf16.mxu0 0
      %662 = vmatpush1.bf16.msra.mxu0 0
      %663 = vmatprep.subr.bf16.mxu0 0
      %664 = vmatpush1.bf16.msra.mxu0 0
      %665 = vmatprep.subr.bf16.mxu0 0
      %666 = vmatpush1.bf16.msra.mxu0 0
      %667 = vmatprep.mubr.bf16.mxu0 0
      %668 = vmatmul.mubr.bf16.gmra.mrb[0].mxu0 %v624
      %v669 = vpop.f32.mrb[0].mxu0
      %v670 = vadd.f32 0.0, %v669
      %v671 = vpop.f32.mrb[0].mxu0
      %v672 = vadd.f32 0.0, %v671
      %v673 = vpop.f32.mrb[0].mxu0
      %v674 = vpop.f32.mrb[0].mxu0
      %675 = vdwg.mxu0
      %676 = vmatprep.subr.bf16.mxu0 0
      %677 = vmatpush1.bf16.msra.mxu0 %v633
      %678 = vmatprep.subr.bf16.mxu0 0
      %679 = vmatpush1.bf16.msra.mxu0 0
      %680 = vmatprep.subr.bf16.mxu0 0
      %681 = vmatpush1.bf16.msra.mxu0 0
      %682 = vmatprep.subr.bf16.mxu0 0
      %683 = vmatpush1.bf16.msra.mxu0 0
      %684 = vmatprep.subr.bf16.mxu0 0
      %685 = vmatpush1.bf16.msra.mxu0 0
      %686 = vmatprep.subr.bf16.mxu0 0
      %687 = vmatpush1.bf16.msra.mxu0 0
      %688 = vmatprep.subr.bf16.mxu0 0
      %689 = vmatpush1.bf16.msra.mxu0 0
      %690 = vmatprep.subr.bf16.mxu0 0
      %691 = vmatpush1.bf16.msra.mxu0 0
      %692 = vmatprep.subr.bf16.mxu0 0
      %693 = vmatpush1.bf16.msra.mxu0 0
      %694 = vmatprep.subr.bf16.mxu0 0
      %695 = vmatpush1.bf16.msra.mxu0 0
      %696 = vmatprep.subr.bf16.mxu0 0
      %697 = vmatpush1.bf16.msra.mxu0 0
      %698 = vmatprep.subr.bf16.mxu0 0
      %699 = vmatpush1.bf16.msra.mxu0 0
      %700 = vmatprep.subr.bf16.mxu0 0
      %701 = vmatpush1.bf16.msra.mxu0 0
      %702 = vmatprep.subr.bf16.mxu0 0
      %703 = vmatpush1.bf16.msra.mxu0 0
      %704 = vmatprep.subr.bf16.mxu0 0
      %705 = vmatpush1.bf16.msra.mxu0 0
      %706 = vmatprep.subr.bf16.mxu0 0
      %707 = vmatpush1.bf16.msra.mxu0 0
      %708 = vmatprep.mubr.bf16.mxu0 0
      %709 = vmatmul.mubr.bf16.gmra.mrb[0].mxu0 %v624
      %v710 = vpop.f32.mrb[0].mxu0
      %v711 = vadd.f32 0.0, %v710
      %v712 = vpop.f32.mrb[0].mxu0
      %v713 = vpop.f32.mrb[0].mxu0
      %v714 = vpop.f32.mrb[0].mxu0
      %715 = vdwg.mxu0
      %v716 = vadd.f32 %v603, %v670
      %v717 = vadd.f32 %v604, %v672
      %v718 = vadd.f32 %v605, %v711
      %s719 = scalar_lea.vmem %s1, 20
      %v720 = vld [vmem:[%s719] sm:$0xf]
      %721 = vrot.lane.b32.xlu0 %v183, 110
      %v722 = vpop.permute.xlu0 %721
      %723 = vrot.lane.b32.xlu0 %v184, 110
      %v724 = vpop.permute.xlu0 %723
      %725 = vrot.lane.b32.xlu0 %v185, 110
      %v726 = vpop.permute.xlu0 %725
      %727 = vrot.lane.b32.xlu0 %v610, 110
      %v728 = vpop.permute.xlu0 %727
      %vm729 = vcmask 900096
      %v730 = vsel %vm729, %v722, %v724
      %v731 = vsel %vm729, %v724, %v726
      %v732 = vsel %vm729, %v726, %v728
      %v734 = vsel %vm198, %v720, 0
      %v737 = vsel %vm202, %v730, 0
      %v740 = vsel %vm202, %v731, 0
      %v743 = vsel %vm202, %v732, 0
      %745 = vmatprep.subr.bf16.mxu0 %v740
      %746 = vmatpush1.bf16.msra.mxu0 %v737
      %747 = vmatprep.subr.bf16.mxu0 0
      %748 = vmatpush1.bf16.msra.mxu0 0
      %749 = vmatprep.subr.bf16.mxu0 0
      %750 = vmatpush1.bf16.msra.mxu0 0
      %751 = vmatprep.subr.bf16.mxu0 0
      %752 = vmatpush1.bf16.msra.mxu0 0
      %753 = vmatprep.subr.bf16.mxu0 0
      %754 = vmatpush1.bf16.msra.mxu0 0
      %755 = vmatprep.subr.bf16.mxu0 0
      %756 = vmatpush1.bf16.msra.mxu0 0
      %757 = vmatprep.subr.bf16.mxu0 0
      %758 = vmatpush1.bf16.msra.mxu0 0
      %759 = vmatprep.subr.bf16.mxu0 0
      %760 = vmatpush1.bf16.msra.mxu0 0
      %761 = vmatprep.subr.bf16.mxu0 0
      %762 = vmatpush1.bf16.msra.mxu0 0
      %763 = vmatprep.subr.bf16.mxu0 0
      %764 = vmatpush1.bf16.msra.mxu0 0
      %765 = vmatprep.subr.bf16.mxu0 0
      %766 = vmatpush1.bf16.msra.mxu0 0
      %767 = vmatprep.subr.bf16.mxu0 0
      %768 = vmatpush1.bf16.msra.mxu0 0
      %769 = vmatprep.subr.bf16.mxu0 0
      %770 = vmatpush1.bf16.msra.mxu0 0
      %771 = vmatprep.subr.bf16.mxu0 0
      %772 = vmatpush1.bf16.msra.mxu0 0
      %773 = vmatprep.subr.bf16.mxu0 0
      %774 = vmatpush1.bf16.msra.mxu0 0
      %775 = vmatprep.subr.bf16.mxu0 0
      %776 = vmatpush1.bf16.msra.mxu0 0
      %777 = vmatprep.mubr.bf16.mxu0 0
      %778 = vmatmul.mubr.bf16.gmra.mrb[0].mxu0 %v734
      %v779 = vpop.f32.mrb[0].mxu0
      %v780 = vadd.f32 0.0, %v779
      %v781 = vpop.f32.mrb[0].mxu0
      %v782 = vadd.f32 0.0, %v781
      %v783 = vpop.f32.mrb[0].mxu0
      %v784 = vpop.f32.mrb[0].mxu0
      %785 = vdwg.mxu0
      %786 = vmatprep.subr.bf16.mxu0 0
      %787 = vmatpush1.bf16.msra.mxu0 %v743
      %788 = vmatprep.subr.bf16.mxu0 0
      %789 = vmatpush1.bf16.msra.mxu0 0
      %790 = vmatprep.subr.bf16.mxu0 0
      %791 = vmatpush1.bf16.msra.mxu0 0
      %792 = vmatprep.subr.bf16.mxu0 0
      %793 = vmatpush1.bf16.msra.mxu0 0
      %794 = vmatprep.subr.bf16.mxu0 0
      %795 = vmatpush1.bf16.msra.mxu0 0
      %796 = vmatprep.subr.bf16.mxu0 0
      %797 = vmatpush1.bf16.msra.mxu0 0
      %798 = vmatprep.subr.bf16.mxu0 0
      %799 = vmatpush1.bf16.msra.mxu0 0
      %800 = vmatprep.subr.bf16.mxu0 0
      %801 = vmatpush1.bf16.msra.mxu0 0
      %802 = vmatprep.subr.bf16.mxu0 0
      %803 = vmatpush1.bf16.msra.mxu0 0
      %804 = vmatprep.subr.bf16.mxu0 0
      %805 = vmatpush1.bf16.msra.mxu0 0
      %806 = vmatprep.subr.bf16.mxu0 0
      %807 = vmatpush1.bf16.msra.mxu0 0
      %808 = vmatprep.subr.bf16.mxu0 0
      %809 = vmatpush1.bf16.msra.mxu0 0
      %810 = vmatprep.subr.bf16.mxu0 0
      %811 = vmatpush1.bf16.msra.mxu0 0
      %812 = vmatprep.subr.bf16.mxu0 0
      %813 = vmatpush1.bf16.msra.mxu0 0
      %814 = vmatprep.subr.bf16.mxu0 0
      %815 = vmatpush1.bf16.msra.mxu0 0
      %816 = vmatprep.subr.bf16.mxu0 0
      %817 = vmatpush1.bf16.msra.mxu0 0
      %818 = vmatprep.mubr.bf16.mxu0 0
      %819 = vmatmul.mubr.bf16.gmra.mrb[0].mxu0 %v734
      %v820 = vpop.f32.mrb[0].mxu0
      %v821 = vadd.f32 0.0, %v820
      %v822 = vpop.f32.mrb[0].mxu0
      %v823 = vpop.f32.mrb[0].mxu0
      %v824 = vpop.f32.mrb[0].mxu0
      %825 = vdwg.mxu0
      %v826 = vadd.f32 %v716, %v780
      %v827 = vadd.f32 %v717, %v782
      %v828 = vadd.f32 %v718, %v821
      %s829 = scalar_lea.vmem %s1, 24
      %v830 = vld [vmem:[%s829] sm:$0xf]
      %831 = vrot.lane.b32.xlu0 %v183, 109
      %v832 = vpop.permute.xlu0 %831
      %833 = vrot.lane.b32.xlu0 %v184, 109
      %v834 = vpop.permute.xlu0 %833
      %835 = vrot.lane.b32.xlu0 %v185, 109
      %v836 = vpop.permute.xlu0 %835
      %837 = vrot.lane.b32.xlu0 %v610, 109
      %v838 = vpop.permute.xlu0 %837
      %vm839 = vcmask 891904
      %v840 = vsel %vm839, %v832, %v834
      %v841 = vsel %vm839, %v834, %v836
      %v842 = vsel %vm839, %v836, %v838
      %v844 = vsel %vm198, %v830, 0
      %v847 = vsel %vm202, %v840, 0
      %v850 = vsel %vm202, %v841, 0
      %v853 = vsel %vm202, %v842, 0
      %855 = vmatprep.subr.bf16.mxu0 %v850
      %856 = vmatpush1.bf16.msra.mxu0 %v847
      %857 = vmatprep.subr.bf16.mxu0 0
      %858 = vmatpush1.bf16.msra.mxu0 0
      %859 = vmatprep.subr.bf16.mxu0 0
      %860 = vmatpush1.bf16.msra.mxu0 0
      %861 = vmatprep.subr.bf16.mxu0 0
      %862 = vmatpush1.bf16.msra.mxu0 0
      %863 = vmatprep.subr.bf16.mxu0 0
      %864 = vmatpush1.bf16.msra.mxu0 0
      %865 = vmatprep.subr.bf16.mxu0 0
      %866 = vmatpush1.bf16.msra.mxu0 0
      %867 = vmatprep.subr.bf16.mxu0 0
      %868 = vmatpush1.bf16.msra.mxu0 0
      %869 = vmatprep.subr.bf16.mxu0 0
      %870 = vmatpush1.bf16.msra.mxu0 0
      %871 = vmatprep.subr.bf16.mxu0 0
      %872 = vmatpush1.bf16.msra.mxu0 0
      %873 = vmatprep.subr.bf16.mxu0 0
      %874 = vmatpush1.bf16.msra.mxu0 0
      %875 = vmatprep.subr.bf16.mxu0 0
      %876 = vmatpush1.bf16.msra.mxu0 0
      %877 = vmatprep.subr.bf16.mxu0 0
      %878 = vmatpush1.bf16.msra.mxu0 0
      %879 = vmatprep.subr.bf16.mxu0 0
      %880 = vmatpush1.bf16.msra.mxu0 0
      %881 = vmatprep.subr.bf16.mxu0 0
      %882 = vmatpush1.bf16.msra.mxu0 0
      %883 = vmatprep.subr.bf16.mxu0 0
      %884 = vmatpush1.bf16.msra.mxu0 0
      %885 = vmatprep.subr.bf16.mxu0 0
      %886 = vmatpush1.bf16.msra.mxu0 0
      %887 = vmatprep.mubr.bf16.mxu0 0
      %888 = vmatmul.mubr.bf16.gmra.mrb[0].mxu0 %v844
      %v889 = vpop.f32.mrb[0].mxu0
      %v890 = vadd.f32 0.0, %v889
      %v891 = vpop.f32.mrb[0].mxu0
      %v892 = vadd.f32 0.0, %v891
      %v893 = vpop.f32.mrb[0].mxu0
      %v894 = vpop.f32.mrb[0].mxu0
      %895 = vdwg.mxu0
      %896 = vmatprep.subr.bf16.mxu0 0
      %897 = vmatpush1.bf16.msra.mxu0 %v853
      %898 = vmatprep.subr.bf16.mxu0 0
      %899 = vmatpush1.bf16.msra.mxu0 0
      %900 = vmatprep.subr.bf16.mxu0 0
      %901 = vmatpush1.bf16.msra.mxu0 0
      %902 = vmatprep.subr.bf16.mxu0 0
      %903 = vmatpush1.bf16.msra.mxu0 0
      %904 = vmatprep.subr.bf16.mxu0 0
      %905 = vmatpush1.bf16.msra.mxu0 0
      %906 = vmatprep.subr.bf16.mxu0 0
      %907 = vmatpush1.bf16.msra.mxu0 0
      %908 = vmatprep.subr.bf16.mxu0 0
      %909 = vmatpush1.bf16.msra.mxu0 0
      %910 = vmatprep.subr.bf16.mxu0 0
      %911 = vmatpush1.bf16.msra.mxu0 0
      %912 = vmatprep.subr.bf16.mxu0 0
      %913 = vmatpush1.bf16.msra.mxu0 0
      %914 = vmatprep.subr.bf16.mxu0 0
      %915 = vmatpush1.bf16.msra.mxu0 0
      %916 = vmatprep.subr.bf16.mxu0 0
      %917 = vmatpush1.bf16.msra.mxu0 0
      %918 = vmatprep.subr.bf16.mxu0 0
      %919 = vmatpush1.bf16.msra.mxu0 0
      %920 = vmatprep.subr.bf16.mxu0 0
      %921 = vmatpush1.bf16.msra.mxu0 0
      %922 = vmatprep.subr.bf16.mxu0 0
      %923 = vmatpush1.bf16.msra.mxu0 0
      %924 = vmatprep.subr.bf16.mxu0 0
      %925 = vmatpush1.bf16.msra.mxu0 0
      %926 = vmatprep.subr.bf16.mxu0 0
      %927 = vmatpush1.bf16.msra.mxu0 0
      %928 = vmatprep.mubr.bf16.mxu0 0
      %929 = vmatmul.mubr.bf16.gmra.mrb[0].mxu0 %v844
      %v930 = vpop.f32.mrb[0].mxu0
      %v931 = vadd.f32 0.0, %v930
      %v932 = vpop.f32.mrb[0].mxu0
      %v933 = vpop.f32.mrb[0].mxu0
      %v934 = vpop.f32.mrb[0].mxu0
      %935 = vdwg.mxu0
      %v936 = vadd.f32 %v826, %v890
      %v937 = vadd.f32 %v827, %v892
      %v938 = vadd.f32 %v828, %v931
      %v939 = vld [vmem:[%s2] sm:$0x7]
      %v941 = vlaneseq
      %v942 = vshrl.u32 %v941, 7
      %v943 = vsub.s32 0, %v942
      %v944 = vrot.slane %v939, %v943
      %v945 = vlaneseq
      %v946 = vshrl.u32 %v945, 7
      %v947 = vsub.s32 1, %v946
      %v948 = vrot.slane %v939, %v947
      %v949 = vlaneseq
      %v950 = vshrl.u32 %v949, 7
      %v951 = vsub.s32 2, %v950
      %v952 = vrot.slane %v939, %v951
      %v956 = vmul.f32 %v936, %v944
      %v957 = vmul.f32 %v937, %v948
      %v958 = vmul.f32 %v938, %v952
      %v959 = vadd.f32 %v956, %v957
      %v960 = vadd.f32 %v959, %v958
      %961 = vadd.xlane.f32.xlu0 %v960
      %v962 = vpop.xlane.xlu0 %961
      %vm963 = vcmask 7168
      %964 = vst.msk [vmem:[%s168] sm:$0xff] %vm963, %v962
      %v965 = vmul.f32 %v956, %v936
      %v966 = vmul.f32 %v957, %v937
      %v967 = vmul.f32 %v958, %v938
      %v968 = vadd.f32 %v965, %v966
      %v969 = vadd.f32 %v968, %v967
      %970 = vadd.xlane.f32.xlu0 %v969
      %v971 = vpop.xlane.xlu0 %970
      %vm972 = vcmask 15368
      %973 = vst.msk [vmem:[%s168] sm:$0xff] %vm972, %v971
      %p974 = scmp.lt.s32.totalorder %s14, 1
      %s975 = scalar_select %p974, %s14, 1
      %s976 = smul.addr %s975, 8
      %s977 = scalar_lea.vmem %s3, %s976
      // Predicated region
      $region33: #{resblock_enc_forward.6} parent=31 // pred_check
        %p978 = pneg %p100
      $region34: #{resblock_enc_forward.6} parent=31 // pred_check_branch
        %980 = sbr.rel (%p978) target = $region36
      $region35: #{resblock_enc_forward.6} parent=31 // pred_region
        _
      $region36: #{resblock_enc_forward.6} parent=31 // pred_fallthru
        _
    $region32: #{resblock_enc_forward.6} parent=5 // pred_fallthru
      _
    %p981 = scmp.le.s32.totalorder 2, %s9
    // Predicated region
    $region37: #{resblock_enc_forward.6} parent=5 // pred_check
      %p982 = pneg %p981
    $region38: #{resblock_enc_forward.6} parent=5 // pred_check_branch
      %984 = sbr.rel (%p982) target = $region40
    $region39: #{resblock_enc_forward.6} parent=5 // pred_region
      %s985 = ssub.s32 %s9, 2
      // Predicated region
      $region41: #{resblock_enc_forward.6} parent=39 // pred_check
        %p986 = pneg %p106
      $region42: #{resblock_enc_forward.6} parent=39 // pred_check_branch
        %988 = sbr.rel (%p986) target = $region44
      $region43: #{resblock_enc_forward.6} parent=39 // pred_region
        %p989 = scmp.lt.s32.totalorder %s15, 1
        %s990 = scalar_select %p989, %s15, 1
        %s991 = smul.addr %s990, 8
        %s992 = scalar_lea.vmem %s3, %s991
      $region44: #{resblock_enc_forward.6} parent=39 // pred_fallthru
        _
    $region40: #{resblock_enc_forward.6} parent=5 // pred_fallthru
      _
  $region6: #{resblock_enc_forward.6} parent=0 // loop_footer
    %s13 = sadd.s32 1, %s9
  $region7: #{resblock_enc_forward.6} parent=0 // loop_footer_branch
    %8 = sbr.rel target = $region3
  $region8: #{resblock_enc_forward.6} parent=0 // loop_exit
    _

// kernel: resblock_enc_forward.5
$region0: #{resblock_enc_forward.5}
  #allocation0 [shape = 'u32[]', space=smem, size = 0x4, offset = 0x4, fixed_abs, tag = 'smem constant byte address 0x4 - core index']
  #allocation1 [shape = 'u32[144,128]{1,0:T(1,128)}', space=vmem, size = 0x12000, scoped, tag = 'internal scratch']
  %s0 = inlined_call_operand.vmem [shape: bf16[2,4,640], index: 0, kind: input, shape index: {}]
  %s1 = inlined_call_operand.vmem [shape: bf16[7,8,4], index: 1, kind: input, shape index: {}]
  %s2 = inlined_call_operand.vmem [shape: f32[1,384], index: 2, kind: input, shape index: {}]
  %s3 = inlined_call_operand.vmem [shape: f32[8,1], index: 3, kind: input, shape index: {}]
  %s4 = inlined_call_operand.vmem [shape: f32[8,1], index: 4, kind: input, shape index: {}]
  %s5 = inlined_call_operand.vmem [shape: bf16[2,8,640], index: 5, kind: output, shape index: {}]
  %s6 = sld [smem:[#allocation0]]
  $region53: #{resblock_enc_forward.5} parent=0
    _
  %s8 = ssub.s32 1, %s6
  %s9 = scalar_select 0, %s8, %s6
  loop: start=0, step=1, limit=4
  $region2: #{resblock_enc_forward.5} parent=0 // loop_pre_header
    _
  $region3: #{resblock_enc_forward.5} parent=0 // loop_header
    %s11 = sphi 0, %s15
    %p12 = scmp.ge.s32.totalorder %s11, 4
    %s21 = sphi 0, %s23
    %s24 = sphi 0, %s21
    %s25 = sphi 0, %s24
    %s41 = sphi 0, %s25
    %s45 = sphi 0, %s45
    %s47 = sphi 0, %s45
    %s48 = sphi 0, %s47
    %s62 = sphi 0, %s48
    %s66 = sphi 0, %s66
    %s68 = sphi 0, %s66
    %s69 = sphi 0, %s68
    %s83 = sphi 0, %s69
    %s87 = sphi 0, %s87
    %s89 = sphi 0, %s87
    %s90 = sphi 0, %s89
    %s104 = sphi 0, %s90
    %s108 = sphi 0, %s108
    %s110 = sphi 0, %s108
    %s111 = sphi 0, %s110
    %s125 = sphi 0, %s111
    %s131 = sphi 0, %s133
    %s134 = sphi 0, %s131
    %s135 = sphi 0, %s134
    %s151 = sphi 0, %s135
  $region4: #{resblock_enc_forward.5} parent=0 // loop_header_branch
    %14 = sbr.rel (%p12) target = $region8
  $region5: #{resblock_enc_forward.5} parent=0 // loop_body
    %s16 = ssub.s32 %s11, 1
    %s17 = ssub.s32 %s11, 2
    %s18 = sadd.s32 %s11, 1
    %s19 = ssub.s32 %s11, %s18
    %p20 = scmp.eq.s32.totalorder %s19, 0
    %s22 = sadd.s32 %s21, 1
    %s23 = scalar_select %p20, %s21, %s22
    %p26 = pneg %p20
    %p27 = scmp.eq.s32.totalorder %s11, 1
    %p28 = por %p26, %p27
    %p29 = scmp.ne.s32.totalorder %s21, %s24
    %p30 = scmp.eq.s32.totalorder %s11, 0
    %p31 = por %p29, %p30
    %p32 = scmp.ne.s32.totalorder %s21, %s24
    %p33 = scmp.eq.s32.totalorder %s16, 1
    %p34 = por %p32, %p33
    %p35 = scmp.ne.s32.totalorder %s24, %s25
    %p36 = scmp.eq.s32.totalorder %s16, 0
    %p37 = por %p35, %p36
    %p38 = scmp.ne.s32.totalorder %s24, %s25
    %p39 = scmp.eq.s32.totalorder %s17, 1
    %p40 = por %p38, %p39
    %p42 = scmp.ne.s32.totalorder %s25, %s41
    %p43 = scmp.eq.s32.totalorder %s17, 0
    %p44 = por %p42, %p43
    %s46 = sadd.s32 %s45, 1
    %p49 = scmp.eq.s32.totalorder %s11, 1
    %p50 = scmp.ne.s32.totalorder %s45, %s47
    %p51 = scmp.eq.s32.totalorder %s11, 0
    %p52 = por %p50, %p51
    %p53 = scmp.ne.s32.totalorder %s45, %s47
    %p54 = scmp.eq.s32.totalorder %s16, 1
    %p55 = por %p53, %p54
    %p56 = scmp.ne.s32.totalorder %s47, %s48
    %p57 = scmp.eq.s32.totalorder %s16, 0
    %p58 = por %p56, %p57
    %p59 = scmp.ne.s32.totalorder %s47, %s48
    %p60 = scmp.eq.s32.totalorder %s17, 1
    %p61 = por %p59, %p60
    %p63 = scmp.ne.s32.totalorder %s48, %s62
    %p64 = scmp.eq.s32.totalorder %s17, 0
    %p65 = por %p63, %p64
    %s67 = sadd.s32 %s66, 1
    %p70 = scmp.eq.s32.totalorder %s11, 1
    %p71 = scmp.ne.s32.totalorder %s66, %s68
    %p72 = scmp.eq.s32.totalorder %s11, 0
    %p73 = por %p71, %p72
    %p74 = scmp.ne.s32.totalorder %s66, %s68
    %p75 = scmp.eq.s32.totalorder %s16, 1
    %p76 = por %p74, %p75
    %p77 = scmp.ne.s32.totalorder %s68, %s69
    %p78 = scmp.eq.s32.totalorder %s16, 0
    %p79 = por %p77, %p78
    %p80 = scmp.ne.s32.totalorder %s68, %s69
    %p81 = scmp.eq.s32.totalorder %s17, 1
    %p82 = por %p80, %p81
    %p84 = scmp.ne.s32.totalorder %s69, %s83
    %p85 = scmp.eq.s32.totalorder %s17, 0
    %p86 = por %p84, %p85
    %s88 = sadd.s32 %s87, 1
    %p91 = scmp.eq.s32.totalorder %s11, 1
    %p92 = scmp.ne.s32.totalorder %s87, %s89
    %p93 = scmp.eq.s32.totalorder %s11, 0
    %p94 = por %p92, %p93
    %p95 = scmp.ne.s32.totalorder %s87, %s89
    %p96 = scmp.eq.s32.totalorder %s16, 1
    %p97 = por %p95, %p96
    %p98 = scmp.ne.s32.totalorder %s89, %s90
    %p99 = scmp.eq.s32.totalorder %s16, 0
    %p100 = por %p98, %p99
    %p101 = scmp.ne.s32.totalorder %s89, %s90
    %p102 = scmp.eq.s32.totalorder %s17, 1
    %p103 = por %p101, %p102
    %p105 = scmp.ne.s32.totalorder %s90, %s104
    %p106 = scmp.eq.s32.totalorder %s17, 0
    %p107 = por %p105, %p106
    %s109 = sadd.s32 %s108, 1
    %p112 = scmp.eq.s32.totalorder %s11, 1
    %p113 = scmp.ne.s32.totalorder %s108, %s110
    %p114 = scmp.eq.s32.totalorder %s11, 0
    %p115 = por %p113, %p114
    %p116 = scmp.ne.s32.totalorder %s108, %s110
    %p117 = scmp.eq.s32.totalorder %s16, 1
    %p118 = por %p116, %p117
    %p119 = scmp.ne.s32.totalorder %s110, %s111
    %p120 = scmp.eq.s32.totalorder %s16, 0
    %p121 = por %p119, %p120
    %p122 = scmp.ne.s32.totalorder %s110, %s111
    %p123 = scmp.eq.s32.totalorder %s17, 1
    %p124 = por %p122, %p123
    %p126 = scmp.ne.s32.totalorder %s111, %s125
    %p127 = scmp.eq.s32.totalorder %s17, 0
    %p128 = por %p126, %p127
    %s129 = ssub.s32 %s11, %s18
    %p130 = scmp.eq.s32.totalorder %s129, 0
    %s132 = sadd.s32 %s131, 1
    %s133 = scalar_select %p130, %s131, %s132
    %p136 = pneg %p130
    %p137 = scmp.eq.s32.totalorder %s11, 1
    %p138 = por %p136, %p137
    %p139 = scmp.ne.s32.totalorder %s131, %s134
    %p140 = scmp.eq.s32.totalorder %s11, 0
    %p141 = por %p139, %p140
    %p142 = scmp.ne.s32.totalorder %s131, %s134
    %p143 = scmp.eq.s32.totalorder %s16, 1
    %p144 = por %p142, %p143
    %p145 = scmp.ne.s32.totalorder %s134, %s135
    %p146 = scmp.eq.s32.totalorder %s16, 0
    %p147 = por %p145, %p146
    %p148 = scmp.ne.s32.totalorder %s134, %s135
    %p149 = scmp.eq.s32.totalorder %s17, 1
    %p150 = por %p148, %p149
    %p152 = scmp.ne.s32.totalorder %s135, %s151
    %p153 = scmp.eq.s32.totalorder %s17, 0
    %p154 = por %p152, %p153
    %p155 = scmp.le.s32.totalorder 1, %s11
    %p156 = scmp.lt.s32.totalorder %s11, 3
    %p157 = pnand %p155, %p156
    %p158 = pneg %p157
    // Predicated region
    $region9: #{resblock_enc_forward.5} parent=5 // pred_check
      _
    $region10: #{resblock_enc_forward.5} parent=5 // pred_check_branch
      %160 = sbr.rel (%p157) target = $region12
    $region11: #{resblock_enc_forward.5} parent=5 // pred_region
      %s161 = ssub.s32 %s11, 1
      // Predicated region
      $region13: #{resblock_enc_forward.5} parent=11 // pred_check
        %p162 = pneg %p58
      $region14: #{resblock_enc_forward.5} parent=11 // pred_check_branch
        %164 = sbr.rel (%p162) target = $region16
      $region15: #{resblock_enc_forward.5} parent=11 // pred_region
        _
      $region16: #{resblock_enc_forward.5} parent=11 // pred_fallthru
        _
      // Predicated region
      $region17: #{resblock_enc_forward.5} parent=11 // pred_check
        %p165 = pneg %p79
      $region18: #{resblock_enc_forward.5} parent=11 // pred_check_branch
        %167 = sbr.rel (%p165) target = $region20
      $region19: #{resblock_enc_forward.5} parent=11 // pred_region
        _
      $region20: #{resblock_enc_forward.5} parent=11 // pred_fallthru
        _
      // Predicated region
      $region21: #{resblock_enc_forward.5} parent=11 // pred_check
        %p168 = pneg %p100
      $region22: #{resblock_enc_forward.5} parent=11 // pred_check_branch
        %170 = sbr.rel (%p168) target = $region24
      $region23: #{resblock_enc_forward.5} parent=11 // pred_region
        _
      $region24: #{resblock_enc_forward.5} parent=11 // pred_fallthru
        _
      // Predicated region
      $region25: #{resblock_enc_forward.5} parent=11 // pred_check
        %p171 = pneg %p121
      $region26: #{resblock_enc_forward.5} parent=11 // pred_check_branch
        %173 = sbr.rel (%p171) target = $region28
      $region27: #{resblock_enc_forward.5} parent=11 // pred_region
        _
      $region28: #{resblock_enc_forward.5} parent=11 // pred_fallthru
        _
    $region12: #{resblock_enc_forward.5} parent=5 // pred_fallthru
      _
    %p174 = scmp.lt.s32.totalorder %s11, 2
    // Predicated region
    $region29: #{resblock_enc_forward.5} parent=5 // pred_check
      %p175 = pneg %p174
    $region30: #{resblock_enc_forward.5} parent=5 // pred_check_branch
      %177 = sbr.rel (%p175) target = $region32
    $region31: #{resblock_enc_forward.5} parent=5 // pred_region
      // Predicated region
      $region33: #{resblock_enc_forward.5} parent=31 // pred_check
        %p178 = pneg %p31
      $region34: #{resblock_enc_forward.5} parent=31 // pred_check_branch
        %180 = sbr.rel (%p178) target = $region36
      $region35: #{resblock_enc_forward.5} parent=31 // pred_region
        %p181 = scmp.lt.s32.totalorder %s11, 1
        %s182 = scalar_select %p181, %s11, 1
        %s183 = smul.addr %s182, 5
        %s184 = smul.addr %s183, 2
        %s185 = scalar_lea.vmem %s0, %s184
      $region36: #{resblock_enc_forward.5} parent=31 // pred_fallthru
        _
    $region32: #{resblock_enc_forward.5} parent=5 // pred_fallthru
      _
    %p186 = scmp.le.s32.totalorder 1, %s11
    %p187 = scmp.lt.s32.totalorder %s11, 3
    %p188 = pnand %p186, %p187
    %p189 = pneg %p188
    // Predicated region
    $region37: #{resblock_enc_forward.5} parent=5 // pred_check
      _
    $region38: #{resblock_enc_forward.5} parent=5 // pred_check_branch
      %191 = sbr.rel (%p188) target = $region40
    $region39: #{resblock_enc_forward.5} parent=5 // pred_region
      %s192 = ssub.s32 %s11, 1
      %p193 = scmp.lt.s32.totalorder %s16, 1
      %s194 = scalar_select %p193, %s16, 1
      %s195 = smul.addr %s194, 5
      %s196 = smul.addr %s195, 2
      %s197 = scalar_lea.vmem %s0, %s196
      %p198 = pneg %p37
      %p199 = pneg %p34
      %p200 = pneg %p58
      %p201 = pneg %p55
      %p202 = pneg %p79
      %p203 = pneg %p76
      %p204 = pneg %p100
      %p205 = pneg %p97
      %p206 = pneg %p121
      %p207 = pneg %p118
      %p208 = pneg %p147
      %p209 = pneg %p144
      %p210 = scmp.lt.s32.totalorder %s16, 1
      %s211 = scalar_select %p210, %s16, 1
      %s212 = smul.addr %s211, 5
      %s213 = smul.addr %s212, 4
      %s214 = scalar_lea.vmem %s5, %s213
      %p215 = scmp.lt.s32.totalorder %s16, 1
      %s216 = scalar_select %p215, %s16, 1
      %s217 = smul.addr %s216, 5
      %s218 = smul.addr %s217, 2
      %s219 = scalar_lea.vmem %s0, %s218
      %p220 = scmp.lt.s32.totalorder %s16, 1
      %s221 = scalar_select %p220, %s16, 1
      %s222 = smul.addr %s221, 5
      %s223 = smul.addr %s222, 4
      %s224 = scalar_lea.vmem %s5, %s223
      %v226 = vld [vmem:[%s219] sm:$0xff]
      %v227 = vld [vmem:[%s219 + $0x8] sm:$0x3]
      %v228 = vld [vmem:[%s1] sm:$0xf]
      %s229 = scalar_lea.vmem %s1, 4
      %v230 = vld [vmem:[%s229] sm:$0xf]
      %v232 = vcombine.high %v226, %v226
      %v234 = vunpack.c.l.s4 1983009808
      %v235 = vunpack.c.0.s8 %v234
      %v236 = vlaneseq
      %v237 = vshrl.u32 %v236, 7
      %v238 = vsub.s32 %v235, %v237
      %v239 = vrot.slane %v226, %v238
      %v241 = vunpack.c.l.s4 1983009808
      %v242 = vunpack.c.0.s8 %v241
      %v243 = vlaneseq
      %v244 = vshrl.u32 %v243, 7
      %v245 = vsub.s32 %v242, %v244
      %v246 = vrot.slane %v232, %v245
      %v247 = vcombine.high %v239, %v239
      %v248 = vcombine.high %v246, %v246
      %249 = vrot.lane.b32.xlu0 %v239, 18
      %v250 = vpop.permute.xlu0 %249
      %251 = vrot.lane.b32.xlu0 %v247, 18
      %v252 = vpop.permute.xlu0 %251
      %253 = vrot.lane.b32.xlu0 %v246, 18
      %v254 = vpop.permute.xlu0 %253
      %255 = vrot.lane.b32.xlu0 %v248, 18
      %v256 = vpop.permute.xlu0 %255
      %vm257 = vcmask 146432
      %v258 = vsel %vm257, %v250, %v252
      %v259 = vsel %vm257, %v252, %v254
      %v260 = vsel %vm257, %v254, %v256
      %vm261 = vcmask 31744
      %v263 = vsel %vm261, %v230, 0
      %vm265 = vcmask 1041408
      %v267 = vsel %vm265, %v258, 0
      %v270 = vsel %vm265, %v259, 0
      %v273 = vsel %vm265, %v260, 0
      %275 = vmatprep.subr.bf16.mxu0 %v270
      %276 = vmatpush1.bf16.msra.mxu0 %v267
      %277 = vmatprep.subr.bf16.mxu0 0
      %278 = vmatpush1.bf16.msra.mxu0 0
      %279 = vmatprep.subr.bf16.mxu0 0
      %280 = vmatpush1.bf16.msra.mxu0 0
      %281 = vmatprep.subr.bf16.mxu0 0
      %282 = vmatpush1.bf16.msra.mxu0 0
      %283 = vmatprep.subr.bf16.mxu0 0
      %284 = vmatpush1.bf16.msra.mxu0 0
      %285 = vmatprep.subr.bf16.mxu0 0
      %286 = vmatpush1.bf16.msra.mxu0 0
      %287 = vmatprep.subr.bf16.mxu0 0
      %288 = vmatpush1.bf16.msra.mxu0 0
      %289 = vmatprep.subr.bf16.mxu0 0
      %290 = vmatpush1.bf16.msra.mxu0 0
      %291 = vmatprep.subr.bf16.mxu0 0
      %292 = vmatpush1.bf16.msra.mxu0 0
      %293 = vmatprep.subr.bf16.mxu0 0
      %294 = vmatpush1.bf16.msra.mxu0 0
      %295 = vmatprep.subr.bf16.mxu0 0
      %296 = vmatpush1.bf16.msra.mxu0 0
      %297 = vmatprep.subr.bf16.mxu0 0
      %298 = vmatpush1.bf16.msra.mxu0 0
      %299 = vmatprep.subr.bf16.mxu0 0
      %300 = vmatpush1.bf16.msra.mxu0 0
      %301 = vmatprep.subr.bf16.mxu0 0
      %302 = vmatpush1.bf16.msra.mxu0 0
      %303 = vmatprep.subr.bf16.mxu0 0
      %304 = vmatpush1.bf16.msra.mxu0 0
      %305 = vmatprep.subr.bf16.mxu0 0
      %306 = vmatpush1.bf16.msra.mxu0 0
      %307 = vmatprep.mubr.bf16.mxu0 0
      %308 = vmatmul.mubr.bf16.gmra.mrb[0].mxu0 %v263
      %v309 = vpop.f32.mrb[0].mxu0
      %v310 = vadd.f32 0.0, %v309
      %v311 = vpop.f32.mrb[0].mxu0
      %v312 = vadd.f32 0.0, %v311
      %v313 = vpop.f32.mrb[0].mxu0
      %v314 = vpop.f32.mrb[0].mxu0
      %315 = vdwg.mxu0
      %316 = vmatprep.subr.bf16.mxu0 0
      %317 = vmatpush1.bf16.msra.mxu0 %v273
      %318 = vmatprep.subr.bf16.mxu0 0
      %319 = vmatpush1.bf16.msra.mxu0 0
      %320 = vmatprep.subr.bf16.mxu0 0
      %321 = vmatpush1.bf16.msra.mxu0 0
      %322 = vmatprep.subr.bf16.mxu0 0
      %323 = vmatpush1.bf16.msra.mxu0 0
      %324 = vmatprep.subr.bf16.mxu0 0
      %325 = vmatpush1.bf16.msra.mxu0 0
      %326 = vmatprep.subr.bf16.mxu0 0
      %327 = vmatpush1.bf16.msra.mxu0 0
      %328 = vmatprep.subr.bf16.mxu0 0
      %329 = vmatpush1.bf16.msra.mxu0 0
      %330 = vmatprep.subr.bf16.mxu0 0
      %331 = vmatpush1.bf16.msra.mxu0 0
      %332 = vmatprep.subr.bf16.mxu0 0
      %333 = vmatpush1.bf16.msra.mxu0 0
      %334 = vmatprep.subr.bf16.mxu0 0
      %335 = vmatpush1.bf16.msra.mxu0 0
      %336 = vmatprep.subr.bf16.mxu0 0
      %337 = vmatpush1.bf16.msra.mxu0 0
      %338 = vmatprep.subr.bf16.mxu0 0
      %339 = vmatpush1.bf16.msra.mxu0 0
      %340 = vmatprep.subr.bf16.mxu0 0
      %341 = vmatpush1.bf16.msra.mxu0 0
      %342 = vmatprep.subr.bf16.mxu0 0
      %343 = vmatpush1.bf16.msra.mxu0 0
      %344 = vmatprep.subr.bf16.mxu0 0
      %345 = vmatpush1.bf16.msra.mxu0 0
      %346 = vmatprep.subr.bf16.mxu0 0
      %347 = vmatpush1.bf16.msra.mxu0 0
      %348 = vmatprep.mubr.bf16.mxu0 0
      %349 = vmatmul.mubr.bf16.gmra.mrb[0].mxu0 %v263
      %v350 = vpop.f32.mrb[0].mxu0
      %v351 = vadd.f32 0.0, %v350
      %v352 = vpop.f32.mrb[0].mxu0
      %v353 = vpop.f32.mrb[0].mxu0
      %v354 = vpop.f32.mrb[0].mxu0
      %355 = vdwg.mxu0
      %356 = vrot.lane.b32.xlu0 %v239, 19
      %v357 = vpop.permute.xlu0 %356
      %358 = vrot.lane.b32.xlu0 %v247, 19
      %v359 = vpop.permute.xlu0 %358
      %360 = vrot.lane.b32.xlu0 %v246, 19
      %v361 = vpop.permute.xlu0 %360
      %362 = vrot.lane.b32.xlu0 %v248, 19
      %v363 = vpop.permute.xlu0 %362
      %vm364 = vcmask 154624
      %v365 = vsel %vm364, %v357, %v359
      %v366 = vsel %vm364, %v359, %v361
      %v367 = vsel %vm364, %v361, %v363
      %v369 = vsel %vm261, %v228, 0
      %v372 = vsel %vm265, %v365, 0
      %v375 = vsel %vm265, %v366, 0
      %v378 = vsel %vm265, %v367, 0
      %380 = vmatprep.subr.bf16.mxu0 %v375
      %381 = vmatpush1.bf16.msra.mxu0 %v372
      %382 = vmatprep.subr.bf16.mxu0 0
      %383 = vmatpush1.bf16.msra.mxu0 0
      %384 = vmatprep.subr.bf16.mxu0 0
      %385 = vmatpush1.bf16.msra.mxu0 0
      %386 = vmatprep.subr.bf16.mxu0 0
      %387 = vmatpush1.bf16.msra.mxu0 0
      %388 = vmatprep.subr.bf16.mxu0 0
      %389 = vmatpush1.bf16.msra.mxu0 0
      %390 = vmatprep.subr.bf16.mxu0 0
      %391 = vmatpush1.bf16.msra.mxu0 0
      %392 = vmatprep.subr.bf16.mxu0 0
      %393 = vmatpush1.bf16.msra.mxu0 0
      %394 = vmatprep.subr.bf16.mxu0 0
      %395 = vmatpush1.bf16.msra.mxu0 0
      %396 = vmatprep.subr.bf16.mxu0 0
      %397 = vmatpush1.bf16.msra.mxu0 0
      %398 = vmatprep.subr.bf16.mxu0 0
      %399 = vmatpush1.bf16.msra.mxu0 0
      %400 = vmatprep.subr.bf16.mxu0 0
      %401 = vmatpush1.bf16.msra.mxu0 0
      %402 = vmatprep.subr.bf16.mxu0 0
      %403 = vmatpush1.bf16.msra.mxu0 0
      %404 = vmatprep.subr.bf16.mxu0 0
      %405 = vmatpush1.bf16.msra.mxu0 0
      %406 = vmatprep.subr.bf16.mxu0 0
      %407 = vmatpush1.bf16.msra.mxu0 0
      %408 = vmatprep.subr.bf16.mxu0 0
      %409 = vmatpush1.bf16.msra.mxu0 0
      %410 = vmatprep.subr.bf16.mxu0 0
      %411 = vmatpush1.bf16.msra.mxu0 0
      %412 = vmatprep.mubr.bf16.mxu0 0
      %413 = vmatmul.mubr.bf16.gmra.mrb[0].mxu0 %v369
      %v414 = vpop.f32.mrb[0].mxu0
      %v415 = vadd.f32 %v310, %v414
      %v416 = vpop.f32.mrb[0].mxu0
      %v417 = vadd.f32 %v312, %v416
      %v418 = vpop.f32.mrb[0].mxu0
      %v419 = vpop.f32.mrb[0].mxu0
      %420 = vdwg.mxu0
      %421 = vmatprep.subr.bf16.mxu0 0
      %422 = vmatpush1.bf16.msra.mxu0 %v378
      %423 = vmatprep.subr.bf16.mxu0 0
      %424 = vmatpush1.bf16.msra.mxu0 0
      %425 = vmatprep.subr.bf16.mxu0 0
      %426 = vmatpush1.bf16.msra.mxu0 0
      %427 = vmatprep.subr.bf16.mxu0 0
      %428 = vmatpush1.bf16.msra.mxu0 0
      %429 = vmatprep.subr.bf16.mxu0 0
      %430 = vmatpush1.bf16.msra.mxu0 0
      %431 = vmatprep.subr.bf16.mxu0 0
      %432 = vmatpush1.bf16.msra.mxu0 0
      %433 = vmatprep.subr.bf16.mxu0 0
      %434 = vmatpush1.bf16.msra.mxu0 0
      %435 = vmatprep.subr.bf16.mxu0 0
      %436 = vmatpush1.bf16.msra.mxu0 0
      %437 = vmatprep.subr.bf16.mxu0 0
      %438 = vmatpush1.bf16.msra.mxu0 0
      %439 = vmatprep.subr.bf16.mxu0 0
      %440 = vmatpush1.bf16.msra.mxu0 0
      %441 = vmatprep.subr.bf16.mxu0 0
      %442 = vmatpush1.bf16.msra.mxu0 0
      %443 = vmatprep.subr.bf16.mxu0 0
      %444 = vmatpush1.bf16.msra.mxu0 0
      %445 = vmatprep.subr.bf16.mxu0 0
      %446 = vmatpush1.bf16.msra.mxu0 0
      %447 = vmatprep.subr.bf16.mxu0 0
      %448 = vmatpush1.bf16.msra.mxu0 0
      %449 = vmatprep.subr.bf16.mxu0 0
      %450 = vmatpush1.bf16.msra.mxu0 0
      %451 = vmatprep.subr.bf16.mxu0 0
      %452 = vmatpush1.bf16.msra.mxu0 0
      %453 = vmatprep.mubr.bf16.mxu0 0
      %454 = vmatmul.mubr.bf16.gmra.mrb[0].mxu0 %v369
      %v455 = vpop.f32.mrb[0].mxu0
      %v456 = vadd.f32 %v351, %v455
      %v457 = vpop.f32.mrb[0].mxu0
      %v458 = vpop.f32.mrb[0].mxu0
      %v459 = vpop.f32.mrb[0].mxu0
      %460 = vdwg.mxu0
      %s461 = scalar_lea.vmem %s1, 8
      %v462 = vld [vmem:[%s461] sm:$0xf]
      %463 = vrot.lane.b32.xlu0 %v239, 1
      %v464 = vpop.permute.xlu0 %463
      %465 = vrot.lane.b32.xlu0 %v247, 1
      %v466 = vpop.permute.xlu0 %465
      %467 = vrot.lane.b32.xlu0 %v246, 1
      %v468 = vpop.permute.xlu0 %467
      %469 = vrot.lane.b32.xlu0 %v248, 1
      %v470 = vpop.permute.xlu0 %469
      %vm471 = vcmask 7168
      %v472 = vsel %vm471, %v464, %v466
      %v473 = vsel %vm471, %v466, %v468
      %v474 = vsel %vm471, %v468, %v470
      %v476 = vsel %vm261, %v462, 0
      %v479 = vsel %vm265, %v472, 0
      %v482 = vsel %vm265, %v473, 0
      %v485 = vsel %vm265, %v474, 0
      %487 = vmatprep.subr.bf16.mxu0 %v482
      %488 = vmatpush1.bf16.msra.mxu0 %v479
      %489 = vmatprep.subr.bf16.mxu0 0
      %490 = vmatpush1.bf16.msra.mxu0 0
      %491 = vmatprep.subr.bf16.mxu0 0
      %492 = vmatpush1.bf16.msra.mxu0 0
      %493 = vmatprep.subr.bf16.mxu0 0
      %494 = vmatpush1.bf16.msra.mxu0 0
      %495 = vmatprep.subr.bf16.mxu0 0
      %496 = vmatpush1.bf16.msra.mxu0 0
      %497 = vmatprep.subr.bf16.mxu0 0
      %498 = vmatpush1.bf16.msra.mxu0 0
      %499 = vmatprep.subr.bf16.mxu0 0
      %500 = vmatpush1.bf16.msra.mxu0 0
      %501 = vmatprep.subr.bf16.mxu0 0
      %502 = vmatpush1.bf16.msra.mxu0 0
      %503 = vmatprep.subr.bf16.mxu0 0
      %504 = vmatpush1.bf16.msra.mxu0 0
      %505 = vmatprep.subr.bf16.mxu0 0
      %506 = vmatpush1.bf16.msra.mxu0 0
      %507 = vmatprep.subr.bf16.mxu0 0
      %508 = vmatpush1.bf16.msra.mxu0 0
      %509 = vmatprep.subr.bf16.mxu0 0
      %510 = vmatpush1.bf16.msra.mxu0 0
      %511 = vmatprep.subr.bf16.mxu0 0
      %512 = vmatpush1.bf16.msra.mxu0 0
      %513 = vmatprep.subr.bf16.mxu0 0
      %514 = vmatpush1.bf16.msra.mxu0 0
      %515 = vmatprep.subr.bf16.mxu0 0
      %516 = vmatpush1.bf16.msra.mxu0 0
      %517 = vmatprep.subr.bf16.mxu0 0
      %518 = vmatpush1.bf16.msra.mxu0 0
      %519 = vmatprep.mubr.bf16.mxu0 0
      %520 = vmatmul.mubr.bf16.gmra.mrb[0].mxu0 %v476
      %v521 = vpop.f32.mrb[0].mxu0
      %v522 = vadd.f32 0.0, %v521
      %v523 = vpop.f32.mrb[0].mxu0
      %v524 = vadd.f32 0.0, %v523
      %v525 = vpop.f32.mrb[0].mxu0
      %v526 = vpop.f32.mrb[0].mxu0
      %527 = vdwg.mxu0
      %528 = vmatprep.subr.bf16.mxu0 0
      %529 = vmatpush1.bf16.msra.mxu0 %v485
      %530 = vmatprep.subr.bf16.mxu0 0
      %531 = vmatpush1.bf16.msra.mxu0 0
      %532 = vmatprep.subr.bf16.mxu0 0
      %533 = vmatpush1.bf16.msra.mxu0 0
      %534 = vmatprep.subr.bf16.mxu0 0
      %535 = vmatpush1.bf16.msra.mxu0 0
      %536 = vmatprep.subr.bf16.mxu0 0
      %537 = vmatpush1.bf16.msra.mxu0 0
      %538 = vmatprep.subr.bf16.mxu0 0
      %539 = vmatpush1.bf16.msra.mxu0 0
      %540 = vmatprep.subr.bf16.mxu0 0
      %541 = vmatpush1.bf16.msra.mxu0 0
      %542 = vmatprep.subr.bf16.mxu0 0
      %543 = vmatpush1.bf16.msra.mxu0 0
      %544 = vmatprep.subr.bf16.mxu0 0
      %545 = vmatpush1.bf16.msra.mxu0 0
      %546 = vmatprep.subr.bf16.mxu0 0
      %547 = vmatpush1.bf16.msra.mxu0 0
      %548 = vmatprep.subr.bf16.mxu0 0
      %549 = vmatpush1.bf16.msra.mxu0 0
      %550 = vmatprep.subr.bf16.mxu0 0
      %551 = vmatpush1.bf16.msra.mxu0 0
      %552 = vmatprep.subr.bf16.mxu0 0
      %553 = vmatpush1.bf16.msra.mxu0 0
      %554 = vmatprep.subr.bf16.mxu0 0
      %555 = vmatpush1.bf16.msra.mxu0 0
      %556 = vmatprep.subr.bf16.mxu0 0
      %557 = vmatpush1.bf16.msra.mxu0 0
      %558 = vmatprep.subr.bf16.mxu0 0
      %559 = vmatpush1.bf16.msra.mxu0 0
      %560 = vmatprep.mubr.bf16.mxu0 0
      %561 = vmatmul.mubr.bf16.gmra.mrb[0].mxu0 %v476
      %v562 = vpop.f32.mrb[0].mxu0
      %v563 = vadd.f32 0.0, %v562
      %v564 = vpop.f32.mrb[0].mxu0
      %v565 = vpop.f32.mrb[0].mxu0
      %v566 = vpop.f32.mrb[0].mxu0
      %567 = vdwg.mxu0
      %v568 = vadd.f32 %v415, %v522
      %v569 = vadd.f32 %v417, %v524
      %v570 = vadd.f32 %v456, %v563
      %s571 = scalar_lea.vmem %s1, 12
      %v572 = vld [vmem:[%s571] sm:$0xf]
      %v574 = vsel %vm261, %v572, 0
      %v577 = vsel %vm265, %v247, 0
      %v580 = vsel %vm265, %v246, 0
      %v583 = vsel %vm265, %v248, 0
      %585 = vmatprep.subr.bf16.mxu0 %v580
      %586 = vmatpush1.bf16.msra.mxu0 %v577
      %587 = vmatprep.subr.bf16.mxu0 0
      %588 = vmatpush1.bf16.msra.mxu0 0
      %589 = vmatprep.subr.bf16.mxu0 0
      %590 = vmatpush1.bf16.msra.mxu0 0
      %591 = vmatprep.subr.bf16.mxu0 0
      %592 = vmatpush1.bf16.msra.mxu0 0
      %593 = vmatprep.subr.bf16.mxu0 0
      %594 = vmatpush1.bf16.msra.mxu0 0
      %595 = vmatprep.subr.bf16.mxu0 0
      %596 = vmatpush1.bf16.msra.mxu0 0
      %597 = vmatprep.subr.bf16.mxu0 0
      %598 = vmatpush1.bf16.msra.mxu0 0
      %599 = vmatprep.subr.bf16.mxu0 0
      %600 = vmatpush1.bf16.msra.mxu0 0
      %601 = vmatprep.subr.bf16.mxu0 0
      %602 = vmatpush1.bf16.msra.mxu0 0
      %603 = vmatprep.subr.bf16.mxu0 0
      %604 = vmatpush1.bf16.msra.mxu0 0
      %605 = vmatprep.subr.bf16.mxu0 0
      %606 = vmatpush1.bf16.msra.mxu0 0
      %607 = vmatprep.subr.bf16.mxu0 0
      %608 = vmatpush1.bf16.msra.mxu0 0
      %609 = vmatprep.subr.bf16.mxu0 0
      %610 = vmatpush1.bf16.msra.mxu0 0
      %611 = vmatprep.subr.bf16.mxu0 0
      %612 = vmatpush1.bf16.msra.mxu0 0
      %613 = vmatprep.subr.bf16.mxu0 0
      %614 = vmatpush1.bf16.msra.mxu0 0
      %615 = vmatprep.subr.bf16.mxu0 0
      %616 = vmatpush1.bf16.msra.mxu0 0
      %617 = vmatprep.mubr.bf16.mxu0 0
      %618 = vmatmul.mubr.bf16.gmra.mrb[0].mxu0 %v574
      %v619 = vpop.f32.mrb[0].mxu0
      %v620 = vadd.f32 0.0, %v619
      %v621 = vpop.f32.mrb[0].mxu0
      %v622 = vadd.f32 0.0, %v621
      %v623 = vpop.f32.mrb[0].mxu0
      %v624 = vpop.f32.mrb[0].mxu0
      %625 = vdwg.mxu0
      %626 = vmatprep.subr.bf16.mxu0 0
      %627 = vmatpush1.bf16.msra.mxu0 %v583
      %628 = vmatprep.subr.bf16.mxu0 0
      %629 = vmatpush1.bf16.msra.mxu0 0
      %630 = vmatprep.subr.bf16.mxu0 0
      %631 = vmatpush1.bf16.msra.mxu0 0
      %632 = vmatprep.subr.bf16.mxu0 0
      %633 = vmatpush1.bf16.msra.mxu0 0
      %634 = vmatprep.subr.bf16.mxu0 0
      %635 = vmatpush1.bf16.msra.mxu0 0
      %636 = vmatprep.subr.bf16.mxu0 0
      %637 = vmatpush1.bf16.msra.mxu0 0
      %638 = vmatprep.subr.bf16.mxu0 0
      %639 = vmatpush1.bf16.msra.mxu0 0
      %640 = vmatprep.subr.bf16.mxu0 0
      %641 = vmatpush1.bf16.msra.mxu0 0
      %642 = vmatprep.subr.bf16.mxu0 0
      %643 = vmatpush1.bf16.msra.mxu0 0
      %644 = vmatprep.subr.bf16.mxu0 0
      %645 = vmatpush1.bf16.msra.mxu0 0
      %646 = vmatprep.subr.bf16.mxu0 0
      %647 = vmatpush1.bf16.msra.mxu0 0
      %648 = vmatprep.subr.bf16.mxu0 0
      %649 = vmatpush1.bf16.msra.mxu0 0
      %650 = vmatprep.subr.bf16.mxu0 0
      %651 = vmatpush1.bf16.msra.mxu0 0
      %652 = vmatprep.subr.bf16.mxu0 0
      %653 = vmatpush1.bf16.msra.mxu0 0
      %654 = vmatprep.subr.bf16.mxu0 0
      %655 = vmatpush1.bf16.msra.mxu0 0
      %656 = vmatprep.subr.bf16.mxu0 0
      %657 = vmatpush1.bf16.msra.mxu0 0
      %658 = vmatprep.mubr.bf16.mxu0 0
      %659 = vmatmul.mubr.bf16.gmra.mrb[0].mxu0 %v574
      %v660 = vpop.f32.mrb[0].mxu0
      %v661 = vadd.f32 0.0, %v660
      %v662 = vpop.f32.mrb[0].mxu0
      %v663 = vpop.f32.mrb[0].mxu0
      %v664 = vpop.f32.mrb[0].mxu0
      %665 = vdwg.mxu0
      %v666 = vadd.f32 %v568, %v620
      %v667 = vadd.f32 %v569, %v622
      %v668 = vadd.f32 %v570, %v661
      %s669 = scalar_lea.vmem %s1, 16
      %v670 = vld [vmem:[%s669] sm:$0xf]
      %v673 = vunpack.c.l.s4 1983009808
      %v674 = vunpack.c.0.s8 %v673
      %v675 = vlaneseq
      %v676 = vshrl.u32 %v675, 7
      %v677 = vsub.s32 %v674, %v676
      %v678 = vrot.slane %v227, %v677
      %679 = vrot.lane.b32.xlu0 %v247, 127
      %v680 = vpop.permute.xlu0 %679
      %681 = vrot.lane.b32.xlu0 %v246, 127
      %v682 = vpop.permute.xlu0 %681
      %683 = vrot.lane.b32.xlu0 %v248, 127
      %v684 = vpop.permute.xlu0 %683
      %685 = vrot.lane.b32.xlu0 %v678, 127
      %v686 = vpop.permute.xlu0 %685
      %vm687 = vcmask 1039360
      %v688 = vsel %vm687, %v680, %v682
      %v689 = vsel %vm687, %v682, %v684
      %v690 = vsel %vm687, %v684, %v686
      %v692 = vsel %vm261, %v670, 0
      %v695 = vsel %vm265, %v688, 0
      %v698 = vsel %vm265, %v689, 0
      %v701 = vsel %vm265, %v690, 0
      %703 = vmatprep.subr.bf16.mxu0 %v698
      %704 = vmatpush1.bf16.msra.mxu0 %v695
      %705 = vmatprep.subr.bf16.mxu0 0
      %706 = vmatpush1.bf16.msra.mxu0 0
      %707 = vmatprep.subr.bf16.mxu0 0
      %708 = vmatpush1.bf16.msra.mxu0 0
      %709 = vmatprep.subr.bf16.mxu0 0
      %710 = vmatpush1.bf16.msra.mxu0 0
      %711 = vmatprep.subr.bf16.mxu0 0
      %712 = vmatpush1.bf16.msra.mxu0 0
      %713 = vmatprep.subr.bf16.mxu0 0
      %714 = vmatpush1.bf16.msra.mxu0 0
      %715 = vmatprep.subr.bf16.mxu0 0
      %716 = vmatpush1.bf16.msra.mxu0 0
      %717 = vmatprep.subr.bf16.mxu0 0
      %718 = vmatpush1.bf16.msra.mxu0 0
      %719 = vmatprep.subr.bf16.mxu0 0
      %720 = vmatpush1.bf16.msra.mxu0 0
      %721 = vmatprep.subr.bf16.mxu0 0
      %722 = vmatpush1.bf16.msra.mxu0 0
      %723 = vmatprep.subr.bf16.mxu0 0
      %724 = vmatpush1.bf16.msra.mxu0 0
      %725 = vmatprep.subr.bf16.mxu0 0
      %726 = vmatpush1.bf16.msra.mxu0 0
      %727 = vmatprep.subr.bf16.mxu0 0
      %728 = vmatpush1.bf16.msra.mxu0 0
      %729 = vmatprep.subr.bf16.mxu0 0
      %730 = vmatpush1.bf16.msra.mxu0 0
      %731 = vmatprep.subr.bf16.mxu0 0
      %732 = vmatpush1.bf16.msra.mxu0 0
      %733 = vmatprep.subr.bf16.mxu0 0
      %734 = vmatpush1.bf16.msra.mxu0 0
      %735 = vmatprep.mubr.bf16.mxu0 0
      %736 = vmatmul.mubr.bf16.gmra.mrb[0].mxu0 %v692
      %v737 = vpop.f32.mrb[0].mxu0
      %v738 = vadd.f32 0.0, %v737
      %v739 = vpop.f32.mrb[0].mxu0
      %v740 = vadd.f32 0.0, %v739
      %v741 = vpop.f32.mrb[0].mxu0
      %v742 = vpop.f32.mrb[0].mxu0
      %743 = vdwg.mxu0
      %744 = vmatprep.subr.bf16.mxu0 0
      %745 = vmatpush1.bf16.msra.mxu0 %v701
      %746 = vmatprep.subr.bf16.mxu0 0
      %747 = vmatpush1.bf16.msra.mxu0 0
      %748 = vmatprep.subr.bf16.mxu0 0
      %749 = vmatpush1.bf16.msra.mxu0 0
      %750 = vmatprep.subr.bf16.mxu0 0
      %751 = vmatpush1.bf16.msra.mxu0 0
      %752 = vmatprep.subr.bf16.mxu0 0
      %753 = vmatpush1.bf16.msra.mxu0 0
      %754 = vmatprep.subr.bf16.mxu0 0
      %755 = vmatpush1.bf16.msra.mxu0 0
      %756 = vmatprep.subr.bf16.mxu0 0
      %757 = vmatpush1.bf16.msra.mxu0 0
      %758 = vmatprep.subr.bf16.mxu0 0
      %759 = vmatpush1.bf16.msra.mxu0 0
      %760 = vmatprep.subr.bf16.mxu0 0
      %761 = vmatpush1.bf16.msra.mxu0 0
      %762 = vmatprep.subr.bf16.mxu0 0
      %763 = vmatpush1.bf16.msra.mxu0 0
      %764 = vmatprep.subr.bf16.mxu0 0
      %765 = vmatpush1.bf16.msra.mxu0 0
      %766 = vmatprep.subr.bf16.mxu0 0
      %767 = vmatpush1.bf16.msra.mxu0 0
      %768 = vmatprep.subr.bf16.mxu0 0
      %769 = vmatpush1.bf16.msra.mxu0 0
      %770 = vmatprep.subr.bf16.mxu0 0
      %771 = vmatpush1.bf16.msra.mxu0 0
      %772 = vmatprep.subr.bf16.mxu0 0
      %773 = vmatpush1.bf16.msra.mxu0 0
      %774 = vmatprep.subr.bf16.mxu0 0
      %775 = vmatpush1.bf16.msra.mxu0 0
      %776 = vmatprep.mubr.bf16.mxu0 0
      %777 = vmatmul.mubr.bf16.gmra.mrb[0].mxu0 %v692
      %v778 = vpop.f32.mrb[0].mxu0
      %v779 = vadd.f32 0.0, %v778
      %v780 = vpop.f32.mrb[0].mxu0
      %v781 = vpop.f32.mrb[0].mxu0
      %v782 = vpop.f32.mrb[0].mxu0
      %783 = vdwg.mxu0
      %v784 = vadd.f32 %v666, %v738
      %v785 = vadd.f32 %v667, %v740
      %v786 = vadd.f32 %v668, %v779
      %s787 = scalar_lea.vmem %s1, 20
      %v788 = vld [vmem:[%s787] sm:$0xf]
      %789 = vrot.lane.b32.xlu0 %v247, 110
      %v790 = vpop.permute.xlu0 %789
      %791 = vrot.lane.b32.xlu0 %v246, 110
      %v792 = vpop.permute.xlu0 %791
      %793 = vrot.lane.b32.xlu0 %v248, 110
      %v794 = vpop.permute.xlu0 %793
      %795 = vrot.lane.b32.xlu0 %v678, 110
      %v796 = vpop.permute.xlu0 %795
      %vm797 = vcmask 900096
      %v798 = vsel %vm797, %v790, %v792
      %v799 = vsel %vm797, %v792, %v794
      %v800 = vsel %vm797, %v794, %v796
      %v802 = vsel %vm261, %v788, 0
      %v805 = vsel %vm265, %v798, 0
      %v808 = vsel %vm265, %v799, 0
      %v811 = vsel %vm265, %v800, 0
      %813 = vmatprep.subr.bf16.mxu0 %v808
      %814 = vmatpush1.bf16.msra.mxu0 %v805
      %815 = vmatprep.subr.bf16.mxu0 0
      %816 = vmatpush1.bf16.msra.mxu0 0
      %817 = vmatprep.subr.bf16.mxu0 0
      %818 = vmatpush1.bf16.msra.mxu0 0
      %819 = vmatprep.subr.bf16.mxu0 0
      %820 = vmatpush1.bf16.msra.mxu0 0
      %821 = vmatprep.subr.bf16.mxu0 0
      %822 = vmatpush1.bf16.msra.mxu0 0
      %823 = vmatprep.subr.bf16.mxu0 0
      %824 = vmatpush1.bf16.msra.mxu0 0
      %825 = vmatprep.subr.bf16.mxu0 0
      %826 = vmatpush1.bf16.msra.mxu0 0
      %827 = vmatprep.subr.bf16.mxu0 0
      %828 = vmatpush1.bf16.msra.mxu0 0
      %829 = vmatprep.subr.bf16.mxu0 0
      %830 = vmatpush1.bf16.msra.mxu0 0
      %831 = vmatprep.subr.bf16.mxu0 0
      %832 = vmatpush1.bf16.msra.mxu0 0
      %833 = vmatprep.subr.bf16.mxu0 0
      %834 = vmatpush1.bf16.msra.mxu0 0
      %835 = vmatprep.subr.bf16.mxu0 0
      %836 = vmatpush1.bf16.msra.mxu0 0
      %837 = vmatprep.subr.bf16.mxu0 0
      %838 = vmatpush1.bf16.msra.mxu0 0
      %839 = vmatprep.subr.bf16.mxu0 0
      %840 = vmatpush1.bf16.msra.mxu0 0
      %841 = vmatprep.subr.bf16.mxu0 0
      %842 = vmatpush1.bf16.msra.mxu0 0
      %843 = vmatprep.subr.bf16.mxu0 0
      %844 = vmatpush1.bf16.msra.mxu0 0
      %845 = vmatprep.mubr.bf16.mxu0 0
      %846 = vmatmul.mubr.bf16.gmra.mrb[0].mxu0 %v802
      %v847 = vpop.f32.mrb[0].mxu0
      %v848 = vadd.f32 0.0, %v847
      %v849 = vpop.f32.mrb[0].mxu0
      %v850 = vadd.f32 0.0, %v849
      %v851 = vpop.f32.mrb[0].mxu0
      %v852 = vpop.f32.mrb[0].mxu0
      %853 = vdwg.mxu0
      %854 = vmatprep.subr.bf16.mxu0 0
      %855 = vmatpush1.bf16.msra.mxu0 %v811
      %856 = vmatprep.subr.bf16.mxu0 0
      %857 = vmatpush1.bf16.msra.mxu0 0
      %858 = vmatprep.subr.bf16.mxu0 0
      %859 = vmatpush1.bf16.msra.mxu0 0
      %860 = vmatprep.subr.bf16.mxu0 0
      %861 = vmatpush1.bf16.msra.mxu0 0
      %862 = vmatprep.subr.bf16.mxu0 0
      %863 = vmatpush1.bf16.msra.mxu0 0
      %864 = vmatprep.subr.bf16.mxu0 0
      %865 = vmatpush1.bf16.msra.mxu0 0
      %866 = vmatprep.subr.bf16.mxu0 0
      %867 = vmatpush1.bf16.msra.mxu0 0
      %868 = vmatprep.subr.bf16.mxu0 0
      %869 = vmatpush1.bf16.msra.mxu0 0
      %870 = vmatprep.subr.bf16.mxu0 0
      %871 = vmatpush1.bf16.msra.mxu0 0
      %872 = vmatprep.subr.bf16.mxu0 0
      %873 = vmatpush1.bf16.msra.mxu0 0
      %874 = vmatprep.subr.bf16.mxu0 0
      %875 = vmatpush1.bf16.msra.mxu0 0
      %876 = vmatprep.subr.bf16.mxu0 0
      %877 = vmatpush1.bf16.msra.mxu0 0
      %878 = vmatprep.subr.bf16.mxu0 0
      %879 = vmatpush1.bf16.msra.mxu0 0
      %880 = vmatprep.subr.bf16.mxu0 0
      %881 = vmatpush1.bf16.msra.mxu0 0
      %882 = vmatprep.subr.bf16.mxu0 0
      %883 = vmatpush1.bf16.msra.mxu0 0
      %884 = vmatprep.subr.bf16.mxu0 0
      %885 = vmatpush1.bf16.msra.mxu0 0
      %886 = vmatprep.mubr.bf16.mxu0 0
      %887 = vmatmul.mubr.bf16.gmra.mrb[0].mxu0 %v802
      %v888 = vpop.f32.mrb[0].mxu0
      %v889 = vadd.f32 0.0, %v888
      %v890 = vpop.f32.mrb[0].mxu0
      %v891 = vpop.f32.mrb[0].mxu0
      %v892 = vpop.f32.mrb[0].mxu0
      %893 = vdwg.mxu0
      %v894 = vadd.f32 %v784, %v848
      %v895 = vadd.f32 %v785, %v850
      %v896 = vadd.f32 %v786, %v889
      %s897 = scalar_lea.vmem %s1, 24
      %v898 = vld [vmem:[%s897] sm:$0xf]
      %899 = vrot.lane.b32.xlu0 %v247, 109
      %v900 = vpop.permute.xlu0 %899
      %901 = vrot.lane.b32.xlu0 %v246, 109
      %v902 = vpop.permute.xlu0 %901
      %903 = vrot.lane.b32.xlu0 %v248, 109
      %v904 = vpop.permute.xlu0 %903
      %905 = vrot.lane.b32.xlu0 %v678, 109
      %v906 = vpop.permute.xlu0 %905
      %vm907 = vcmask 891904
      %v908 = vsel %vm907, %v900, %v902
      %v909 = vsel %vm907, %v902, %v904
      %v910 = vsel %vm907, %v904, %v906
      %v912 = vsel %vm261, %v898, 0
      %v915 = vsel %vm265, %v908, 0
      %v918 = vsel %vm265, %v909, 0
      %v921 = vsel %vm265, %v910, 0
      %923 = vmatprep.subr.bf16.mxu0 %v918
      %924 = vmatpush1.bf16.msra.mxu0 %v915
      %925 = vmatprep.subr.bf16.mxu0 0
      %926 = vmatpush1.bf16.msra.mxu0 0
      %927 = vmatprep.subr.bf16.mxu0 0
      %928 = vmatpush1.bf16.msra.mxu0 0
      %929 = vmatprep.subr.bf16.mxu0 0
      %930 = vmatpush1.bf16.msra.mxu0 0
      %931 = vmatprep.subr.bf16.mxu0 0
      %932 = vmatpush1.bf16.msra.mxu0 0
      %933 = vmatprep.subr.bf16.mxu0 0
      %934 = vmatpush1.bf16.msra.mxu0 0
      %935 = vmatprep.subr.bf16.mxu0 0
      %936 = vmatpush1.bf16.msra.mxu0 0
      %937 = vmatprep.subr.bf16.mxu0 0
      %938 = vmatpush1.bf16.msra.mxu0 0
      %939 = vmatprep.subr.bf16.mxu0 0
      %940 = vmatpush1.bf16.msra.mxu0 0
      %941 = vmatprep.subr.bf16.mxu0 0
      %942 = vmatpush1.bf16.msra.mxu0 0
      %943 = vmatprep.subr.bf16.mxu0 0
      %944 = vmatpush1.bf16.msra.mxu0 0
      %945 = vmatprep.subr.bf16.mxu0 0
      %946 = vmatpush1.bf16.msra.mxu0 0
      %947 = vmatprep.subr.bf16.mxu0 0
      %948 = vmatpush1.bf16.msra.mxu0 0
      %949 = vmatprep.subr.bf16.mxu0 0
      %950 = vmatpush1.bf16.msra.mxu0 0
      %951 = vmatprep.subr.bf16.mxu0 0
      %952 = vmatpush1.bf16.msra.mxu0 0
      %953 = vmatprep.subr.bf16.mxu0 0
      %954 = vmatpush1.bf16.msra.mxu0 0
      %955 = vmatprep.mubr.bf16.mxu0 0
      %956 = vmatmul.mubr.bf16.gmra.mrb[0].mxu0 %v912
      %v957 = vpop.f32.mrb[0].mxu0
      %v958 = vadd.f32 0.0, %v957
      %v959 = vpop.f32.mrb[0].mxu0
      %v960 = vadd.f32 0.0, %v959
      %v961 = vpop.f32.mrb[0].mxu0
      %v962 = vpop.f32.mrb[0].mxu0
      %963 = vdwg.mxu0
      %964 = vmatprep.subr.bf16.mxu0 0
      %965 = vmatpush1.bf16.msra.mxu0 %v921
      %966 = vmatprep.subr.bf16.mxu0 0
      %967 = vmatpush1.bf16.msra.mxu0 0
      %968 = vmatprep.subr.bf16.mxu0 0
      %969 = vmatpush1.bf16.msra.mxu0 0
      %970 = vmatprep.subr.bf16.mxu0 0
      %971 = vmatpush1.bf16.msra.mxu0 0
      %972 = vmatprep.subr.bf16.mxu0 0
      %973 = vmatpush1.bf16.msra.mxu0 0
      %974 = vmatprep.subr.bf16.mxu0 0
      %975 = vmatpush1.bf16.msra.mxu0 0
      %976 = vmatprep.subr.bf16.mxu0 0
      %977 = vmatpush1.bf16.msra.mxu0 0
      %978 = vmatprep.subr.bf16.mxu0 0
      %979 = vmatpush1.bf16.msra.mxu0 0
      %980 = vmatprep.subr.bf16.mxu0 0
      %981 = vmatpush1.bf16.msra.mxu0 0
      %982 = vmatprep.subr.bf16.mxu0 0
      %983 = vmatpush1.bf16.msra.mxu0 0
      %984 = vmatprep.subr.bf16.mxu0 0
      %985 = vmatpush1.bf16.msra.mxu0 0
      %986 = vmatprep.subr.bf16.mxu0 0
      %987 = vmatpush1.bf16.msra.mxu0 0
      %988 = vmatprep.subr.bf16.mxu0 0
      %989 = vmatpush1.bf16.msra.mxu0 0
      %990 = vmatprep.subr.bf16.mxu0 0
      %991 = vmatpush1.bf16.msra.mxu0 0
      %992 = vmatprep.subr.bf16.mxu0 0
      %993 = vmatpush1.bf16.msra.mxu0 0
      %994 = vmatprep.subr.bf16.mxu0 0
      %995 = vmatpush1.bf16.msra.mxu0 0
      %996 = vmatprep.mubr.bf16.mxu0 0
      %997 = vmatmul.mubr.bf16.gmra.mrb[0].mxu0 %v912
      %v998 = vpop.f32.mrb[0].mxu0
      %v999 = vadd.f32 0.0, %v998
      %v1000 = vpop.f32.mrb[0].mxu0
      %v1001 = vpop.f32.mrb[0].mxu0
      %v1002 = vpop.f32.mrb[0].mxu0
      %1003 = vdwg.mxu0
      %v1004 = vadd.f32 %v894, %v958
      %v1005 = vadd.f32 %v895, %v960
      %v1006 = vadd.f32 %v896, %v999
      %v1007 = vld [vmem:[%s3] sm:$0xff]
      %1009 = vset.pattern.permute.xlu0 0
      %1010 = vperm.xlu0 %1009, %v1007
      %v1011 = vpop.permute.xlu0 %1010
      %v1013 = vmul.f32 %v1004, %v1011
      %v1014 = vmul.f32 %v1005, %v1011
      %v1015 = vmul.f32 %v1006, %v1011
      %v1016 = vld [vmem:[%s4] sm:$0xff]
      %1018 = vset.pattern.permute.xlu0 0
      %1019 = vperm.xlu0 %1018, %v1016
      %v1020 = vpop.permute.xlu0 %1019
      %v1022 = vadd.f32 %v1013, %v1020
      %v1023 = vadd.f32 %v1014, %v1020
      %v1024 = vadd.f32 %v1015, %v1020
      %v1025 = vmax.f32 %v1022, 0.0
      %v1026 = vmax.f32 %v1023, 0.0
      %v1027 = vmax.f32 %v1024, 0.0
      %v1028 = vld [vmem:[%s2] sm:$0x7]
      %v1030 = vlaneseq
      %v1031 = vshrl.u32 %v1030, 7
      %v1032 = vsub.s32 0, %v1031
      %v1033 = vrot.slane %v1028, %v1032
      %v1034 = vlaneseq
      %v1035 = vshrl.u32 %v1034, 7
      %v1036 = vsub.s32 1, %v1035
      %v1037 = vrot.slane %v1028, %v1036
      %v1038 = vlaneseq
      %v1039 = vshrl.u32 %v1038, 7
      %v1040 = vsub.s32 2, %v1039
      %v1041 = vrot.slane %v1028, %v1040
      %v1045 = vmul.f32 %v1025, %v1033
      %v1046 = vmul.f32 %v1026, %v1037
      %v1047 = vmul.f32 %v1027, %v1041
      %v1048 = vpack.c.bf16 %v1045, %v1045
      %v1049 = vpack.c.bf16 %v1046, %v1046
      %v1050 = vpack.c.bf16 %v1047, %v1047
      %1051 = vst [vmem:[%s224] sm:$0xf] 0
      %v1055 = vunpack.c.l.b16 %v1048
      %v1056 = vunpack.c.l.b16 %v1049
      %v1057 = vunpack.c.l.b16 %v1050
      %v1058 = vpack.c.b16 %v1056, %v1055
      %v1059 = vpack.c.b16 %v1057, %v1057
      %1062 = vst [vmem:[%s224 + $0x4] sm:$0xff] %v1058
      %1063 = vst [vmem:[%s224 + $0xc] sm:$0xf] %v1059
      %1064 = vst [vmem:[%s224 + $0x10] sm:$0xf] 0
      %p1065 = scmp.lt.s32.totalorder %s16, 1
      %s1066 = scalar_select %p1065, %s16, 1
      %s1067 = smul.addr %s1066, 5
      %s1068 = smul.addr %s1067, 4
      %s1069 = scalar_lea.vmem %s5, %s1068
      // Predicated region
      $region41: #{resblock_enc_forward.5} parent=39 // pred_check
        %p1070 = pneg %p144
      $region42: #{resblock_enc_forward.5} parent=39 // pred_check_branch
        %1072 = sbr.rel (%p1070) target = $region44
      $region43: #{resblock_enc_forward.5} parent=39 // pred_region
        _
      $region44: #{resblock_enc_forward.5} parent=39 // pred_fallthru
        _
    $region40: #{resblock_enc_forward.5} parent=5 // pred_fallthru
      _
    %p1073 = scmp.le.s32.totalorder 2, %s11
    // Predicated region
    $region45: #{resblock_enc_forward.5} parent=5 // pred_check
      %p1074 = pneg %p1073
    $region46: #{resblock_enc_forward.5} parent=5 // pred_check_branch
      %1076 = sbr.rel (%p1074) target = $region48
    $region47: #{resblock_enc_forward.5} parent=5 // pred_region
      %s1077 = ssub.s32 %s11, 2
      // Predicated region
      $region49: #{resblock_enc_forward.5} parent=47 // pred_check
        %p1078 = pneg %p150
      $region50: #{resblock_enc_forward.5} parent=47 // pred_check_branch
        %1080 = sbr.rel (%p1078) target = $region52
      $region51: #{resblock_enc_forward.5} parent=47 // pred_region
        %p1081 = scmp.lt.s32.totalorder %s17, 1
        %s1082 = scalar_select %p1081, %s17, 1
        %s1083 = smul.addr %s1082, 5
        %s1084 = smul.addr %s1083, 4
        %s1085 = scalar_lea.vmem %s5, %s1084
      $region52: #{resblock_enc_forward.5} parent=47 // pred_fallthru
        _
    $region48: #{resblock_enc_forward.5} parent=5 // pred_fallthru
      _
  $region6: #{resblock_enc_forward.5} parent=0 // loop_footer
    %s15 = sadd.s32 1, %s11
  $region7: #{resblock_enc_forward.5} parent=0 // loop_footer_branch
    %10 = sbr.rel target = $region3
  $region8: #{resblock_enc_forward.5} parent=0 // loop_exit
    _

// kernel: resblock_enc_forward.7
$region0: #{resblock_enc_forward.7}
  #allocation0 [shape = 'u32[]', space=smem, size = 0x4, offset = 0x4, fixed_abs, tag = 'smem constant byte address 0x4 - core index']
  #allocation1 [shape = 'u32[144,128]{1,0:T(1,128)}', space=vmem, size = 0x12000, scoped, tag = 'internal scratch']
  %s0 = inlined_call_operand.vmem [shape: bf16[2,8,640], index: 0, kind: input, shape index: {}]
  %s1 = inlined_call_operand.vmem [shape: bf16[7,8,8], index: 1, kind: input, shape index: {}]
  %s2 = inlined_call_operand.vmem [shape: f32[1,384], index: 2, kind: input, shape index: {}]
  %s3 = inlined_call_operand.vmem [shape: f32[8,1], index: 3, kind: input, shape index: {}]
  %s4 = inlined_call_operand.vmem [shape: f32[8,1], index: 4, kind: input, shape index: {}]
  %s5 = inlined_call_operand.vmem [shape: f32[2,8,640], index: 5, kind: output, shape index: {}]
  %s6 = sld [smem:[#allocation0]]
  $region53: #{resblock_enc_forward.7} parent=0
    _
  %s8 = ssub.s32 1, %s6
  %s9 = scalar_select 0, %s8, %s6
  loop: start=0, step=1, limit=4
  $region2: #{resblock_enc_forward.7} parent=0 // loop_pre_header
    _
  $region3: #{resblock_enc_forward.7} parent=0 // loop_header
    %s11 = sphi 0, %s15
    %p12 = scmp.ge.s32.totalorder %s11, 4
    %s21 = sphi 0, %s23
    %s24 = sphi 0, %s21
    %s25 = sphi 0, %s24
    %s41 = sphi 0, %s25
    %s45 = sphi 0, %s45
    %s47 = sphi 0, %s45
    %s48 = sphi 0, %s47
    %s62 = sphi 0, %s48
    %s66 = sphi 0, %s66
    %s68 = sphi 0, %s66
    %s69 = sphi 0, %s68
    %s83 = sphi 0, %s69
    %s87 = sphi 0, %s87
    %s89 = sphi 0, %s87
    %s90 = sphi 0, %s89
    %s104 = sphi 0, %s90
    %s108 = sphi 0, %s108
    %s110 = sphi 0, %s108
    %s111 = sphi 0, %s110
    %s125 = sphi 0, %s111
    %s131 = sphi 0, %s133
    %s134 = sphi 0, %s131
    %s135 = sphi 0, %s134
    %s151 = sphi 0, %s135
  $region4: #{resblock_enc_forward.7} parent=0 // loop_header_branch
    %14 = sbr.rel (%p12) target = $region8
  $region5: #{resblock_enc_forward.7} parent=0 // loop_body
    %s16 = ssub.s32 %s11, 1
    %s17 = ssub.s32 %s11, 2
    %s18 = sadd.s32 %s11, 1
    %s19 = ssub.s32 %s11, %s18
    %p20 = scmp.eq.s32.totalorder %s19, 0
    %s22 = sadd.s32 %s21, 1
    %s23 = scalar_select %p20, %s21, %s22
    %p26 = pneg %p20
    %p27 = scmp.eq.s32.totalorder %s11, 1
    %p28 = por %p26, %p27
    %p29 = scmp.ne.s32.totalorder %s21, %s24
    %p30 = scmp.eq.s32.totalorder %s11, 0
    %p31 = por %p29, %p30
    %p32 = scmp.ne.s32.totalorder %s21, %s24
    %p33 = scmp.eq.s32.totalorder %s16, 1
    %p34 = por %p32, %p33
    %p35 = scmp.ne.s32.totalorder %s24, %s25
    %p36 = scmp.eq.s32.totalorder %s16, 0
    %p37 = por %p35, %p36
    %p38 = scmp.ne.s32.totalorder %s24, %s25
    %p39 = scmp.eq.s32.totalorder %s17, 1
    %p40 = por %p38, %p39
    %p42 = scmp.ne.s32.totalorder %s25, %s41
    %p43 = scmp.eq.s32.totalorder %s17, 0
    %p44 = por %p42, %p43
    %s46 = sadd.s32 %s45, 1
    %p49 = scmp.eq.s32.totalorder %s11, 1
    %p50 = scmp.ne.s32.totalorder %s45, %s47
    %p51 = scmp.eq.s32.totalorder %s11, 0
    %p52 = por %p50, %p51
    %p53 = scmp.ne.s32.totalorder %s45, %s47
    %p54 = scmp.eq.s32.totalorder %s16, 1
    %p55 = por %p53, %p54
    %p56 = scmp.ne.s32.totalorder %s47, %s48
    %p57 = scmp.eq.s32.totalorder %s16, 0
    %p58 = por %p56, %p57
    %p59 = scmp.ne.s32.totalorder %s47, %s48
    %p60 = scmp.eq.s32.totalorder %s17, 1
    %p61 = por %p59, %p60
    %p63 = scmp.ne.s32.totalorder %s48, %s62
    %p64 = scmp.eq.s32.totalorder %s17, 0
    %p65 = por %p63, %p64
    %s67 = sadd.s32 %s66, 1
    %p70 = scmp.eq.s32.totalorder %s11, 1
    %p71 = scmp.ne.s32.totalorder %s66, %s68
    %p72 = scmp.eq.s32.totalorder %s11, 0
    %p73 = por %p71, %p72
    %p74 = scmp.ne.s32.totalorder %s66, %s68
    %p75 = scmp.eq.s32.totalorder %s16, 1
    %p76 = por %p74, %p75
    %p77 = scmp.ne.s32.totalorder %s68, %s69
    %p78 = scmp.eq.s32.totalorder %s16, 0
    %p79 = por %p77, %p78
    %p80 = scmp.ne.s32.totalorder %s68, %s69
    %p81 = scmp.eq.s32.totalorder %s17, 1
    %p82 = por %p80, %p81
    %p84 = scmp.ne.s32.totalorder %s69, %s83
    %p85 = scmp.eq.s32.totalorder %s17, 0
    %p86 = por %p84, %p85
    %s88 = sadd.s32 %s87, 1
    %p91 = scmp.eq.s32.totalorder %s11, 1
    %p92 = scmp.ne.s32.totalorder %s87, %s89
    %p93 = scmp.eq.s32.totalorder %s11, 0
    %p94 = por %p92, %p93
    %p95 = scmp.ne.s32.totalorder %s87, %s89
    %p96 = scmp.eq.s32.totalorder %s16, 1
    %p97 = por %p95, %p96
    %p98 = scmp.ne.s32.totalorder %s89, %s90
    %p99 = scmp.eq.s32.totalorder %s16, 0
    %p100 = por %p98, %p99
    %p101 = scmp.ne.s32.totalorder %s89, %s90
    %p102 = scmp.eq.s32.totalorder %s17, 1
    %p103 = por %p101, %p102
    %p105 = scmp.ne.s32.totalorder %s90, %s104
    %p106 = scmp.eq.s32.totalorder %s17, 0
    %p107 = por %p105, %p106
    %s109 = sadd.s32 %s108, 1
    %p112 = scmp.eq.s32.totalorder %s11, 1
    %p113 = scmp.ne.s32.totalorder %s108, %s110
    %p114 = scmp.eq.s32.totalorder %s11, 0
    %p115 = por %p113, %p114
    %p116 = scmp.ne.s32.totalorder %s108, %s110
    %p117 = scmp.eq.s32.totalorder %s16, 1
    %p118 = por %p116, %p117
    %p119 = scmp.ne.s32.totalorder %s110, %s111
    %p120 = scmp.eq.s32.totalorder %s16, 0
    %p121 = por %p119, %p120
    %p122 = scmp.ne.s32.totalorder %s110, %s111
    %p123 = scmp.eq.s32.totalorder %s17, 1
    %p124 = por %p122, %p123
    %p126 = scmp.ne.s32.totalorder %s111, %s125
    %p127 = scmp.eq.s32.totalorder %s17, 0
    %p128 = por %p126, %p127
    %s129 = ssub.s32 %s11, %s18
    %p130 = scmp.eq.s32.totalorder %s129, 0
    %s132 = sadd.s32 %s131, 1
    %s133 = scalar_select %p130, %s131, %s132
    %p136 = pneg %p130
    %p137 = scmp.eq.s32.totalorder %s11, 1
    %p138 = por %p136, %p137
    %p139 = scmp.ne.s32.totalorder %s131, %s134
    %p140 = scmp.eq.s32.totalorder %s11, 0
    %p141 = por %p139, %p140
    %p142 = scmp.ne.s32.totalorder %s131, %s134
    %p143 = scmp.eq.s32.totalorder %s16, 1
    %p144 = por %p142, %p143
    %p145 = scmp.ne.s32.totalorder %s134, %s135
    %p146 = scmp.eq.s32.totalorder %s16, 0
    %p147 = por %p145, %p146
    %p148 = scmp.ne.s32.totalorder %s134, %s135
    %p149 = scmp.eq.s32.totalorder %s17, 1
    %p150 = por %p148, %p149
    %p152 = scmp.ne.s32.totalorder %s135, %s151
    %p153 = scmp.eq.s32.totalorder %s17, 0
    %p154 = por %p152, %p153
    %p155 = scmp.le.s32.totalorder 1, %s11
    %p156 = scmp.lt.s32.totalorder %s11, 3
    %p157 = pnand %p155, %p156
    %p158 = pneg %p157
    // Predicated region
    $region9: #{resblock_enc_forward.7} parent=5 // pred_check
      _
    $region10: #{resblock_enc_forward.7} parent=5 // pred_check_branch
      %160 = sbr.rel (%p157) target = $region12
    $region11: #{resblock_enc_forward.7} parent=5 // pred_region
      %s161 = ssub.s32 %s11, 1
      // Predicated region
      $region13: #{resblock_enc_forward.7} parent=11 // pred_check
        %p162 = pneg %p58
      $region14: #{resblock_enc_forward.7} parent=11 // pred_check_branch
        %164 = sbr.rel (%p162) target = $region16
      $region15: #{resblock_enc_forward.7} parent=11 // pred_region
        _
      $region16: #{resblock_enc_forward.7} parent=11 // pred_fallthru
        _
      // Predicated region
      $region17: #{resblock_enc_forward.7} parent=11 // pred_check
        %p165 = pneg %p79
      $region18: #{resblock_enc_forward.7} parent=11 // pred_check_branch
        %167 = sbr.rel (%p165) target = $region20
      $region19: #{resblock_enc_forward.7} parent=11 // pred_region
        _
      $region20: #{resblock_enc_forward.7} parent=11 // pred_fallthru
        _
      // Predicated region
      $region21: #{resblock_enc_forward.7} parent=11 // pred_check
        %p168 = pneg %p100
      $region22: #{resblock_enc_forward.7} parent=11 // pred_check_branch
        %170 = sbr.rel (%p168) target = $region24
      $region23: #{resblock_enc_forward.7} parent=11 // pred_region
        _
      $region24: #{resblock_enc_forward.7} parent=11 // pred_fallthru
        _
      // Predicated region
      $region25: #{resblock_enc_forward.7} parent=11 // pred_check
        %p171 = pneg %p121
      $region26: #{resblock_enc_forward.7} parent=11 // pred_check_branch
        %173 = sbr.rel (%p171) target = $region28
      $region27: #{resblock_enc_forward.7} parent=11 // pred_region
        _
      $region28: #{resblock_enc_forward.7} parent=11 // pred_fallthru
        _
    $region12: #{resblock_enc_forward.7} parent=5 // pred_fallthru
      _
    %p174 = scmp.lt.s32.totalorder %s11, 2
    // Predicated region
    $region29: #{resblock_enc_forward.7} parent=5 // pred_check
      %p175 = pneg %p174
    $region30: #{resblock_enc_forward.7} parent=5 // pred_check_branch
      %177 = sbr.rel (%p175) target = $region32
    $region31: #{resblock_enc_forward.7} parent=5 // pred_region
      // Predicated region
      $region33: #{resblock_enc_forward.7} parent=31 // pred_check
        %p178 = pneg %p31
      $region34: #{resblock_enc_forward.7} parent=31 // pred_check_branch
        %180 = sbr.rel (%p178) target = $region36
      $region35: #{resblock_enc_forward.7} parent=31 // pred_region
        %p181 = scmp.lt.s32.totalorder %s11, 1
        %s182 = scalar_select %p181, %s11, 1
        %s183 = smul.addr %s182, 5
        %s184 = smul.addr %s183, 4
        %s185 = scalar_lea.vmem %s0, %s184
      $region36: #{resblock_enc_forward.7} parent=31 // pred_fallthru
        _
    $region32: #{resblock_enc_forward.7} parent=5 // pred_fallthru
      _
    %p186 = scmp.le.s32.totalorder 1, %s11
    %p187 = scmp.lt.s32.totalorder %s11, 3
    %p188 = pnand %p186, %p187
    %p189 = pneg %p188
    // Predicated region
    $region37: #{resblock_enc_forward.7} parent=5 // pred_check
      _
    $region38: #{resblock_enc_forward.7} parent=5 // pred_check_branch
      %191 = sbr.rel (%p188) target = $region40
    $region39: #{resblock_enc_forward.7} parent=5 // pred_region
      %s192 = ssub.s32 %s11, 1
      %p193 = scmp.lt.s32.totalorder %s16, 1
      %s194 = scalar_select %p193, %s16, 1
      %s195 = smul.addr %s194, 5
      %s196 = smul.addr %s195, 4
      %s197 = scalar_lea.vmem %s0, %s196
      %p198 = pneg %p37
      %p199 = pneg %p34
      %p200 = pneg %p58
      %p201 = pneg %p55
      %p202 = pneg %p79
      %p203 = pneg %p76
      %p204 = pneg %p100
      %p205 = pneg %p97
      %p206 = pneg %p121
      %p207 = pneg %p118
      %p208 = pneg %p147
      %p209 = pneg %p144
      %p210 = scmp.lt.s32.totalorder %s16, 1
      %s211 = scalar_select %p210, %s16, 1
      %s212 = smul.addr %s211, 5
      %s213 = smul.addr %s212, 8
      %s214 = scalar_lea.vmem %s5, %s213
      %p215 = scmp.lt.s32.totalorder %s16, 1
      %s216 = scalar_select %p215, %s16, 1
      %s217 = smul.addr %s216, 5
      %s218 = smul.addr %s217, 4
      %s219 = scalar_lea.vmem %s0, %s218
      %p220 = scmp.lt.s32.totalorder %s16, 1
      %s221 = scalar_select %p220, %s16, 1
      %s222 = smul.addr %s221, 5
      %s223 = smul.addr %s222, 8
      %s224 = scalar_lea.vmem %s5, %s223
      %v226 = vld [vmem:[%s219] sm:$0xff]
      %v227 = vld [vmem:[%s219 + $0x8] sm:$0xff]
      %v228 = vld [vmem:[%s219 + $0x10] sm:$0xf]
      %v229 = vld [vmem:[%s1] sm:$0xf]
      %s230 = scalar_lea.vmem %s1, 4
      %v231 = vld [vmem:[%s230] sm:$0xf]
      %v234 = vunpack.c.l.b16 %v226
      %v235 = vunpack.c.h.b16 %v226
      %v236 = vunpack.c.l.b16 %v227
      %v237 = vunpack.c.h.b16 %v227
      %v238 = vpack.c.b16 %v234, %v234
      %v239 = vpack.c.b16 %v235, %v235
      %v240 = vpack.c.b16 %v236, %v236
      %v241 = vpack.c.b16 %v237, %v237
      %242 = vrot.lane.b32.xlu0 %v238, 18
      %v243 = vpop.permute.xlu0 %242
      %244 = vrot.lane.b32.xlu0 %v239, 18
      %v245 = vpop.permute.xlu0 %244
      %246 = vrot.lane.b32.xlu0 %v240, 18
      %v247 = vpop.permute.xlu0 %246
      %248 = vrot.lane.b32.xlu0 %v241, 18
      %v249 = vpop.permute.xlu0 %248
      %vm250 = vcmask 146432
      %v251 = vsel %vm250, %v243, %v245
      %v252 = vsel %vm250, %v245, %v247
      %v253 = vsel %vm250, %v247, %v249
      %vm254 = vcmask 64512
      %v256 = vsel %vm254, %v231, 0
      %vm258 = vcmask 1043456
      %v260 = vsel %vm258, %v251, 0
      %v263 = vsel %vm258, %v252, 0
      %v266 = vsel %vm258, %v253, 0
      %268 = vmatprep.subr.bf16.mxu0 %v263
      %269 = vmatpush1.bf16.msra.mxu0 %v260
      %270 = vmatprep.subr.bf16.mxu0 0
      %271 = vmatpush1.bf16.msra.mxu0 0
      %272 = vmatprep.subr.bf16.mxu0 0
      %273 = vmatpush1.bf16.msra.mxu0 0
      %274 = vmatprep.subr.bf16.mxu0 0
      %275 = vmatpush1.bf16.msra.mxu0 0
      %276 = vmatprep.subr.bf16.mxu0 0
      %277 = vmatpush1.bf16.msra.mxu0 0
      %278 = vmatprep.subr.bf16.mxu0 0
      %279 = vmatpush1.bf16.msra.mxu0 0
      %280 = vmatprep.subr.bf16.mxu0 0
      %281 = vmatpush1.bf16.msra.mxu0 0
      %282 = vmatprep.subr.bf16.mxu0 0
      %283 = vmatpush1.bf16.msra.mxu0 0
      %284 = vmatprep.subr.bf16.mxu0 0
      %285 = vmatpush1.bf16.msra.mxu0 0
      %286 = vmatprep.subr.bf16.mxu0 0
      %287 = vmatpush1.bf16.msra.mxu0 0
      %288 = vmatprep.subr.bf16.mxu0 0
      %289 = vmatpush1.bf16.msra.mxu0 0
      %290 = vmatprep.subr.bf16.mxu0 0
      %291 = vmatpush1.bf16.msra.mxu0 0
      %292 = vmatprep.subr.bf16.mxu0 0
      %293 = vmatpush1.bf16.msra.mxu0 0
      %294 = vmatprep.subr.bf16.mxu0 0
      %295 = vmatpush1.bf16.msra.mxu0 0
      %296 = vmatprep.subr.bf16.mxu0 0
      %297 = vmatpush1.bf16.msra.mxu0 0
      %298 = vmatprep.subr.bf16.mxu0 0
      %299 = vmatpush1.bf16.msra.mxu0 0
      %300 = vmatprep.mubr.bf16.mxu0 0
      %301 = vmatmul.mubr.bf16.gmra.mrb[0].mxu0 %v256
      %v302 = vpop.f32.mrb[0].mxu0
      %v303 = vadd.f32 0.0, %v302
      %v304 = vpop.f32.mrb[0].mxu0
      %v305 = vadd.f32 0.0, %v304
      %v306 = vpop.f32.mrb[0].mxu0
      %v307 = vpop.f32.mrb[0].mxu0
      %308 = vdwg.mxu0
      %309 = vmatprep.subr.bf16.mxu0 0
      %310 = vmatpush1.bf16.msra.mxu0 %v266
      %311 = vmatprep.subr.bf16.mxu0 0
      %312 = vmatpush1.bf16.msra.mxu0 0
      %313 = vmatprep.subr.bf16.mxu0 0
      %314 = vmatpush1.bf16.msra.mxu0 0
      %315 = vmatprep.subr.bf16.mxu0 0
      %316 = vmatpush1.bf16.msra.mxu0 0
      %317 = vmatprep.subr.bf16.mxu0 0
      %318 = vmatpush1.bf16.msra.mxu0 0
      %319 = vmatprep.subr.bf16.mxu0 0
      %320 = vmatpush1.bf16.msra.mxu0 0
      %321 = vmatprep.subr.bf16.mxu0 0
      %322 = vmatpush1.bf16.msra.mxu0 0
      %323 = vmatprep.subr.bf16.mxu0 0
      %324 = vmatpush1.bf16.msra.mxu0 0
      %325 = vmatprep.subr.bf16.mxu0 0
      %326 = vmatpush1.bf16.msra.mxu0 0
      %327 = vmatprep.subr.bf16.mxu0 0
      %328 = vmatpush1.bf16.msra.mxu0 0
      %329 = vmatprep.subr.bf16.mxu0 0
      %330 = vmatpush1.bf16.msra.mxu0 0
      %331 = vmatprep.subr.bf16.mxu0 0
      %332 = vmatpush1.bf16.msra.mxu0 0
      %333 = vmatprep.subr.bf16.mxu0 0
      %334 = vmatpush1.bf16.msra.mxu0 0
      %335 = vmatprep.subr.bf16.mxu0 0
      %336 = vmatpush1.bf16.msra.mxu0 0
      %337 = vmatprep.subr.bf16.mxu0 0
      %338 = vmatpush1.bf16.msra.mxu0 0
      %339 = vmatprep.subr.bf16.mxu0 0
      %340 = vmatpush1.bf16.msra.mxu0 0
      %341 = vmatprep.mubr.bf16.mxu0 0
      %342 = vmatmul.mubr.bf16.gmra.mrb[0].mxu0 %v256
      %v343 = vpop.f32.mrb[0].mxu0
      %v344 = vadd.f32 0.0, %v343
      %v345 = vpop.f32.mrb[0].mxu0
      %v346 = vpop.f32.mrb[0].mxu0
      %v347 = vpop.f32.mrb[0].mxu0
      %348 = vdwg.mxu0
      %349 = vrot.lane.b32.xlu0 %v238, 19
      %v350 = vpop.permute.xlu0 %349
      %351 = vrot.lane.b32.xlu0 %v239, 19
      %v352 = vpop.permute.xlu0 %351
      %353 = vrot.lane.b32.xlu0 %v240, 19
      %v354 = vpop.permute.xlu0 %353
      %355 = vrot.lane.b32.xlu0 %v241, 19
      %v356 = vpop.permute.xlu0 %355
      %vm357 = vcmask 154624
      %v358 = vsel %vm357, %v350, %v352
      %v359 = vsel %vm357, %v352, %v354
      %v360 = vsel %vm357, %v354, %v356
      %v362 = vsel %vm254, %v229, 0
      %v365 = vsel %vm258, %v358, 0
      %v368 = vsel %vm258, %v359, 0
      %v371 = vsel %vm258, %v360, 0
      %373 = vmatprep.subr.bf16.mxu0 %v368
      %374 = vmatpush1.bf16.msra.mxu0 %v365
      %375 = vmatprep.subr.bf16.mxu0 0
      %376 = vmatpush1.bf16.msra.mxu0 0
      %377 = vmatprep.subr.bf16.mxu0 0
      %378 = vmatpush1.bf16.msra.mxu0 0
      %379 = vmatprep.subr.bf16.mxu0 0
      %380 = vmatpush1.bf16.msra.mxu0 0
      %381 = vmatprep.subr.bf16.mxu0 0
      %382 = vmatpush1.bf16.msra.mxu0 0
      %383 = vmatprep.subr.bf16.mxu0 0
      %384 = vmatpush1.bf16.msra.mxu0 0
      %385 = vmatprep.subr.bf16.mxu0 0
      %386 = vmatpush1.bf16.msra.mxu0 0
      %387 = vmatprep.subr.bf16.mxu0 0
      %388 = vmatpush1.bf16.msra.mxu0 0
      %389 = vmatprep.subr.bf16.mxu0 0
      %390 = vmatpush1.bf16.msra.mxu0 0
      %391 = vmatprep.subr.bf16.mxu0 0
      %392 = vmatpush1.bf16.msra.mxu0 0
      %393 = vmatprep.subr.bf16.mxu0 0
      %394 = vmatpush1.bf16.msra.mxu0 0
      %395 = vmatprep.subr.bf16.mxu0 0
      %396 = vmatpush1.bf16.msra.mxu0 0
      %397 = vmatprep.subr.bf16.mxu0 0
      %398 = vmatpush1.bf16.msra.mxu0 0
      %399 = vmatprep.subr.bf16.mxu0 0
      %400 = vmatpush1.bf16.msra.mxu0 0
      %401 = vmatprep.subr.bf16.mxu0 0
      %402 = vmatpush1.bf16.msra.mxu0 0
      %403 = vmatprep.subr.bf16.mxu0 0
      %404 = vmatpush1.bf16.msra.mxu0 0
      %405 = vmatprep.mubr.bf16.mxu0 0
      %406 = vmatmul.mubr.bf16.gmra.mrb[0].mxu0 %v362
      %v407 = vpop.f32.mrb[0].mxu0
      %v408 = vadd.f32 %v303, %v407
      %v409 = vpop.f32.mrb[0].mxu0
      %v410 = vadd.f32 %v305, %v409
      %v411 = vpop.f32.mrb[0].mxu0
      %v412 = vpop.f32.mrb[0].mxu0
      %413 = vdwg.mxu0
      %414 = vmatprep.subr.bf16.mxu0 0
      %415 = vmatpush1.bf16.msra.mxu0 %v371
      %416 = vmatprep.subr.bf16.mxu0 0
      %417 = vmatpush1.bf16.msra.mxu0 0
      %418 = vmatprep.subr.bf16.mxu0 0
      %419 = vmatpush1.bf16.msra.mxu0 0
      %420 = vmatprep.subr.bf16.mxu0 0
      %421 = vmatpush1.bf16.msra.mxu0 0
      %422 = vmatprep.subr.bf16.mxu0 0
      %423 = vmatpush1.bf16.msra.mxu0 0
      %424 = vmatprep.subr.bf16.mxu0 0
      %425 = vmatpush1.bf16.msra.mxu0 0
      %426 = vmatprep.subr.bf16.mxu0 0
      %427 = vmatpush1.bf16.msra.mxu0 0
      %428 = vmatprep.subr.bf16.mxu0 0
      %429 = vmatpush1.bf16.msra.mxu0 0
      %430 = vmatprep.subr.bf16.mxu0 0
      %431 = vmatpush1.bf16.msra.mxu0 0
      %432 = vmatprep.subr.bf16.mxu0 0
      %433 = vmatpush1.bf16.msra.mxu0 0
      %434 = vmatprep.subr.bf16.mxu0 0
      %435 = vmatpush1.bf16.msra.mxu0 0
      %436 = vmatprep.subr.bf16.mxu0 0
      %437 = vmatpush1.bf16.msra.mxu0 0
      %438 = vmatprep.subr.bf16.mxu0 0
      %439 = vmatpush1.bf16.msra.mxu0 0
      %440 = vmatprep.subr.bf16.mxu0 0
      %441 = vmatpush1.bf16.msra.mxu0 0
      %442 = vmatprep.subr.bf16.mxu0 0
      %443 = vmatpush1.bf16.msra.mxu0 0
      %444 = vmatprep.subr.bf16.mxu0 0
      %445 = vmatpush1.bf16.msra.mxu0 0
      %446 = vmatprep.mubr.bf16.mxu0 0
      %447 = vmatmul.mubr.bf16.gmra.mrb[0].mxu0 %v362
      %v448 = vpop.f32.mrb[0].mxu0
      %v449 = vadd.f32 %v344, %v448
      %v450 = vpop.f32.mrb[0].mxu0
      %v451 = vpop.f32.mrb[0].mxu0
      %v452 = vpop.f32.mrb[0].mxu0
      %453 = vdwg.mxu0
      %s454 = scalar_lea.vmem %s1, 8
      %v455 = vld [vmem:[%s454] sm:$0xf]
      %456 = vrot.lane.b32.xlu0 %v238, 1
      %v457 = vpop.permute.xlu0 %456
      %458 = vrot.lane.b32.xlu0 %v239, 1
      %v459 = vpop.permute.xlu0 %458
      %460 = vrot.lane.b32.xlu0 %v240, 1
      %v461 = vpop.permute.xlu0 %460
      %462 = vrot.lane.b32.xlu0 %v241, 1
      %v463 = vpop.permute.xlu0 %462
      %vm464 = vcmask 7168
      %v465 = vsel %vm464, %v457, %v459
      %v466 = vsel %vm464, %v459, %v461
      %v467 = vsel %vm464, %v461, %v463
      %v469 = vsel %vm254, %v455, 0
      %v472 = vsel %vm258, %v465, 0
      %v475 = vsel %vm258, %v466, 0
      %v478 = vsel %vm258, %v467, 0
      %480 = vmatprep.subr.bf16.mxu0 %v475
      %481 = vmatpush1.bf16.msra.mxu0 %v472
      %482 = vmatprep.subr.bf16.mxu0 0
      %483 = vmatpush1.bf16.msra.mxu0 0
      %484 = vmatprep.subr.bf16.mxu0 0
      %485 = vmatpush1.bf16.msra.mxu0 0
      %486 = vmatprep.subr.bf16.mxu0 0
      %487 = vmatpush1.bf16.msra.mxu0 0
      %488 = vmatprep.subr.bf16.mxu0 0
      %489 = vmatpush1.bf16.msra.mxu0 0
      %490 = vmatprep.subr.bf16.mxu0 0
      %491 = vmatpush1.bf16.msra.mxu0 0
      %492 = vmatprep.subr.bf16.mxu0 0
      %493 = vmatpush1.bf16.msra.mxu0 0
      %494 = vmatprep.subr.bf16.mxu0 0
      %495 = vmatpush1.bf16.msra.mxu0 0
      %496 = vmatprep.subr.bf16.mxu0 0
      %497 = vmatpush1.bf16.msra.mxu0 0
      %498 = vmatprep.subr.bf16.mxu0 0
      %499 = vmatpush1.bf16.msra.mxu0 0
      %500 = vmatprep.subr.bf16.mxu0 0
      %501 = vmatpush1.bf16.msra.mxu0 0
      %502 = vmatprep.subr.bf16.mxu0 0
      %503 = vmatpush1.bf16.msra.mxu0 0
      %504 = vmatprep.subr.bf16.mxu0 0
      %505 = vmatpush1.bf16.msra.mxu0 0
      %506 = vmatprep.subr.bf16.mxu0 0
      %507 = vmatpush1.bf16.msra.mxu0 0
      %508 = vmatprep.subr.bf16.mxu0 0
      %509 = vmatpush1.bf16.msra.mxu0 0
      %510 = vmatprep.subr.bf16.mxu0 0
      %511 = vmatpush1.bf16.msra.mxu0 0
      %512 = vmatprep.mubr.bf16.mxu0 0
      %513 = vmatmul.mubr.bf16.gmra.mrb[0].mxu0 %v469
      %v514 = vpop.f32.mrb[0].mxu0
      %v515 = vadd.f32 0.0, %v514
      %v516 = vpop.f32.mrb[0].mxu0
      %v517 = vadd.f32 0.0, %v516
      %v518 = vpop.f32.mrb[0].mxu0
      %v519 = vpop.f32.mrb[0].mxu0
      %520 = vdwg.mxu0
      %521 = vmatprep.subr.bf16.mxu0 0
      %522 = vmatpush1.bf16.msra.mxu0 %v478
      %523 = vmatprep.subr.bf16.mxu0 0
      %524 = vmatpush1.bf16.msra.mxu0 0
      %525 = vmatprep.subr.bf16.mxu0 0
      %526 = vmatpush1.bf16.msra.mxu0 0
      %527 = vmatprep.subr.bf16.mxu0 0
      %528 = vmatpush1.bf16.msra.mxu0 0
      %529 = vmatprep.subr.bf16.mxu0 0
      %530 = vmatpush1.bf16.msra.mxu0 0
      %531 = vmatprep.subr.bf16.mxu0 0
      %532 = vmatpush1.bf16.msra.mxu0 0
      %533 = vmatprep.subr.bf16.mxu0 0
      %534 = vmatpush1.bf16.msra.mxu0 0
      %535 = vmatprep.subr.bf16.mxu0 0
      %536 = vmatpush1.bf16.msra.mxu0 0
      %537 = vmatprep.subr.bf16.mxu0 0
      %538 = vmatpush1.bf16.msra.mxu0 0
      %539 = vmatprep.subr.bf16.mxu0 0
      %540 = vmatpush1.bf16.msra.mxu0 0
      %541 = vmatprep.subr.bf16.mxu0 0
      %542 = vmatpush1.bf16.msra.mxu0 0
      %543 = vmatprep.subr.bf16.mxu0 0
      %544 = vmatpush1.bf16.msra.mxu0 0
      %545 = vmatprep.subr.bf16.mxu0 0
      %546 = vmatpush1.bf16.msra.mxu0 0
      %547 = vmatprep.subr.bf16.mxu0 0
      %548 = vmatpush1.bf16.msra.mxu0 0
      %549 = vmatprep.subr.bf16.mxu0 0
      %550 = vmatpush1.bf16.msra.mxu0 0
      %551 = vmatprep.subr.bf16.mxu0 0
      %552 = vmatpush1.bf16.msra.mxu0 0
      %553 = vmatprep.mubr.bf16.mxu0 0
      %554 = vmatmul.mubr.bf16.gmra.mrb[0].mxu0 %v469
      %v555 = vpop.f32.mrb[0].mxu0
      %v556 = vadd.f32 0.0, %v555
      %v557 = vpop.f32.mrb[0].mxu0
      %v558 = vpop.f32.mrb[0].mxu0
      %v559 = vpop.f32.mrb[0].mxu0
      %560 = vdwg.mxu0
      %v561 = vadd.f32 %v408, %v515
      %v562 = vadd.f32 %v410, %v517
      %v563 = vadd.f32 %v449, %v556
      %s564 = scalar_lea.vmem %s1, 12
      %v565 = vld [vmem:[%s564] sm:$0xf]
      %v567 = vsel %vm254, %v565, 0
      %v570 = vsel %vm258, %v239, 0
      %v573 = vsel %vm258, %v240, 0
      %v576 = vsel %vm258, %v241, 0
      %578 = vmatprep.subr.bf16.mxu0 %v573
      %579 = vmatpush1.bf16.msra.mxu0 %v570
      %580 = vmatprep.subr.bf16.mxu0 0
      %581 = vmatpush1.bf16.msra.mxu0 0
      %582 = vmatprep.subr.bf16.mxu0 0
      %583 = vmatpush1.bf16.msra.mxu0 0
      %584 = vmatprep.subr.bf16.mxu0 0
      %585 = vmatpush1.bf16.msra.mxu0 0
      %586 = vmatprep.subr.bf16.mxu0 0
      %587 = vmatpush1.bf16.msra.mxu0 0
      %588 = vmatprep.subr.bf16.mxu0 0
      %589 = vmatpush1.bf16.msra.mxu0 0
      %590 = vmatprep.subr.bf16.mxu0 0
      %591 = vmatpush1.bf16.msra.mxu0 0
      %592 = vmatprep.subr.bf16.mxu0 0
      %593 = vmatpush1.bf16.msra.mxu0 0
      %594 = vmatprep.subr.bf16.mxu0 0
      %595 = vmatpush1.bf16.msra.mxu0 0
      %596 = vmatprep.subr.bf16.mxu0 0
      %597 = vmatpush1.bf16.msra.mxu0 0
      %598 = vmatprep.subr.bf16.mxu0 0
      %599 = vmatpush1.bf16.msra.mxu0 0
      %600 = vmatprep.subr.bf16.mxu0 0
      %601 = vmatpush1.bf16.msra.mxu0 0
      %602 = vmatprep.subr.bf16.mxu0 0
      %603 = vmatpush1.bf16.msra.mxu0 0
      %604 = vmatprep.subr.bf16.mxu0 0
      %605 = vmatpush1.bf16.msra.mxu0 0
      %606 = vmatprep.subr.bf16.mxu0 0
      %607 = vmatpush1.bf16.msra.mxu0 0
      %608 = vmatprep.subr.bf16.mxu0 0
      %609 = vmatpush1.bf16.msra.mxu0 0
      %610 = vmatprep.mubr.bf16.mxu0 0
      %611 = vmatmul.mubr.bf16.gmra.mrb[0].mxu0 %v567
      %v612 = vpop.f32.mrb[0].mxu0
      %v613 = vadd.f32 0.0, %v612
      %v614 = vpop.f32.mrb[0].mxu0
      %v615 = vadd.f32 0.0, %v614
      %v616 = vpop.f32.mrb[0].mxu0
      %v617 = vpop.f32.mrb[0].mxu0
      %618 = vdwg.mxu0
      %619 = vmatprep.subr.bf16.mxu0 0
      %620 = vmatpush1.bf16.msra.mxu0 %v576
      %621 = vmatprep.subr.bf16.mxu0 0
      %622 = vmatpush1.bf16.msra.mxu0 0
      %623 = vmatprep.subr.bf16.mxu0 0
      %624 = vmatpush1.bf16.msra.mxu0 0
      %625 = vmatprep.subr.bf16.mxu0 0
      %626 = vmatpush1.bf16.msra.mxu0 0
      %627 = vmatprep.subr.bf16.mxu0 0
      %628 = vmatpush1.bf16.msra.mxu0 0
      %629 = vmatprep.subr.bf16.mxu0 0
      %630 = vmatpush1.bf16.msra.mxu0 0
      %631 = vmatprep.subr.bf16.mxu0 0
      %632 = vmatpush1.bf16.msra.mxu0 0
      %633 = vmatprep.subr.bf16.mxu0 0
      %634 = vmatpush1.bf16.msra.mxu0 0
      %635 = vmatprep.subr.bf16.mxu0 0
      %636 = vmatpush1.bf16.msra.mxu0 0
      %637 = vmatprep.subr.bf16.mxu0 0
      %638 = vmatpush1.bf16.msra.mxu0 0
      %639 = vmatprep.subr.bf16.mxu0 0
      %640 = vmatpush1.bf16.msra.mxu0 0
      %641 = vmatprep.subr.bf16.mxu0 0
      %642 = vmatpush1.bf16.msra.mxu0 0
      %643 = vmatprep.subr.bf16.mxu0 0
      %644 = vmatpush1.bf16.msra.mxu0 0
      %645 = vmatprep.subr.bf16.mxu0 0
      %646 = vmatpush1.bf16.msra.mxu0 0
      %647 = vmatprep.subr.bf16.mxu0 0
      %648 = vmatpush1.bf16.msra.mxu0 0
      %649 = vmatprep.subr.bf16.mxu0 0
      %650 = vmatpush1.bf16.msra.mxu0 0
      %651 = vmatprep.mubr.bf16.mxu0 0
      %652 = vmatmul.mubr.bf16.gmra.mrb[0].mxu0 %v567
      %v653 = vpop.f32.mrb[0].mxu0
      %v654 = vadd.f32 0.0, %v653
      %v655 = vpop.f32.mrb[0].mxu0
      %v656 = vpop.f32.mrb[0].mxu0
      %v657 = vpop.f32.mrb[0].mxu0
      %658 = vdwg.mxu0
      %v659 = vadd.f32 %v561, %v613
      %v660 = vadd.f32 %v562, %v615
      %v661 = vadd.f32 %v563, %v654
      %s662 = scalar_lea.vmem %s1, 16
      %v663 = vld [vmem:[%s662] sm:$0xf]
      %v665 = vunpack.c.l.b16 %v228
      %v666 = vpack.c.b16 %v665, %v665
      %667 = vrot.lane.b32.xlu0 %v239, 127
      %v668 = vpop.permute.xlu0 %667
      %669 = vrot.lane.b32.xlu0 %v240, 127
      %v670 = vpop.permute.xlu0 %669
      %671 = vrot.lane.b32.xlu0 %v241, 127
      %v672 = vpop.permute.xlu0 %671
      %673 = vrot.lane.b32.xlu0 %v666, 127
      %v674 = vpop.permute.xlu0 %673
      %vm675 = vcmask 1039360
      %v676 = vsel %vm675, %v668, %v670
      %v677 = vsel %vm675, %v670, %v672
      %v678 = vsel %vm675, %v672, %v674
      %v680 = vsel %vm254, %v663, 0
      %v683 = vsel %vm258, %v676, 0
      %v686 = vsel %vm258, %v677, 0
      %v689 = vsel %vm258, %v678, 0
      %691 = vmatprep.subr.bf16.mxu0 %v686
      %692 = vmatpush1.bf16.msra.mxu0 %v683
      %693 = vmatprep.subr.bf16.mxu0 0
      %694 = vmatpush1.bf16.msra.mxu0 0
      %695 = vmatprep.subr.bf16.mxu0 0
      %696 = vmatpush1.bf16.msra.mxu0 0
      %697 = vmatprep.subr.bf16.mxu0 0
      %698 = vmatpush1.bf16.msra.mxu0 0
      %699 = vmatprep.subr.bf16.mxu0 0
      %700 = vmatpush1.bf16.msra.mxu0 0
      %701 = vmatprep.subr.bf16.mxu0 0
      %702 = vmatpush1.bf16.msra.mxu0 0
      %703 = vmatprep.subr.bf16.mxu0 0
      %704 = vmatpush1.bf16.msra.mxu0 0
      %705 = vmatprep.subr.bf16.mxu0 0
      %706 = vmatpush1.bf16.msra.mxu0 0
      %707 = vmatprep.subr.bf16.mxu0 0
      %708 = vmatpush1.bf16.msra.mxu0 0
      %709 = vmatprep.subr.bf16.mxu0 0
      %710 = vmatpush1.bf16.msra.mxu0 0
      %711 = vmatprep.subr.bf16.mxu0 0
      %712 = vmatpush1.bf16.msra.mxu0 0
      %713 = vmatprep.subr.bf16.mxu0 0
      %714 = vmatpush1.bf16.msra.mxu0 0
      %715 = vmatprep.subr.bf16.mxu0 0
      %716 = vmatpush1.bf16.msra.mxu0 0
      %717 = vmatprep.subr.bf16.mxu0 0
      %718 = vmatpush1.bf16.msra.mxu0 0
      %719 = vmatprep.subr.bf16.mxu0 0
      %720 = vmatpush1.bf16.msra.mxu0 0
      %721 = vmatprep.subr.bf16.mxu0 0
      %722 = vmatpush1.bf16.msra.mxu0 0
      %723 = vmatprep.mubr.bf16.mxu0 0
      %724 = vmatmul.mubr.bf16.gmra.mrb[0].mxu0 %v680
      %v725 = vpop.f32.mrb[0].mxu0
      %v726 = vadd.f32 0.0, %v725
      %v727 = vpop.f32.mrb[0].mxu0
      %v728 = vadd.f32 0.0, %v727
      %v729 = vpop.f32.mrb[0].mxu0
      %v730 = vpop.f32.mrb[0].mxu0
      %731 = vdwg.mxu0
      %732 = vmatprep.subr.bf16.mxu0 0
      %733 = vmatpush1.bf16.msra.mxu0 %v689
      %734 = vmatprep.subr.bf16.mxu0 0
      %735 = vmatpush1.bf16.msra.mxu0 0
      %736 = vmatprep.subr.bf16.mxu0 0
      %737 = vmatpush1.bf16.msra.mxu0 0
      %738 = vmatprep.subr.bf16.mxu0 0
      %739 = vmatpush1.bf16.msra.mxu0 0
      %740 = vmatprep.subr.bf16.mxu0 0
      %741 = vmatpush1.bf16.msra.mxu0 0
      %742 = vmatprep.subr.bf16.mxu0 0
      %743 = vmatpush1.bf16.msra.mxu0 0
      %744 = vmatprep.subr.bf16.mxu0 0
      %745 = vmatpush1.bf16.msra.mxu0 0
      %746 = vmatprep.subr.bf16.mxu0 0
      %747 = vmatpush1.bf16.msra.mxu0 0
      %748 = vmatprep.subr.bf16.mxu0 0
      %749 = vmatpush1.bf16.msra.mxu0 0
      %750 = vmatprep.subr.bf16.mxu0 0
      %751 = vmatpush1.bf16.msra.mxu0 0
      %752 = vmatprep.subr.bf16.mxu0 0
      %753 = vmatpush1.bf16.msra.mxu0 0
      %754 = vmatprep.subr.bf16.mxu0 0
      %755 = vmatpush1.bf16.msra.mxu0 0
      %756 = vmatprep.subr.bf16.mxu0 0
      %757 = vmatpush1.bf16.msra.mxu0 0
      %758 = vmatprep.subr.bf16.mxu0 0
      %759 = vmatpush1.bf16.msra.mxu0 0
      %760 = vmatprep.subr.bf16.mxu0 0
      %761 = vmatpush1.bf16.msra.mxu0 0
      %762 = vmatprep.subr.bf16.mxu0 0
      %763 = vmatpush1.bf16.msra.mxu0 0
      %764 = vmatprep.mubr.bf16.mxu0 0
      %765 = vmatmul.mubr.bf16.gmra.mrb[0].mxu0 %v680
      %v766 = vpop.f32.mrb[0].mxu0
      %v767 = vadd.f32 0.0, %v766
      %v768 = vpop.f32.mrb[0].mxu0
      %v769 = vpop.f32.mrb[0].mxu0
      %v770 = vpop.f32.mrb[0].mxu0
      %771 = vdwg.mxu0
      %v772 = vadd.f32 %v659, %v726
      %v773 = vadd.f32 %v660, %v728
      %v774 = vadd.f32 %v661, %v767
      %s775 = scalar_lea.vmem %s1, 20
      %v776 = vld [vmem:[%s775] sm:$0xf]
      %777 = vrot.lane.b32.xlu0 %v239, 110
      %v778 = vpop.permute.xlu0 %777
      %779 = vrot.lane.b32.xlu0 %v240, 110
      %v780 = vpop.permute.xlu0 %779
      %781 = vrot.lane.b32.xlu0 %v241, 110
      %v782 = vpop.permute.xlu0 %781
      %783 = vrot.lane.b32.xlu0 %v666, 110
      %v784 = vpop.permute.xlu0 %783
      %vm785 = vcmask 900096
      %v786 = vsel %vm785, %v778, %v780
      %v787 = vsel %vm785, %v780, %v782
      %v788 = vsel %vm785, %v782, %v784
      %v790 = vsel %vm254, %v776, 0
      %v793 = vsel %vm258, %v786, 0
      %v796 = vsel %vm258, %v787, 0
      %v799 = vsel %vm258, %v788, 0
      %801 = vmatprep.subr.bf16.mxu0 %v796
      %802 = vmatpush1.bf16.msra.mxu0 %v793
      %803 = vmatprep.subr.bf16.mxu0 0
      %804 = vmatpush1.bf16.msra.mxu0 0
      %805 = vmatprep.subr.bf16.mxu0 0
      %806 = vmatpush1.bf16.msra.mxu0 0
      %807 = vmatprep.subr.bf16.mxu0 0
      %808 = vmatpush1.bf16.msra.mxu0 0
      %809 = vmatprep.subr.bf16.mxu0 0
      %810 = vmatpush1.bf16.msra.mxu0 0
      %811 = vmatprep.subr.bf16.mxu0 0
      %812 = vmatpush1.bf16.msra.mxu0 0
      %813 = vmatprep.subr.bf16.mxu0 0
      %814 = vmatpush1.bf16.msra.mxu0 0
      %815 = vmatprep.subr.bf16.mxu0 0
      %816 = vmatpush1.bf16.msra.mxu0 0
      %817 = vmatprep.subr.bf16.mxu0 0
      %818 = vmatpush1.bf16.msra.mxu0 0
      %819 = vmatprep.subr.bf16.mxu0 0
      %820 = vmatpush1.bf16.msra.mxu0 0
      %821 = vmatprep.subr.bf16.mxu0 0
      %822 = vmatpush1.bf16.msra.mxu0 0
      %823 = vmatprep.subr.bf16.mxu0 0
      %824 = vmatpush1.bf16.msra.mxu0 0
      %825 = vmatprep.subr.bf16.mxu0 0
      %826 = vmatpush1.bf16.msra.mxu0 0
      %827 = vmatprep.subr.bf16.mxu0 0
      %828 = vmatpush1.bf16.msra.mxu0 0
      %829 = vmatprep.subr.bf16.mxu0 0
      %830 = vmatpush1.bf16.msra.mxu0 0
      %831 = vmatprep.subr.bf16.mxu0 0
      %832 = vmatpush1.bf16.msra.mxu0 0
      %833 = vmatprep.mubr.bf16.mxu0 0
      %834 = vmatmul.mubr.bf16.gmra.mrb[0].mxu0 %v790
      %v835 = vpop.f32.mrb[0].mxu0
      %v836 = vadd.f32 0.0, %v835
      %v837 = vpop.f32.mrb[0].mxu0
      %v838 = vadd.f32 0.0, %v837
      %v839 = vpop.f32.mrb[0].mxu0
      %v840 = vpop.f32.mrb[0].mxu0
      %841 = vdwg.mxu0
      %842 = vmatprep.subr.bf16.mxu0 0
      %843 = vmatpush1.bf16.msra.mxu0 %v799
      %844 = vmatprep.subr.bf16.mxu0 0
      %845 = vmatpush1.bf16.msra.mxu0 0
      %846 = vmatprep.subr.bf16.mxu0 0
      %847 = vmatpush1.bf16.msra.mxu0 0
      %848 = vmatprep.subr.bf16.mxu0 0
      %849 = vmatpush1.bf16.msra.mxu0 0
      %850 = vmatprep.subr.bf16.mxu0 0
      %851 = vmatpush1.bf16.msra.mxu0 0
      %852 = vmatprep.subr.bf16.mxu0 0
      %853 = vmatpush1.bf16.msra.mxu0 0
      %854 = vmatprep.subr.bf16.mxu0 0
      %855 = vmatpush1.bf16.msra.mxu0 0
      %856 = vmatprep.subr.bf16.mxu0 0
      %857 = vmatpush1.bf16.msra.mxu0 0
      %858 = vmatprep.subr.bf16.mxu0 0
      %859 = vmatpush1.bf16.msra.mxu0 0
      %860 = vmatprep.subr.bf16.mxu0 0
      %861 = vmatpush1.bf16.msra.mxu0 0
      %862 = vmatprep.subr.bf16.mxu0 0
      %863 = vmatpush1.bf16.msra.mxu0 0
      %864 = vmatprep.subr.bf16.mxu0 0
      %865 = vmatpush1.bf16.msra.mxu0 0
      %866 = vmatprep.subr.bf16.mxu0 0
      %867 = vmatpush1.bf16.msra.mxu0 0
      %868 = vmatprep.subr.bf16.mxu0 0
      %869 = vmatpush1.bf16.msra.mxu0 0
      %870 = vmatprep.subr.bf16.mxu0 0
      %871 = vmatpush1.bf16.msra.mxu0 0
      %872 = vmatprep.subr.bf16.mxu0 0
      %873 = vmatpush1.bf16.msra.mxu0 0
      %874 = vmatprep.mubr.bf16.mxu0 0
      %875 = vmatmul.mubr.bf16.gmra.mrb[0].mxu0 %v790
      %v876 = vpop.f32.mrb[0].mxu0
      %v877 = vadd.f32 0.0, %v876
      %v878 = vpop.f32.mrb[0].mxu0
      %v879 = vpop.f32.mrb[0].mxu0
      %v880 = vpop.f32.mrb[0].mxu0
      %881 = vdwg.mxu0
      %v882 = vadd.f32 %v772, %v836
      %v883 = vadd.f32 %v773, %v838
      %v884 = vadd.f32 %v774, %v877
      %s885 = scalar_lea.vmem %s1, 24
      %v886 = vld [vmem:[%s885] sm:$0xf]
      %887 = vrot.lane.b32.xlu0 %v239, 109
      %v888 = vpop.permute.xlu0 %887
      %889 = vrot.lane.b32.xlu0 %v240, 109
      %v890 = vpop.permute.xlu0 %889
      %891 = vrot.lane.b32.xlu0 %v241, 109
      %v892 = vpop.permute.xlu0 %891
      %893 = vrot.lane.b32.xlu0 %v666, 109
      %v894 = vpop.permute.xlu0 %893
      %vm895 = vcmask 891904
      %v896 = vsel %vm895, %v888, %v890
      %v897 = vsel %vm895, %v890, %v892
      %v898 = vsel %vm895, %v892, %v894
      %v900 = vsel %vm254, %v886, 0
      %v903 = vsel %vm258, %v896, 0
      %v906 = vsel %vm258, %v897, 0
      %v909 = vsel %vm258, %v898, 0
      %911 = vmatprep.subr.bf16.mxu0 %v906
      %912 = vmatpush1.bf16.msra.mxu0 %v903
      %913 = vmatprep.subr.bf16.mxu0 0
      %914 = vmatpush1.bf16.msra.mxu0 0
      %915 = vmatprep.subr.bf16.mxu0 0
      %916 = vmatpush1.bf16.msra.mxu0 0
      %917 = vmatprep.subr.bf16.mxu0 0
      %918 = vmatpush1.bf16.msra.mxu0 0
      %919 = vmatprep.subr.bf16.mxu0 0
      %920 = vmatpush1.bf16.msra.mxu0 0
      %921 = vmatprep.subr.bf16.mxu0 0
      %922 = vmatpush1.bf16.msra.mxu0 0
      %923 = vmatprep.subr.bf16.mxu0 0
      %924 = vmatpush1.bf16.msra.mxu0 0
      %925 = vmatprep.subr.bf16.mxu0 0
      %926 = vmatpush1.bf16.msra.mxu0 0
      %927 = vmatprep.subr.bf16.mxu0 0
      %928 = vmatpush1.bf16.msra.mxu0 0
      %929 = vmatprep.subr.bf16.mxu0 0
      %930 = vmatpush1.bf16.msra.mxu0 0
      %931 = vmatprep.subr.bf16.mxu0 0
      %932 = vmatpush1.bf16.msra.mxu0 0
      %933 = vmatprep.subr.bf16.mxu0 0
      %934 = vmatpush1.bf16.msra.mxu0 0
      %935 = vmatprep.subr.bf16.mxu0 0
      %936 = vmatpush1.bf16.msra.mxu0 0
      %937 = vmatprep.subr.bf16.mxu0 0
      %938 = vmatpush1.bf16.msra.mxu0 0
      %939 = vmatprep.subr.bf16.mxu0 0
      %940 = vmatpush1.bf16.msra.mxu0 0
      %941 = vmatprep.subr.bf16.mxu0 0
      %942 = vmatpush1.bf16.msra.mxu0 0
      %943 = vmatprep.mubr.bf16.mxu0 0
      %944 = vmatmul.mubr.bf16.gmra.mrb[0].mxu0 %v900
      %v945 = vpop.f32.mrb[0].mxu0
      %v946 = vadd.f32 0.0, %v945
      %v947 = vpop.f32.mrb[0].mxu0
      %v948 = vadd.f32 0.0, %v947
      %v949 = vpop.f32.mrb[0].mxu0
      %v950 = vpop.f32.mrb[0].mxu0
      %951 = vdwg.mxu0
      %952 = vmatprep.subr.bf16.mxu0 0
      %953 = vmatpush1.bf16.msra.mxu0 %v909
      %954 = vmatprep.subr.bf16.mxu0 0
      %955 = vmatpush1.bf16.msra.mxu0 0
      %956 = vmatprep.subr.bf16.mxu0 0
      %957 = vmatpush1.bf16.msra.mxu0 0
      %958 = vmatprep.subr.bf16.mxu0 0
      %959 = vmatpush1.bf16.msra.mxu0 0
      %960 = vmatprep.subr.bf16.mxu0 0
      %961 = vmatpush1.bf16.msra.mxu0 0
      %962 = vmatprep.subr.bf16.mxu0 0
      %963 = vmatpush1.bf16.msra.mxu0 0
      %964 = vmatprep.subr.bf16.mxu0 0
      %965 = vmatpush1.bf16.msra.mxu0 0
      %966 = vmatprep.subr.bf16.mxu0 0
      %967 = vmatpush1.bf16.msra.mxu0 0
      %968 = vmatprep.subr.bf16.mxu0 0
      %969 = vmatpush1.bf16.msra.mxu0 0
      %970 = vmatprep.subr.bf16.mxu0 0
      %971 = vmatpush1.bf16.msra.mxu0 0
      %972 = vmatprep.subr.bf16.mxu0 0
      %973 = vmatpush1.bf16.msra.mxu0 0
      %974 = vmatprep.subr.bf16.mxu0 0
      %975 = vmatpush1.bf16.msra.mxu0 0
      %976 = vmatprep.subr.bf16.mxu0 0
      %977 = vmatpush1.bf16.msra.mxu0 0
      %978 = vmatprep.subr.bf16.mxu0 0
      %979 = vmatpush1.bf16.msra.mxu0 0
      %980 = vmatprep.subr.bf16.mxu0 0
      %981 = vmatpush1.bf16.msra.mxu0 0
      %982 = vmatprep.subr.bf16.mxu0 0
      %983 = vmatpush1.bf16.msra.mxu0 0
      %984 = vmatprep.mubr.bf16.mxu0 0
      %985 = vmatmul.mubr.bf16.gmra.mrb[0].mxu0 %v900
      %v986 = vpop.f32.mrb[0].mxu0
      %v987 = vadd.f32 0.0, %v986
      %v988 = vpop.f32.mrb[0].mxu0
      %v989 = vpop.f32.mrb[0].mxu0
      %v990 = vpop.f32.mrb[0].mxu0
      %991 = vdwg.mxu0
      %v992 = vadd.f32 %v882, %v946
      %v993 = vadd.f32 %v883, %v948
      %v994 = vadd.f32 %v884, %v987
      %v995 = vld [vmem:[%s3] sm:$0xff]
      %997 = vset.pattern.permute.xlu0 0
      %998 = vperm.xlu0 %997, %v995
      %v999 = vpop.permute.xlu0 %998
      %v1001 = vmul.f32 %v992, %v999
      %v1002 = vmul.f32 %v993, %v999
      %v1003 = vmul.f32 %v994, %v999
      %v1004 = vld [vmem:[%s4] sm:$0xff]
      %1006 = vset.pattern.permute.xlu0 0
      %1007 = vperm.xlu0 %1006, %v1004
      %v1008 = vpop.permute.xlu0 %1007
      %v1010 = vadd.f32 %v1001, %v1008
      %v1011 = vadd.f32 %v1002, %v1008
      %v1012 = vadd.f32 %v1003, %v1008
      %v1013 = vmax.f32 %v1010, 0.0
      %v1014 = vmax.f32 %v1011, 0.0
      %v1015 = vmax.f32 %v1012, 0.0
      %v1016 = vld [vmem:[%s2] sm:$0x7]
      %v1018 = vlaneseq
      %v1019 = vshrl.u32 %v1018, 7
      %v1020 = vsub.s32 0, %v1019
      %v1021 = vrot.slane %v1016, %v1020
      %v1022 = vlaneseq
      %v1023 = vshrl.u32 %v1022, 7
      %v1024 = vsub.s32 1, %v1023
      %v1025 = vrot.slane %v1016, %v1024
      %v1026 = vlaneseq
      %v1027 = vshrl.u32 %v1026, 7
      %v1028 = vsub.s32 2, %v1027
      %v1029 = vrot.slane %v1016, %v1028
      %v1033 = vmul.f32 %v1013, %v1021
      %v1034 = vmul.f32 %v1014, %v1025
      %v1035 = vmul.f32 %v1015, %v1029
      %1036 = vst [vmem:[%s224] sm:$0xff] 0.0
      %1037 = vst [vmem:[%s224 + $0x8] sm:$0xff] %v1033
      %1038 = vst [vmem:[%s224 + $0x10] sm:$0xff] %v1034
      %1039 = vst [vmem:[%s224 + $0x18] sm:$0xff] %v1035
      %1040 = vst [vmem:[%s224 + $0x20] sm:$0xff] 0.0
      %p1041 = scmp.lt.s32.totalorder %s16, 1
      %s1042 = scalar_select %p1041, %s16, 1
      %s1043 = smul.addr %s1042, 5
      %s1044 = smul.addr %s1043, 8
      %s1045 = scalar_lea.vmem %s5, %s1044
      // Predicated region
      $region41: #{resblock_enc_forward.7} parent=39 // pred_check
        %p1046 = pneg %p144
      $region42: #{resblock_enc_forward.7} parent=39 // pred_check_branch
        %1048 = sbr.rel (%p1046) target = $region44
      $region43: #{resblock_enc_forward.7} parent=39 // pred_region
        _
      $region44: #{resblock_enc_forward.7} parent=39 // pred_fallthru
        _
    $region40: #{resblock_enc_forward.7} parent=5 // pred_fallthru
      _
    %p1049 = scmp.le.s32.totalorder 2, %s11
    // Predicated region
    $region45: #{resblock_enc_forward.7} parent=5 // pred_check
      %p1050 = pneg %p1049
    $region46: #{resblock_enc_forward.7} parent=5 // pred_check_branch
      %1052 = sbr.rel (%p1050) target = $region48
    $region47: #{resblock_enc_forward.7} parent=5 // pred_region
      %s1053 = ssub.s32 %s11, 2
      // Predicated region
      $region49: #{resblock_enc_forward.7} parent=47 // pred_check
        %p1054 = pneg %p150
      $region50: #{resblock_enc_forward.7} parent=47 // pred_check_branch
        %1056 = sbr.rel (%p1054) target = $region52
      $region51: #{resblock_enc_forward.7} parent=47 // pred_region
        %p1057 = scmp.lt.s32.totalorder %s17, 1
        %s1058 = scalar_select %p1057, %s17, 1
        %s1059 = smul.addr %s1058, 5
        %s1060 = smul.addr %s1059, 8
        %s1061 = scalar_lea.vmem %s5, %s1060
      $region52: #{resblock_enc_forward.7} parent=47 // pred_fallthru
        _
    $region48: #{resblock_enc_forward.7} parent=5 // pred_fallthru
      _
  $region6: #{resblock_enc_forward.7} parent=0 // loop_footer
    %s15 = sadd.s32 1, %s11
  $region7: #{resblock_enc_forward.7} parent=0 // loop_footer_branch
    %10 = sbr.rel target = $region3
  $region8: #{resblock_enc_forward.7} parent=0 // loop_exit
    _

</llo_original>
